<compile_context>
chip_gen: v7x
topology: tpu7x:2x2x1
jax: 0.10.0
libtpu: 0.0.40
codegen_flags: <defaults>
</compile_context>

<pallas_src>
import functools

import jax
import jax.numpy as jnp
from jax.experimental import pallas as pl
from jax.experimental.pallas import tpu as pltpu

LATENT_DIMS = 2
IN_DIM = 784            # 1 * 28 * 28
IN_PAD = 896            # 7 * 128  (lane-dense feature width)
HID_DIM = 512
LAT_PAD = 128           # lane-dense latent width (mu cols 0:2, log-sigma cols 2:4)


def _round_up(n, m):
    return ((n + m - 1) // m) * m


def _vae_kernel(x_ref, eps_ref,
                w1_ref, b1_ref,        # encoder.linear1: 896(pad) -> 512   (bf16 weights)
                w23_ref, b23_ref,      # fused encoder.linear2||linear3: 512 -> 128(pad)
                w4_ref, b4_ref,        # decoder.linear1: 2 -> 512  (used as outer product)
                w5_ref, b5_ref,        # decoder.linear2: 512 -> 896(pad)   (bf16 weights)
                out_ref):
    # ---- encoder: big matmul on MXU (bf16 inputs, f32 accumulation) ----
    x = x_ref[...].astype(jnp.bfloat16)                                   # (TB, 896)
    h = jnp.dot(x, w1_ref[...], preferred_element_type=jnp.float32)
    h = jnp.maximum(h + b1_ref[...], 0.0)                                 # relu, (TB, 512) f32

    # ---- fused mu || log-sigma head (single small matmul, lane width 128) ----
    head = jnp.dot(h, w23_ref[...], preferred_element_type=jnp.float32) + b23_ref[...]

    # ---- reparameterize + decoder.linear1 as a VPU outer product ----
    # K = LATENT_DIMS = 2 is far too small for the MXU; two broadcast FMAs suffice.
    eps = eps_ref[...]                                                    # (TB, 128) f32
    h2 = b4_ref[...]                                                      # (1, 512) f32
    for j in range(LATENT_DIMS):
        mu_j = head[:, j:j + 1]                                           # (TB, 1)
        sigma_j = jnp.exp(head[:, LATENT_DIMS + j:LATENT_DIMS + j + 1])   # (TB, 1)
        z_j = mu_j + sigma_j * eps[:, j:j + 1]                            # (TB, 1)
        h2 = h2 + z_j * w4_ref[j:j + 1, :]                                # (TB, 512)
    h2 = jnp.maximum(h2, 0.0)                                             # relu
    # TODO(synk): encoder.kl (scalar side-effect attribute) is not part of the
    # module's forward return value, so it is not emitted by this kernel.

    # ---- decoder: second big matmul on MXU (bf16 inputs, f32 accumulation) ----
    logits = jnp.dot(h2.astype(jnp.bfloat16), w5_ref[...],
                     preferred_element_type=jnp.float32) + b5_ref[...]    # (TB, 896)
    out_ref[...] = jax.nn.sigmoid(logits)


def init_params(key):
    """Deterministic parameter init mimicking torch.nn.Linear defaults
    (uniform(-1/sqrt(fan_in), 1/sqrt(fan_in))), in the module's natural layout."""
    def linear(k, fan_in, fan_out):
        kw, kb = jax.random.split(k)
        bound = 1.0 / jnp.sqrt(fan_in)
        w = jax.random.uniform(kw, (fan_in, fan_out), jnp.float32, -bound, bound)
        b = jax.random.uniform(kb, (1, fan_out), jnp.float32, -bound, bound)
        return w, b

    k1, k2, k3, k4, k5 = jax.random.split(key, 5)
    w1, b1 = linear(k1, IN_DIM, HID_DIM)        # encoder.linear1
    w2, b2 = linear(k2, HID_DIM, LATENT_DIMS)   # encoder.linear2 (mu)
    w3, b3 = linear(k3, HID_DIM, LATENT_DIMS)   # encoder.linear3 (log sigma)
    w4, b4 = linear(k4, LATENT_DIMS, HID_DIM)   # decoder.linear1
    w5, b5 = linear(k5, HID_DIM, IN_DIM)        # decoder.linear2
    return (w1, b1, w2, b2, w3, b3, w4, b4, w5, b5)


def pack_params(params):
    """Pad / fuse / cast the natural-layout params into the kernel layout.

    Padded regions are zero, so sliced outputs are unaffected.
    """
    w1, b1, w2, b2, w3, b3, w4, b4, w5, b5 = params
    # encoder.linear1: pad input rows 784 -> 896, store bf16 for the MXU.
    w1p = jnp.zeros((IN_PAD, HID_DIM), jnp.float32).at[:IN_DIM, :].set(w1)
    w1p = w1p.astype(jnp.bfloat16)
    # fused mu || log-sigma head, lane-padded to 128.
    w23 = jnp.zeros((HID_DIM, LAT_PAD), jnp.float32)
    w23 = w23.at[:, :LATENT_DIMS].set(w2).at[:, LATENT_DIMS:2 * LATENT_DIMS].set(w3)
    b23 = jnp.zeros((1, LAT_PAD), jnp.float32)
    b23 = b23.at[:, :LATENT_DIMS].set(b2).at[:, LATENT_DIMS:2 * LATENT_DIMS].set(b3)
    # decoder.linear2: pad output cols 784 -> 896 with zeros, store bf16.
    w5p = jnp.zeros((HID_DIM, IN_PAD), jnp.float32).at[:, :IN_DIM].set(w5)
    w5p = w5p.astype(jnp.bfloat16)
    b5p = jnp.zeros((1, IN_PAD), jnp.float32).at[:, :IN_DIM].set(b5)
    return (w1p, b1, w23, b23, w4, b4, w5p, b5p)


@functools.partial(jax.jit, static_argnames=("tb",))
def vae_forward(x_nchw, eps, packed_params, tb=256):
    B = x_nchw.shape[0]
    TB = min(tb, _round_up(B, 8))          # batch tile (>= 8 sublanes)
    Bp = _round_up(B, TB)                  # padded batch

    # flatten (== torch.flatten(x, start_dim=1)) and zero-pad to lane-dense shapes.
    x_flat = x_nchw.reshape(B, IN_DIM).astype(jnp.float32)
    x_pad = jnp.zeros((Bp, IN_PAD), jnp.float32).at[:B, :IN_DIM].set(x_flat)
    eps_pad = jnp.zeros((Bp, LAT_PAD), jnp.float32).at[:B, :LATENT_DIMS].set(eps)

    w1p, b1, w23, b23, w4, b4, w5p, b5p = packed_params

    const = lambda i: (0, 0)   # weights/biases: single block, VMEM-resident across steps
    out_pad = pl.pallas_call(
        _vae_kernel,
        out_shape=jax.ShapeDtypeStruct((Bp, IN_PAD), jnp.float32),
        grid=(pl.cdiv(Bp, TB),),
        in_specs=[
            pl.BlockSpec((TB, IN_PAD), lambda i: (i, 0)),          # x
            pl.BlockSpec((TB, LAT_PAD), lambda i: (i, 0)),         # eps
            pl.BlockSpec((IN_PAD, HID_DIM), const),                # w1 (bf16)
            pl.BlockSpec((1, HID_DIM), const),                     # b1
            pl.BlockSpec((HID_DIM, LAT_PAD), const),               # w2||w3
            pl.BlockSpec((1, LAT_PAD), const),                     # b2||b3
            pl.BlockSpec((LATENT_DIMS, HID_DIM), const),           # w4
            pl.BlockSpec((1, HID_DIM), const),                     # b4
            pl.BlockSpec((HID_DIM, IN_PAD), const),                # w5 (bf16)
            pl.BlockSpec((1, IN_PAD), const),                      # b5
        ],
        out_specs=pl.BlockSpec((TB, IN_PAD), lambda i: (i, 0)),
        compiler_params=pltpu.CompilerParams(
            dimension_semantics=("parallel",)),
    )(x_pad, eps_pad, w1p, b1, w23, b23, w4, b4, w5p, b5p)

    # drop batch / feature padding and restore NCHW.
    return out_pad[:B, :IN_DIM].reshape(B, 1, 28, 28)


if __name__ == "__main__":
    key = jax.random.PRNGKey(0)
    k_params, k_x, k_eps = jax.random.split(key, 3)

    B = 2
    params = init_params(k_params)
    packed = pack_params(params)
    x = jax.random.normal(k_x, (B, 1, 28, 28), jnp.float32)          # NCHW input
    eps = jax.random.normal(k_eps, (B, LATENT_DIMS), jnp.float32)    # N(0,1) sample

    out = vae_forward(x, eps, packed)
    jax.block_until_ready(out)

    assert out.shape == (B, 1, 28, 28), out.shape
    assert out.dtype == jnp.float32
    assert bool(jnp.all(jnp.isfinite(out)))
    assert bool(jnp.all((out >= 0.0) & (out <= 1.0)))                # sigmoid range

    print("KERNEL_OK")
</pallas_src>

<mosaic_0001>
module attributes {stable_mosaic.version = 11 : i64} {
  func.func @_vae_kernel(%arg0: i32, %arg1: memref<8x896xf32, #tpu.memory_space<vmem>>, %arg2: memref<8x128xf32, #tpu.memory_space<vmem>>, %arg3: memref<896x512xbf16, #tpu.memory_space<vmem>>, %arg4: memref<1x512xf32, #tpu.memory_space<vmem>>, %arg5: memref<512x128xf32, #tpu.memory_space<vmem>>, %arg6: memref<1x128xf32, #tpu.memory_space<vmem>>, %arg7: memref<2x512xf32, #tpu.memory_space<vmem>>, %arg8: memref<1x512xf32, #tpu.memory_space<vmem>>, %arg9: memref<512x896xbf16, #tpu.memory_space<vmem>>, %arg10: memref<1x896xf32, #tpu.memory_space<vmem>>, %arg11: memref<8x896xf32, #tpu.memory_space<vmem>>) attributes {dimension_semantics = [#tpu.dimension_semantics<parallel>], iteration_bounds = array<i64: 1>, scalar_prefetch = 0 : i64, scratch_operands = 0 : i64, tpu.core_type = #tpu.core_type<tc>, window_params = [{transform_indices = @transform_0, window_bounds = array<i64: 8, 896>}, {transform_indices = @transform_1, window_bounds = array<i64: 8, 128>}, {pipeline_mode = #tpu.pipeline_mode<synchronous>, transform_indices = @transform_2, window_bounds = array<i64: 896, 512>}, {pipeline_mode = #tpu.pipeline_mode<synchronous>, transform_indices = @transform_3, window_bounds = array<i64: 1, 512>}, {pipeline_mode = #tpu.pipeline_mode<synchronous>, transform_indices = @transform_4, window_bounds = array<i64: 512, 128>}, {pipeline_mode = #tpu.pipeline_mode<synchronous>, transform_indices = @transform_5, window_bounds = array<i64: 1, 128>}, {pipeline_mode = #tpu.pipeline_mode<synchronous>, transform_indices = @transform_6, window_bounds = array<i64: 2, 512>}, {pipeline_mode = #tpu.pipeline_mode<synchronous>, transform_indices = @transform_7, window_bounds = array<i64: 1, 512>}, {pipeline_mode = #tpu.pipeline_mode<synchronous>, transform_indices = @transform_8, window_bounds = array<i64: 512, 896>}, {pipeline_mode = #tpu.pipeline_mode<synchronous>, transform_indices = @transform_9, window_bounds = array<i64: 1, 896>}, {transform_indices = @transform_10, window_bounds = array<i64: 8, 896>}]} {
    %c0 = arith.constant 0 : index
    %c0_0 = arith.constant 0 : index
    %0 = vector.load %arg1[%c0, %c0_0] : memref<8x896xf32, #tpu.memory_space<vmem>>, vector<8x896xf32>
    %1 = arith.truncf %0 : vector<8x896xf32> to vector<8x896xbf16>
    %c0_1 = arith.constant 0 : index
    %c0_2 = arith.constant 0 : index
    %2 = vector.load %arg3[%c0_1, %c0_2] : memref<896x512xbf16, #tpu.memory_space<vmem>>, vector<896x512xbf16>
    %cst = arith.constant dense<0.000000e+00> : vector<8x512xf32>
    %3 = tpu.matmul %1, %2, %cst {dimension_numbers = #tpu.dot_dimension_numbers<[1], [0], [0], [1], [0, 0, 1, 1], [], []>} : vector<8x896xbf16>, vector<896x512xbf16>, vector<8x512xf32> -> vector<8x512xf32>
    %c0_3 = arith.constant 0 : index
    %c0_4 = arith.constant 0 : index
    %4 = vector.load %arg4[%c0_3, %c0_4] : memref<1x512xf32, #tpu.memory_space<vmem>>, vector<1x512xf32>
    %5 = vector.broadcast %4 : vector<1x512xf32> to vector<8x512xf32>
    %6 = arith.addf %3, %5 : vector<8x512xf32>
    %cst_5 = arith.constant 0.000000e+00 : f32
    %7 = vector.broadcast %cst_5 : f32 to vector<8x512xf32>
    %8 = arith.maximumf %6, %7 : vector<8x512xf32>
    %c0_6 = arith.constant 0 : index
    %c0_7 = arith.constant 0 : index
    %9 = vector.load %arg5[%c0_6, %c0_7] : memref<512x128xf32, #tpu.memory_space<vmem>>, vector<512x128xf32>
    %cst_8 = arith.constant dense<0.000000e+00> : vector<8x128xf32>
    %10 = tpu.matmul %8, %9, %cst_8 {dimension_numbers = #tpu.dot_dimension_numbers<[1], [0], [0], [1], [0, 0, 1, 1], [], []>} : vector<8x512xf32>, vector<512x128xf32>, vector<8x128xf32> -> vector<8x128xf32>
    %c0_9 = arith.constant 0 : index
    %c0_10 = arith.constant 0 : index
    %11 = vector.load %arg6[%c0_9, %c0_10] : memref<1x128xf32, #tpu.memory_space<vmem>>, vector<1x128xf32>
    %12 = vector.broadcast %11 : vector<1x128xf32> to vector<8x128xf32>
    %13 = arith.addf %10, %12 : vector<8x128xf32>
    %c0_11 = arith.constant 0 : index
    %c0_12 = arith.constant 0 : index
    %14 = vector.load %arg2[%c0_11, %c0_12] : memref<8x128xf32, #tpu.memory_space<vmem>>, vector<8x128xf32>
    %c0_13 = arith.constant 0 : index
    %c0_14 = arith.constant 0 : index
    %15 = vector.load %arg8[%c0_13, %c0_14] : memref<1x512xf32, #tpu.memory_space<vmem>>, vector<1x512xf32>
    %16 = vector.extract_strided_slice %13 {offsets = [0, 0], sizes = [8, 1], strides = [1, 1]} : vector<8x128xf32> to vector<8x1xf32>
    %17 = vector.extract_strided_slice %13 {offsets = [0, 2], sizes = [8, 1], strides = [1, 1]} : vector<8x128xf32> to vector<8x1xf32>
    %18 = math.exp %17 : vector<8x1xf32>
    %19 = vector.extract_strided_slice %14 {offsets = [0, 0], sizes = [8, 1], strides = [1, 1]} : vector<8x128xf32> to vector<8x1xf32>
    %20 = arith.mulf %18, %19 : vector<8x1xf32>
    %21 = arith.addf %16, %20 : vector<8x1xf32>
    %c0_15 = arith.constant 0 : index
    %c0_16 = arith.constant 0 : index
    %22 = vector.load %arg7[%c0_15, %c0_16] : memref<2x512xf32, #tpu.memory_space<vmem>>, vector<1x512xf32>
    %23 = vector.broadcast %21 : vector<8x1xf32> to vector<8x512xf32>
    %24 = vector.broadcast %22 : vector<1x512xf32> to vector<8x512xf32>
    %25 = arith.mulf %23, %24 : vector<8x512xf32>
    %26 = vector.broadcast %15 : vector<1x512xf32> to vector<8x512xf32>
    %27 = arith.addf %26, %25 : vector<8x512xf32>
    %28 = vector.extract_strided_slice %13 {offsets = [0, 1], sizes = [8, 1], strides = [1, 1]} : vector<8x128xf32> to vector<8x1xf32>
    %29 = vector.extract_strided_slice %13 {offsets = [0, 3], sizes = [8, 1], strides = [1, 1]} : vector<8x128xf32> to vector<8x1xf32>
    %30 = math.exp %29 : vector<8x1xf32>
    %31 = vector.extract_strided_slice %14 {offsets = [0, 1], sizes = [8, 1], strides = [1, 1]} : vector<8x128xf32> to vector<8x1xf32>
    %32 = arith.mulf %30, %31 : vector<8x1xf32>
    %33 = arith.addf %28, %32 : vector<8x1xf32>
    %c1 = arith.constant 1 : index
    %c0_17 = arith.constant 0 : index
    %34 = vector.load %arg7[%c1, %c0_17] : memref<2x512xf32, #tpu.memory_space<vmem>>, vector<1x512xf32>
    %35 = vector.broadcast %33 : vector<8x1xf32> to vector<8x512xf32>
    %36 = vector.broadcast %34 : vector<1x512xf32> to vector<8x512xf32>
    %37 = arith.mulf %35, %36 : vector<8x512xf32>
    %38 = arith.addf %27, %37 : vector<8x512xf32>
    %cst_18 = arith.constant 0.000000e+00 : f32
    %39 = vector.broadcast %cst_18 : f32 to vector<8x512xf32>
    %40 = arith.maximumf %38, %39 : vector<8x512xf32>
    %41 = arith.truncf %40 : vector<8x512xf32> to vector<8x512xbf16>
    %c0_19 = arith.constant 0 : index
    %c0_20 = arith.constant 0 : index
    %42 = vector.load %arg9[%c0_19, %c0_20] : memref<512x896xbf16, #tpu.memory_space<vmem>>, vector<512x896xbf16>
    %cst_21 = arith.constant dense<0.000000e+00> : vector<8x896xf32>
    %43 = tpu.matmul %41, %42, %cst_21 {dimension_numbers = #tpu.dot_dimension_numbers<[1], [0], [0], [1], [0, 0, 1, 1], [], []>} : vector<8x512xbf16>, vector<512x896xbf16>, vector<8x896xf32> -> vector<8x896xf32>
    %c0_22 = arith.constant 0 : index
    %c0_23 = arith.constant 0 : index
    %44 = vector.load %arg10[%c0_22, %c0_23] : memref<1x896xf32, #tpu.memory_space<vmem>>, vector<1x896xf32>
    %45 = vector.broadcast %44 : vector<1x896xf32> to vector<8x896xf32>
    %46 = arith.addf %43, %45 : vector<8x896xf32>
    %47 = arith.negf %46 : vector<8x896xf32>
    %48 = math.exp %47 : vector<8x896xf32>
    %cst_24 = arith.constant 1.000000e+00 : f32
    %49 = vector.broadcast %cst_24 : f32 to vector<8x896xf32>
    %50 = arith.addf %49, %48 : vector<8x896xf32>
    %51 = arith.divf %49, %50 : vector<8x896xf32>
    %c0_25 = arith.constant 0 : index
    %c0_26 = arith.constant 0 : index
    %52 = vector.load %arg11[%c0_25, %c0_26] : memref<8x896xf32, #tpu.memory_space<vmem>>, vector<8x896xf32>
    tpu.vector_store %arg11[%c0_25, %c0_26], %51 {strides = array<i32>} : memref<8x896xf32, #tpu.memory_space<vmem>>, vector<8x896xf32>,
    return
  }
  func.func @transform_0(%arg0: i32) -> (i32, i32) {
    %c0_i32 = arith.constant 0 : i32
    %c0_i32_0 = arith.constant 0 : i32
    return %arg0, %c0_i32 : i32, i32
  }
  func.func @transform_1(%arg0: i32) -> (i32, i32) {
    %c0_i32 = arith.constant 0 : i32
    %c0_i32_0 = arith.constant 0 : i32
    return %arg0, %c0_i32 : i32, i32
  }
  func.func @transform_2(%arg0: i32) -> (i32, i32) {
    %c0_i32 = arith.constant 0 : i32
    %c0_i32_0 = arith.constant 0 : i32
    %c0_i32_1 = arith.constant 0 : i32
    return %c0_i32, %c0_i32_0 : i32, i32
  }
  func.func @transform_3(%arg0: i32) -> (i32, i32) {
    %c0_i32 = arith.constant 0 : i32
    %c0_i32_0 = arith.constant 0 : i32
    %c0_i32_1 = arith.constant 0 : i32
    return %c0_i32, %c0_i32_0 : i32, i32
  }
  func.func @transform_4(%arg0: i32) -> (i32, i32) {
    %c0_i32 = arith.constant 0 : i32
    %c0_i32_0 = arith.constant 0 : i32
    %c0_i32_1 = arith.constant 0 : i32
    return %c0_i32, %c0_i32_0 : i32, i32
  }
  func.func @transform_5(%arg0: i32) -> (i32, i32) {
    %c0_i32 = arith.constant 0 : i32
    %c0_i32_0 = arith.constant 0 : i32
    %c0_i32_1 = arith.constant 0 : i32
    return %c0_i32, %c0_i32_0 : i32, i32
  }
  func.func @transform_6(%arg0: i32) -> (i32, i32) {
    %c0_i32 = arith.constant 0 : i32
    %c0_i32_0 = arith.constant 0 : i32
    %c0_i32_1 = arith.constant 0 : i32
    return %c0_i32, %c0_i32_0 : i32, i32
  }
  func.func @transform_7(%arg0: i32) -> (i32, i32) {
    %c0_i32 = arith.constant 0 : i32
    %c0_i32_0 = arith.constant 0 : i32
    %c0_i32_1 = arith.constant 0 : i32
    return %c0_i32, %c0_i32_0 : i32, i32
  }
  func.func @transform_8(%arg0: i32) -> (i32, i32) {
    %c0_i32 = arith.constant 0 : i32
    %c0_i32_0 = arith.constant 0 : i32
    %c0_i32_1 = arith.constant 0 : i32
    return %c0_i32, %c0_i32_0 : i32, i32
  }
  func.func @transform_9(%arg0: i32) -> (i32, i32) {
    %c0_i32 = arith.constant 0 : i32
    %c0_i32_0 = arith.constant 0 : i32
    %c0_i32_1 = arith.constant 0 : i32
    return %c0_i32, %c0_i32_0 : i32, i32
  }
  func.func @transform_10(%arg0: i32) -> (i32, i32) {
    %c0_i32 = arith.constant 0 : i32
    %c0_i32_0 = arith.constant 0 : i32
    return %arg0, %c0_i32 : i32, i32
  }
}

</mosaic_0001>

<llo_original>
// kernel: vae_forward.1
$region0: #{vae_forward.1}
  #allocation0 [shape = 'u32[]', space=smem, size = 0x4, offset = 0x4, fixed_abs, tag = 'smem constant byte address 0x4 - core index']
  #allocation1 [shape = 'u32[144,128]{1,0:T(1,128)}', space=vmem, size = 0x12000, scoped, tag = 'internal scratch']
  %s0 = inlined_call_operand.vmem [shape: f32[8,896], index: 0, kind: input, shape index: {}]
  %s1 = inlined_call_operand.vmem [shape: f32[8,128], index: 1, kind: input, shape index: {}]
  %s2 = inlined_call_operand.hbm [shape: bf16[896,512], index: 2, kind: input, shape index: {}]
  %s3 = inlined_call_operand.vmem [shape: f32[1,512], index: 3, kind: input, shape index: {}]
  %s4 = inlined_call_operand.hbm [shape: f32[512,128], index: 4, kind: input, shape index: {}]
  %s5 = inlined_call_operand.vmem [shape: f32[1,128], index: 5, kind: input, shape index: {}]
  %s6 = inlined_call_operand.vmem [shape: f32[2,512], index: 6, kind: input, shape index: {}]
  %s7 = inlined_call_operand.vmem [shape: f32[1,512], index: 7, kind: input, shape index: {}]
  %s8 = inlined_call_operand.hbm [shape: bf16[512,896], index: 8, kind: input, shape index: {}]
  %s9 = inlined_call_operand.vmem [shape: f32[1,896], index: 9, kind: input, shape index: {}]
  %s10 = inlined_call_operand.vmem [shape: f32[8,896], index: 10, kind: output, shape index: {}]
  %s11 = sld [smem:[#allocation0]]
  $region62: #{vae_forward.1} parent=0
    _
  %s13 = ssub.s32 1, %s11
  %s14 = scalar_select 0, %s13, %s11
  $region1: #{vae_forward.1} parent=0
    #allocation2 [shape = 'u8[917504]{0}', space=vmem, size = 0xe0000, scoped, tag = 'input window, operand 2, single buffered']
    #allocation3 [shape = 's32[1]{0}', space=sflag, size = 0x4, scoped, tag = 'scoped memory for vae_forward.1']
    #allocation4 [shape = 'u8[262144]{0}', space=vmem, size = 0x40000, scoped, tag = 'input window, operand 4, single buffered']
    #allocation5 [shape = 's32[1]{0}', space=sflag, size = 0x4, scoped, tag = 'scoped memory for vae_forward.1']
    #allocation6 [shape = 'u8[917504]{0}', space=vmem, size = 0xe0000, scoped, tag = 'input window, operand 8, single buffered']
    %15 = vsyncpa [#allocation3], 0
    %16 = vsyncpa [#allocation5], 0
    // Predicated region
    $region2: #{vae_forward.1} parent=1 // pred_check
      _
    $region3: #{vae_forward.1} parent=1 // pred_check_branch
      %18 = sbr.rel (0) target = $region5
    $region4: #{vae_forward.1} parent=1 // pred_region
      _
    $region5: #{vae_forward.1} parent=1 // pred_fallthru
      _
    // Predicated region
    $region6: #{vae_forward.1} parent=1 // pred_check
      _
    $region7: #{vae_forward.1} parent=1 // pred_check_branch
      %20 = sbr.rel (0) target = $region9
    $region8: #{vae_forward.1} parent=1 // pred_region
      _
    $region9: #{vae_forward.1} parent=1 // pred_fallthru
      _
    // Predicated region
    $region10: #{vae_forward.1} parent=1 // pred_check
      _
    $region11: #{vae_forward.1} parent=1 // pred_check_branch
      %22 = sbr.rel (0) target = $region13
    $region12: #{vae_forward.1} parent=1 // pred_region
      %s24 = ssub.s32 28672, 28672
      %25 = vsyncadd [#allocation3], %s24
      %s26 = sshll.u32 [#allocation2], 4
      %s27 = int_to_ptr.vmem [resolvable:$true] %s26
      %32 = dma.hbm_to_vmem [thread:$0]  %s2, 28672, %s27, [#allocation3], 256, 256, 16
    $region13: #{vae_forward.1} parent=1 // pred_fallthru
      _
    // Predicated region
    $region14: #{vae_forward.1} parent=1 // pred_check
      _
    $region15: #{vae_forward.1} parent=1 // pred_check_branch
      %34 = sbr.rel (0) target = $region17
    $region16: #{vae_forward.1} parent=1 // pred_region
      _
    $region17: #{vae_forward.1} parent=1 // pred_fallthru
      _
    // Predicated region
    $region18: #{vae_forward.1} parent=1 // pred_check
      _
    $region19: #{vae_forward.1} parent=1 // pred_check_branch
      %36 = sbr.rel (0) target = $region21
    $region20: #{vae_forward.1} parent=1 // pred_region
      %s38 = ssub.s32 8192, 8192
      %39 = vsyncadd [#allocation5], %s38
      %s40 = sshll.u32 [#allocation4], 4
      %s41 = int_to_ptr.vmem [resolvable:$true] %s40
      %46 = dma.hbm_to_vmem [thread:$0]  %s4, 8192, %s41, [#allocation5], 128, 128, 8
    $region21: #{vae_forward.1} parent=1 // pred_fallthru
      _
    // Predicated region
    $region22: #{vae_forward.1} parent=1 // pred_check
      _
    $region23: #{vae_forward.1} parent=1 // pred_check_branch
      %48 = sbr.rel (0) target = $region25
    $region24: #{vae_forward.1} parent=1 // pred_region
      _
    $region25: #{vae_forward.1} parent=1 // pred_fallthru
      _
    // Predicated region
    $region26: #{vae_forward.1} parent=1 // pred_check
      _
    $region27: #{vae_forward.1} parent=1 // pred_check_branch
      %50 = sbr.rel (0) target = $region29
    $region28: #{vae_forward.1} parent=1 // pred_region
      _
    $region29: #{vae_forward.1} parent=1 // pred_fallthru
      _
    // Predicated region
    $region30: #{vae_forward.1} parent=1 // pred_check
      _
    $region31: #{vae_forward.1} parent=1 // pred_check_branch
      %52 = sbr.rel (0) target = $region33
    $region32: #{vae_forward.1} parent=1 // pred_region
      _
    $region33: #{vae_forward.1} parent=1 // pred_fallthru
      _
    // Predicated region
    $region34: #{vae_forward.1} parent=1 // pred_check
      _
    $region35: #{vae_forward.1} parent=1 // pred_check_branch
      %54 = sbr.rel (0) target = $region37
    $region36: #{vae_forward.1} parent=1 // pred_region
      %s56 = ssub.s32 28672, 28672
      %57 = vsyncadd [#allocation5], %s56
      %s58 = sshll.u32 [#allocation6], 4
      %s59 = int_to_ptr.vmem [resolvable:$true] %s58
      %64 = dma.hbm_to_vmem [thread:$0]  %s8, 28672, %s59, [#allocation5], 448, 448, 28
    $region37: #{vae_forward.1} parent=1 // pred_fallthru
      _
    // Predicated region
    $region38: #{vae_forward.1} parent=1 // pred_check
      _
    $region39: #{vae_forward.1} parent=1 // pred_check_branch
      %66 = sbr.rel (0) target = $region41
    $region40: #{vae_forward.1} parent=1 // pred_region
      _
    $region41: #{vae_forward.1} parent=1 // pred_fallthru
      _
    // Predicated region
    $region42: #{vae_forward.1} parent=1 // pred_check
      _
    $region43: #{vae_forward.1} parent=1 // pred_check_branch
      %68 = sbr.rel (0) target = $region45
    $region44: #{vae_forward.1} parent=1 // pred_region
      %69 = dma.done [#allocation3], 28672
    $region45: #{vae_forward.1} parent=1 // pred_fallthru
      _
    // Predicated region
    $region46: #{vae_forward.1} parent=1 // pred_check
      _
    $region47: #{vae_forward.1} parent=1 // pred_check_branch
      %71 = sbr.rel (0) target = $region49
    $region48: #{vae_forward.1} parent=1 // pred_region
      %72 = dma.done [#allocation5], 8192
    $region49: #{vae_forward.1} parent=1 // pred_fallthru
      _
    // Predicated region
    $region50: #{vae_forward.1} parent=1 // pred_check
      _
    $region51: #{vae_forward.1} parent=1 // pred_check_branch
      %74 = sbr.rel (0) target = $region53
    $region52: #{vae_forward.1} parent=1 // pred_region
      %75 = dma.done [#allocation5], 28672
    $region53: #{vae_forward.1} parent=1 // pred_fallthru
      _
    %v77 = vld [vmem:[%s0] sm:$0xff]
    %v78 = vld [vmem:[%s0 + $0x8] sm:$0xff]
    %v79 = vld [vmem:[%s0 + $0x10] sm:$0xff]
    %v80 = vld [vmem:[%s0 + $0x18] sm:$0xff]
    %v81 = vld [vmem:[%s0 + $0x20] sm:$0xff]
    %v82 = vld [vmem:[%s0 + $0x28] sm:$0xff]
    %v83 = vld [vmem:[%s0 + $0x30] sm:$0xff]
    %v84 = vpack.c.bf16 %v77, %v77
    %v85 = vpack.c.bf16 %v78, %v78
    %v86 = vpack.c.bf16 %v79, %v79
    %v87 = vpack.c.bf16 %v80, %v80
    %v88 = vpack.c.bf16 %v81, %v81
    %v89 = vpack.c.bf16 %v82, %v82
    %v90 = vpack.c.bf16 %v83, %v83
    %v91 = vld [vmem:[#allocation2] sm:$0xff]
    %v92 = vld [vmem:[#allocation2 + $0x8] sm:$0xff]
    %v93 = vld [vmem:[#allocation2 + $0x10] sm:$0xff]
    %v94 = vld [vmem:[#allocation2 + $0x18] sm:$0xff]
    %v95 = vld [vmem:[#allocation2 + $0x20] sm:$0xff]
    %v96 = vld [vmem:[#allocation2 + $0x28] sm:$0xff]
    %v97 = vld [vmem:[#allocation2 + $0x30] sm:$0xff]
    %v98 = vld [vmem:[#allocation2 + $0x38] sm:$0xff]
    %v99 = vld [vmem:[#allocation2 + $0x40] sm:$0xff]
    %v100 = vld [vmem:[#allocation2 + $0x48] sm:$0xff]
    %v101 = vld [vmem:[#allocation2 + $0x50] sm:$0xff]
    %v102 = vld [vmem:[#allocation2 + $0x58] sm:$0xff]
    %v103 = vld [vmem:[#allocation2 + $0x60] sm:$0xff]
    %v104 = vld [vmem:[#allocation2 + $0x68] sm:$0xff]
    %v105 = vld [vmem:[#allocation2 + $0x70] sm:$0xff]
    %v106 = vld [vmem:[#allocation2 + $0x78] sm:$0xff]
    %v107 = vld [vmem:[#allocation2 + $0x80] sm:$0xff]
    %v108 = vld [vmem:[#allocation2 + $0x88] sm:$0xff]
    %v109 = vld [vmem:[#allocation2 + $0x90] sm:$0xff]
    %v110 = vld [vmem:[#allocation2 + $0x98] sm:$0xff]
    %v111 = vld [vmem:[#allocation2 + $0xa0] sm:$0xff]
    %v112 = vld [vmem:[#allocation2 + $0xa8] sm:$0xff]
    %v113 = vld [vmem:[#allocation2 + $0xb0] sm:$0xff]
    %v114 = vld [vmem:[#allocation2 + $0xb8] sm:$0xff]
    %v115 = vld [vmem:[#allocation2 + $0xc0] sm:$0xff]
    %v116 = vld [vmem:[#allocation2 + $0xc8] sm:$0xff]
    %v117 = vld [vmem:[#allocation2 + $0xd0] sm:$0xff]
    %v118 = vld [vmem:[#allocation2 + $0xd8] sm:$0xff]
    %v119 = vld [vmem:[#allocation2 + $0xe0] sm:$0xff]
    %v120 = vld [vmem:[#allocation2 + $0xe8] sm:$0xff]
    %v121 = vld [vmem:[#allocation2 + $0xf0] sm:$0xff]
    %v122 = vld [vmem:[#allocation2 + $0xf8] sm:$0xff]
    %v123 = vld [vmem:[#allocation2 + $0x100] sm:$0xff]
    %v124 = vld [vmem:[#allocation2 + $0x108] sm:$0xff]
    %v125 = vld [vmem:[#allocation2 + $0x110] sm:$0xff]
    %v126 = vld [vmem:[#allocation2 + $0x118] sm:$0xff]
    %v127 = vld [vmem:[#allocation2 + $0x120] sm:$0xff]
    %v128 = vld [vmem:[#allocation2 + $0x128] sm:$0xff]
    %v129 = vld [vmem:[#allocation2 + $0x130] sm:$0xff]
    %v130 = vld [vmem:[#allocation2 + $0x138] sm:$0xff]
    %v131 = vld [vmem:[#allocation2 + $0x140] sm:$0xff]
    %v132 = vld [vmem:[#allocation2 + $0x148] sm:$0xff]
    %v133 = vld [vmem:[#allocation2 + $0x150] sm:$0xff]
    %v134 = vld [vmem:[#allocation2 + $0x158] sm:$0xff]
    %v135 = vld [vmem:[#allocation2 + $0x160] sm:$0xff]
    %v136 = vld [vmem:[#allocation2 + $0x168] sm:$0xff]
    %v137 = vld [vmem:[#allocation2 + $0x170] sm:$0xff]
    %v138 = vld [vmem:[#allocation2 + $0x178] sm:$0xff]
    %v139 = vld [vmem:[#allocation2 + $0x180] sm:$0xff]
    %v140 = vld [vmem:[#allocation2 + $0x188] sm:$0xff]
    %v141 = vld [vmem:[#allocation2 + $0x190] sm:$0xff]
    %v142 = vld [vmem:[#allocation2 + $0x198] sm:$0xff]
    %v143 = vld [vmem:[#allocation2 + $0x1a0] sm:$0xff]
    %v144 = vld [vmem:[#allocation2 + $0x1a8] sm:$0xff]
    %v145 = vld [vmem:[#allocation2 + $0x1b0] sm:$0xff]
    %v146 = vld [vmem:[#allocation2 + $0x1b8] sm:$0xff]
    %v147 = vld [vmem:[#allocation2 + $0x1c0] sm:$0xff]
    %v148 = vld [vmem:[#allocation2 + $0x1c8] sm:$0xff]
    %v149 = vld [vmem:[#allocation2 + $0x1d0] sm:$0xff]
    %v150 = vld [vmem:[#allocation2 + $0x1d8] sm:$0xff]
    %v151 = vld [vmem:[#allocation2 + $0x1e0] sm:$0xff]
    %v152 = vld [vmem:[#allocation2 + $0x1e8] sm:$0xff]
    %v153 = vld [vmem:[#allocation2 + $0x1f0] sm:$0xff]
    %v154 = vld [vmem:[#allocation2 + $0x1f8] sm:$0xff]
    %v155 = vld [vmem:[#allocation2 + $0x200] sm:$0xff]
    %v156 = vld [vmem:[#allocation2 + $0x208] sm:$0xff]
    %v157 = vld [vmem:[#allocation2 + $0x210] sm:$0xff]
    %v158 = vld [vmem:[#allocation2 + $0x218] sm:$0xff]
    %v159 = vld [vmem:[#allocation2 + $0x220] sm:$0xff]
    %v160 = vld [vmem:[#allocation2 + $0x228] sm:$0xff]
    %v161 = vld [vmem:[#allocation2 + $0x230] sm:$0xff]
    %v162 = vld [vmem:[#allocation2 + $0x238] sm:$0xff]
    %v163 = vld [vmem:[#allocation2 + $0x240] sm:$0xff]
    %v164 = vld [vmem:[#allocation2 + $0x248] sm:$0xff]
    %v165 = vld [vmem:[#allocation2 + $0x250] sm:$0xff]
    %v166 = vld [vmem:[#allocation2 + $0x258] sm:$0xff]
    %v167 = vld [vmem:[#allocation2 + $0x260] sm:$0xff]
    %v168 = vld [vmem:[#allocation2 + $0x268] sm:$0xff]
    %v169 = vld [vmem:[#allocation2 + $0x270] sm:$0xff]
    %v170 = vld [vmem:[#allocation2 + $0x278] sm:$0xff]
    %v171 = vld [vmem:[#allocation2 + $0x280] sm:$0xff]
    %v172 = vld [vmem:[#allocation2 + $0x288] sm:$0xff]
    %v173 = vld [vmem:[#allocation2 + $0x290] sm:$0xff]
    %v174 = vld [vmem:[#allocation2 + $0x298] sm:$0xff]
    %v175 = vld [vmem:[#allocation2 + $0x2a0] sm:$0xff]
    %v176 = vld [vmem:[#allocation2 + $0x2a8] sm:$0xff]
    %v177 = vld [vmem:[#allocation2 + $0x2b0] sm:$0xff]
    %v178 = vld [vmem:[#allocation2 + $0x2b8] sm:$0xff]
    %v179 = vld [vmem:[#allocation2 + $0x2c0] sm:$0xff]
    %v180 = vld [vmem:[#allocation2 + $0x2c8] sm:$0xff]
    %v181 = vld [vmem:[#allocation2 + $0x2d0] sm:$0xff]
    %v182 = vld [vmem:[#allocation2 + $0x2d8] sm:$0xff]
    %v183 = vld [vmem:[#allocation2 + $0x2e0] sm:$0xff]
    %v184 = vld [vmem:[#allocation2 + $0x2e8] sm:$0xff]
    %v185 = vld [vmem:[#allocation2 + $0x2f0] sm:$0xff]
    %v186 = vld [vmem:[#allocation2 + $0x2f8] sm:$0xff]
    %v187 = vld [vmem:[#allocation2 + $0x300] sm:$0xff]
    %v188 = vld [vmem:[#allocation2 + $0x308] sm:$0xff]
    %v189 = vld [vmem:[#allocation2 + $0x310] sm:$0xff]
    %v190 = vld [vmem:[#allocation2 + $0x318] sm:$0xff]
    %v191 = vld [vmem:[#allocation2 + $0x320] sm:$0xff]
    %v192 = vld [vmem:[#allocation2 + $0x328] sm:$0xff]
    %v193 = vld [vmem:[#allocation2 + $0x330] sm:$0xff]
    %v194 = vld [vmem:[#allocation2 + $0x338] sm:$0xff]
    %v195 = vld [vmem:[#allocation2 + $0x340] sm:$0xff]
    %v196 = vld [vmem:[#allocation2 + $0x348] sm:$0xff]
    %v197 = vld [vmem:[#allocation2 + $0x350] sm:$0xff]
    %v198 = vld [vmem:[#allocation2 + $0x358] sm:$0xff]
    %v199 = vld [vmem:[#allocation2 + $0x360] sm:$0xff]
    %v200 = vld [vmem:[#allocation2 + $0x368] sm:$0xff]
    %v201 = vld [vmem:[#allocation2 + $0x370] sm:$0xff]
    %v202 = vld [vmem:[#allocation2 + $0x378] sm:$0xff]
    %v203 = vld [vmem:[#allocation2 + $0x380] sm:$0xff]
    %v204 = vld [vmem:[#allocation2 + $0x388] sm:$0xff]
    %v205 = vld [vmem:[#allocation2 + $0x390] sm:$0xff]
    %v206 = vld [vmem:[#allocation2 + $0x398] sm:$0xff]
    %v207 = vld [vmem:[#allocation2 + $0x3a0] sm:$0xff]
    %v208 = vld [vmem:[#allocation2 + $0x3a8] sm:$0xff]
    %v209 = vld [vmem:[#allocation2 + $0x3b0] sm:$0xff]
    %v210 = vld [vmem:[#allocation2 + $0x3b8] sm:$0xff]
    %v211 = vld [vmem:[#allocation2 + $0x3c0] sm:$0xff]
    %v212 = vld [vmem:[#allocation2 + $0x3c8] sm:$0xff]
    %v213 = vld [vmem:[#allocation2 + $0x3d0] sm:$0xff]
    %v214 = vld [vmem:[#allocation2 + $0x3d8] sm:$0xff]
    %v215 = vld [vmem:[#allocation2 + $0x3e0] sm:$0xff]
    %v216 = vld [vmem:[#allocation2 + $0x3e8] sm:$0xff]
    %v217 = vld [vmem:[#allocation2 + $0x3f0] sm:$0xff]
    %v218 = vld [vmem:[#allocation2 + $0x3f8] sm:$0xff]
    %v219 = vld [vmem:[#allocation2 + $0x400] sm:$0xff]
    %v220 = vld [vmem:[#allocation2 + $0x408] sm:$0xff]
    %v221 = vld [vmem:[#allocation2 + $0x410] sm:$0xff]
    %v222 = vld [vmem:[#allocation2 + $0x418] sm:$0xff]
    %v223 = vld [vmem:[#allocation2 + $0x420] sm:$0xff]
    %v224 = vld [vmem:[#allocation2 + $0x428] sm:$0xff]
    %v225 = vld [vmem:[#allocation2 + $0x430] sm:$0xff]
    %v226 = vld [vmem:[#allocation2 + $0x438] sm:$0xff]
    %v227 = vld [vmem:[#allocation2 + $0x440] sm:$0xff]
    %v228 = vld [vmem:[#allocation2 + $0x448] sm:$0xff]
    %v229 = vld [vmem:[#allocation2 + $0x450] sm:$0xff]
    %v230 = vld [vmem:[#allocation2 + $0x458] sm:$0xff]
    %v231 = vld [vmem:[#allocation2 + $0x460] sm:$0xff]
    %v232 = vld [vmem:[#allocation2 + $0x468] sm:$0xff]
    %v233 = vld [vmem:[#allocation2 + $0x470] sm:$0xff]
    %v234 = vld [vmem:[#allocation2 + $0x478] sm:$0xff]
    %v235 = vld [vmem:[#allocation2 + $0x480] sm:$0xff]
    %v236 = vld [vmem:[#allocation2 + $0x488] sm:$0xff]
    %v237 = vld [vmem:[#allocation2 + $0x490] sm:$0xff]
    %v238 = vld [vmem:[#allocation2 + $0x498] sm:$0xff]
    %v239 = vld [vmem:[#allocation2 + $0x4a0] sm:$0xff]
    %v240 = vld [vmem:[#allocation2 + $0x4a8] sm:$0xff]
    %v241 = vld [vmem:[#allocation2 + $0x4b0] sm:$0xff]
    %v242 = vld [vmem:[#allocation2 + $0x4b8] sm:$0xff]
    %v243 = vld [vmem:[#allocation2 + $0x4c0] sm:$0xff]
    %v244 = vld [vmem:[#allocation2 + $0x4c8] sm:$0xff]
    %v245 = vld [vmem:[#allocation2 + $0x4d0] sm:$0xff]
    %v246 = vld [vmem:[#allocation2 + $0x4d8] sm:$0xff]
    %v247 = vld [vmem:[#allocation2 + $0x4e0] sm:$0xff]
    %v248 = vld [vmem:[#allocation2 + $0x4e8] sm:$0xff]
    %v249 = vld [vmem:[#allocation2 + $0x4f0] sm:$0xff]
    %v250 = vld [vmem:[#allocation2 + $0x4f8] sm:$0xff]
    %v251 = vld [vmem:[#allocation2 + $0x500] sm:$0xff]
    %v252 = vld [vmem:[#allocation2 + $0x508] sm:$0xff]
    %v253 = vld [vmem:[#allocation2 + $0x510] sm:$0xff]
    %v254 = vld [vmem:[#allocation2 + $0x518] sm:$0xff]
    %v255 = vld [vmem:[#allocation2 + $0x520] sm:$0xff]
    %v256 = vld [vmem:[#allocation2 + $0x528] sm:$0xff]
    %v257 = vld [vmem:[#allocation2 + $0x530] sm:$0xff]
    %v258 = vld [vmem:[#allocation2 + $0x538] sm:$0xff]
    %v259 = vld [vmem:[#allocation2 + $0x540] sm:$0xff]
    %v260 = vld [vmem:[#allocation2 + $0x548] sm:$0xff]
    %v261 = vld [vmem:[#allocation2 + $0x550] sm:$0xff]
    %v262 = vld [vmem:[#allocation2 + $0x558] sm:$0xff]
    %v263 = vld [vmem:[#allocation2 + $0x560] sm:$0xff]
    %v264 = vld [vmem:[#allocation2 + $0x568] sm:$0xff]
    %v265 = vld [vmem:[#allocation2 + $0x570] sm:$0xff]
    %v266 = vld [vmem:[#allocation2 + $0x578] sm:$0xff]
    %v267 = vld [vmem:[#allocation2 + $0x580] sm:$0xff]
    %v268 = vld [vmem:[#allocation2 + $0x588] sm:$0xff]
    %v269 = vld [vmem:[#allocation2 + $0x590] sm:$0xff]
    %v270 = vld [vmem:[#allocation2 + $0x598] sm:$0xff]
    %v271 = vld [vmem:[#allocation2 + $0x5a0] sm:$0xff]
    %v272 = vld [vmem:[#allocation2 + $0x5a8] sm:$0xff]
    %v273 = vld [vmem:[#allocation2 + $0x5b0] sm:$0xff]
    %v274 = vld [vmem:[#allocation2 + $0x5b8] sm:$0xff]
    %v275 = vld [vmem:[#allocation2 + $0x5c0] sm:$0xff]
    %v276 = vld [vmem:[#allocation2 + $0x5c8] sm:$0xff]
    %v277 = vld [vmem:[#allocation2 + $0x5d0] sm:$0xff]
    %v278 = vld [vmem:[#allocation2 + $0x5d8] sm:$0xff]
    %v279 = vld [vmem:[#allocation2 + $0x5e0] sm:$0xff]
    %v280 = vld [vmem:[#allocation2 + $0x5e8] sm:$0xff]
    %v281 = vld [vmem:[#allocation2 + $0x5f0] sm:$0xff]
    %v282 = vld [vmem:[#allocation2 + $0x5f8] sm:$0xff]
    %v283 = vld [vmem:[#allocation2 + $0x600] sm:$0xff]
    %v284 = vld [vmem:[#allocation2 + $0x608] sm:$0xff]
    %v285 = vld [vmem:[#allocation2 + $0x610] sm:$0xff]
    %v286 = vld [vmem:[#allocation2 + $0x618] sm:$0xff]
    %v287 = vld [vmem:[#allocation2 + $0x620] sm:$0xff]
    %v288 = vld [vmem:[#allocation2 + $0x628] sm:$0xff]
    %v289 = vld [vmem:[#allocation2 + $0x630] sm:$0xff]
    %v290 = vld [vmem:[#allocation2 + $0x638] sm:$0xff]
    %v291 = vld [vmem:[#allocation2 + $0x640] sm:$0xff]
    %v292 = vld [vmem:[#allocation2 + $0x648] sm:$0xff]
    %v293 = vld [vmem:[#allocation2 + $0x650] sm:$0xff]
    %v294 = vld [vmem:[#allocation2 + $0x658] sm:$0xff]
    %v295 = vld [vmem:[#allocation2 + $0x660] sm:$0xff]
    %v296 = vld [vmem:[#allocation2 + $0x668] sm:$0xff]
    %v297 = vld [vmem:[#allocation2 + $0x670] sm:$0xff]
    %v298 = vld [vmem:[#allocation2 + $0x678] sm:$0xff]
    %v299 = vld [vmem:[#allocation2 + $0x680] sm:$0xff]
    %v300 = vld [vmem:[#allocation2 + $0x688] sm:$0xff]
    %v301 = vld [vmem:[#allocation2 + $0x690] sm:$0xff]
    %v302 = vld [vmem:[#allocation2 + $0x698] sm:$0xff]
    %v303 = vld [vmem:[#allocation2 + $0x6a0] sm:$0xff]
    %v304 = vld [vmem:[#allocation2 + $0x6a8] sm:$0xff]
    %v305 = vld [vmem:[#allocation2 + $0x6b0] sm:$0xff]
    %v306 = vld [vmem:[#allocation2 + $0x6b8] sm:$0xff]
    %v307 = vld [vmem:[#allocation2 + $0x6c0] sm:$0xff]
    %v308 = vld [vmem:[#allocation2 + $0x6c8] sm:$0xff]
    %v309 = vld [vmem:[#allocation2 + $0x6d0] sm:$0xff]
    %v310 = vld [vmem:[#allocation2 + $0x6d8] sm:$0xff]
    %v311 = vld [vmem:[#allocation2 + $0x6e0] sm:$0xff]
    %v312 = vld [vmem:[#allocation2 + $0x6e8] sm:$0xff]
    %v313 = vld [vmem:[#allocation2 + $0x6f0] sm:$0xff]
    %v314 = vld [vmem:[#allocation2 + $0x6f8] sm:$0xff]
    %v315 = vld [vmem:[%s3] sm:$0xf]
    %v317 = vlaneseq
    %v318 = vshrl.u32 %v317, 7
    %v319 = vsub.s32 0, %v318
    %v320 = vrot.slane %v315, %v319
    %v321 = vlaneseq
    %v322 = vshrl.u32 %v321, 7
    %v323 = vsub.s32 1, %v322
    %v324 = vrot.slane %v315, %v323
    %v325 = vlaneseq
    %v326 = vshrl.u32 %v325, 7
    %v327 = vsub.s32 2, %v326
    %v328 = vrot.slane %v315, %v327
    %v329 = vlaneseq
    %v330 = vshrl.u32 %v329, 7
    %v331 = vsub.s32 3, %v330
    %v332 = vrot.slane %v315, %v331
    %v561 = vunpack.c.l.b16 %v91
    %v562 = vunpack.c.h.b16 %v91
    %v563 = vunpack.c.l.b16 %v92
    %v564 = vunpack.c.h.b16 %v92
    %v565 = vunpack.c.l.b16 %v93
    %v566 = vunpack.c.h.b16 %v93
    %v567 = vunpack.c.l.b16 %v94
    %v568 = vunpack.c.h.b16 %v94
    %v569 = vunpack.c.l.b16 %v95
    %v570 = vunpack.c.h.b16 %v95
    %v571 = vunpack.c.l.b16 %v96
    %v572 = vunpack.c.h.b16 %v96
    %v573 = vunpack.c.l.b16 %v97
    %v574 = vunpack.c.h.b16 %v97
    %v575 = vunpack.c.l.b16 %v98
    %v576 = vunpack.c.h.b16 %v98
    %v577 = vunpack.c.l.b16 %v99
    %v578 = vunpack.c.h.b16 %v99
    %v579 = vunpack.c.l.b16 %v100
    %v580 = vunpack.c.h.b16 %v100
    %v581 = vunpack.c.l.b16 %v101
    %v582 = vunpack.c.h.b16 %v101
    %v583 = vunpack.c.l.b16 %v102
    %v584 = vunpack.c.h.b16 %v102
    %v585 = vunpack.c.l.b16 %v103
    %v586 = vunpack.c.h.b16 %v103
    %v587 = vunpack.c.l.b16 %v104
    %v588 = vunpack.c.h.b16 %v104
    %v589 = vunpack.c.l.b16 %v105
    %v590 = vunpack.c.h.b16 %v105
    %v591 = vunpack.c.l.b16 %v106
    %v592 = vunpack.c.h.b16 %v106
    %v593 = vunpack.c.l.b16 %v107
    %v594 = vunpack.c.h.b16 %v107
    %v595 = vunpack.c.l.b16 %v108
    %v596 = vunpack.c.h.b16 %v108
    %v597 = vunpack.c.l.b16 %v109
    %v598 = vunpack.c.h.b16 %v109
    %v599 = vunpack.c.l.b16 %v110
    %v600 = vunpack.c.h.b16 %v110
    %v601 = vunpack.c.l.b16 %v111
    %v602 = vunpack.c.h.b16 %v111
    %v603 = vunpack.c.l.b16 %v112
    %v604 = vunpack.c.h.b16 %v112
    %v605 = vunpack.c.l.b16 %v113
    %v606 = vunpack.c.h.b16 %v113
    %v607 = vunpack.c.l.b16 %v114
    %v608 = vunpack.c.h.b16 %v114
    %v609 = vunpack.c.l.b16 %v115
    %v610 = vunpack.c.h.b16 %v115
    %v611 = vunpack.c.l.b16 %v116
    %v612 = vunpack.c.h.b16 %v116
    %v613 = vunpack.c.l.b16 %v117
    %v614 = vunpack.c.h.b16 %v117
    %v615 = vunpack.c.l.b16 %v118
    %v616 = vunpack.c.h.b16 %v118
    %v617 = vunpack.c.l.b16 %v119
    %v618 = vunpack.c.h.b16 %v119
    %v619 = vunpack.c.l.b16 %v120
    %v620 = vunpack.c.h.b16 %v120
    %v621 = vunpack.c.l.b16 %v121
    %v622 = vunpack.c.h.b16 %v121
    %v623 = vunpack.c.l.b16 %v122
    %v624 = vunpack.c.h.b16 %v122
    %v625 = vunpack.c.l.b16 %v123
    %v626 = vunpack.c.h.b16 %v123
    %v627 = vunpack.c.l.b16 %v124
    %v628 = vunpack.c.h.b16 %v124
    %v629 = vunpack.c.l.b16 %v125
    %v630 = vunpack.c.h.b16 %v125
    %v631 = vunpack.c.l.b16 %v126
    %v632 = vunpack.c.h.b16 %v126
    %v633 = vunpack.c.l.b16 %v127
    %v634 = vunpack.c.h.b16 %v127
    %v635 = vunpack.c.l.b16 %v128
    %v636 = vunpack.c.h.b16 %v128
    %v637 = vunpack.c.l.b16 %v129
    %v638 = vunpack.c.h.b16 %v129
    %v639 = vunpack.c.l.b16 %v130
    %v640 = vunpack.c.h.b16 %v130
    %v641 = vunpack.c.l.b16 %v131
    %v642 = vunpack.c.h.b16 %v131
    %v643 = vunpack.c.l.b16 %v132
    %v644 = vunpack.c.h.b16 %v132
    %v645 = vunpack.c.l.b16 %v133
    %v646 = vunpack.c.h.b16 %v133
    %v647 = vunpack.c.l.b16 %v134
    %v648 = vunpack.c.h.b16 %v134
    %v649 = vunpack.c.l.b16 %v135
    %v650 = vunpack.c.h.b16 %v135
    %v651 = vunpack.c.l.b16 %v136
    %v652 = vunpack.c.h.b16 %v136
    %v653 = vunpack.c.l.b16 %v137
    %v654 = vunpack.c.h.b16 %v137
    %v655 = vunpack.c.l.b16 %v138
    %v656 = vunpack.c.h.b16 %v138
    %v657 = vunpack.c.l.b16 %v139
    %v658 = vunpack.c.h.b16 %v139
    %v659 = vunpack.c.l.b16 %v140
    %v660 = vunpack.c.h.b16 %v140
    %v661 = vunpack.c.l.b16 %v141
    %v662 = vunpack.c.h.b16 %v141
    %v663 = vunpack.c.l.b16 %v142
    %v664 = vunpack.c.h.b16 %v142
    %v665 = vunpack.c.l.b16 %v143
    %v666 = vunpack.c.h.b16 %v143
    %v667 = vunpack.c.l.b16 %v144
    %v668 = vunpack.c.h.b16 %v144
    %v669 = vunpack.c.l.b16 %v145
    %v670 = vunpack.c.h.b16 %v145
    %v671 = vunpack.c.l.b16 %v146
    %v672 = vunpack.c.h.b16 %v146
    %v673 = vunpack.c.l.b16 %v147
    %v674 = vunpack.c.h.b16 %v147
    %v675 = vunpack.c.l.b16 %v148
    %v676 = vunpack.c.h.b16 %v148
    %v677 = vunpack.c.l.b16 %v149
    %v678 = vunpack.c.h.b16 %v149
    %v679 = vunpack.c.l.b16 %v150
    %v680 = vunpack.c.h.b16 %v150
    %v681 = vunpack.c.l.b16 %v151
    %v682 = vunpack.c.h.b16 %v151
    %v683 = vunpack.c.l.b16 %v152
    %v684 = vunpack.c.h.b16 %v152
    %v685 = vunpack.c.l.b16 %v153
    %v686 = vunpack.c.h.b16 %v153
    %v687 = vunpack.c.l.b16 %v154
    %v688 = vunpack.c.h.b16 %v154
    %v689 = vunpack.c.l.b16 %v155
    %v690 = vunpack.c.h.b16 %v155
    %v691 = vunpack.c.l.b16 %v156
    %v692 = vunpack.c.h.b16 %v156
    %v693 = vunpack.c.l.b16 %v157
    %v694 = vunpack.c.h.b16 %v157
    %v695 = vunpack.c.l.b16 %v158
    %v696 = vunpack.c.h.b16 %v158
    %v697 = vunpack.c.l.b16 %v159
    %v698 = vunpack.c.h.b16 %v159
    %v699 = vunpack.c.l.b16 %v160
    %v700 = vunpack.c.h.b16 %v160
    %v701 = vunpack.c.l.b16 %v161
    %v702 = vunpack.c.h.b16 %v161
    %v703 = vunpack.c.l.b16 %v162
    %v704 = vunpack.c.h.b16 %v162
    %v705 = vunpack.c.l.b16 %v163
    %v706 = vunpack.c.h.b16 %v163
    %v707 = vunpack.c.l.b16 %v164
    %v708 = vunpack.c.h.b16 %v164
    %v709 = vunpack.c.l.b16 %v165
    %v710 = vunpack.c.h.b16 %v165
    %v711 = vunpack.c.l.b16 %v166
    %v712 = vunpack.c.h.b16 %v166
    %v713 = vunpack.c.l.b16 %v167
    %v714 = vunpack.c.h.b16 %v167
    %v715 = vunpack.c.l.b16 %v168
    %v716 = vunpack.c.h.b16 %v168
    %v717 = vunpack.c.l.b16 %v169
    %v718 = vunpack.c.h.b16 %v169
    %v719 = vunpack.c.l.b16 %v170
    %v720 = vunpack.c.h.b16 %v170
    %v721 = vunpack.c.l.b16 %v171
    %v722 = vunpack.c.h.b16 %v171
    %v723 = vunpack.c.l.b16 %v172
    %v724 = vunpack.c.h.b16 %v172
    %v725 = vunpack.c.l.b16 %v173
    %v726 = vunpack.c.h.b16 %v173
    %v727 = vunpack.c.l.b16 %v174
    %v728 = vunpack.c.h.b16 %v174
    %v729 = vunpack.c.l.b16 %v175
    %v730 = vunpack.c.h.b16 %v175
    %v731 = vunpack.c.l.b16 %v176
    %v732 = vunpack.c.h.b16 %v176
    %v733 = vunpack.c.l.b16 %v177
    %v734 = vunpack.c.h.b16 %v177
    %v735 = vunpack.c.l.b16 %v178
    %v736 = vunpack.c.h.b16 %v178
    %v737 = vunpack.c.l.b16 %v179
    %v738 = vunpack.c.h.b16 %v179
    %v739 = vunpack.c.l.b16 %v180
    %v740 = vunpack.c.h.b16 %v180
    %v741 = vunpack.c.l.b16 %v181
    %v742 = vunpack.c.h.b16 %v181
    %v743 = vunpack.c.l.b16 %v182
    %v744 = vunpack.c.h.b16 %v182
    %v745 = vunpack.c.l.b16 %v183
    %v746 = vunpack.c.h.b16 %v183
    %v747 = vunpack.c.l.b16 %v184
    %v748 = vunpack.c.h.b16 %v184
    %v749 = vunpack.c.l.b16 %v185
    %v750 = vunpack.c.h.b16 %v185
    %v751 = vunpack.c.l.b16 %v186
    %v752 = vunpack.c.h.b16 %v186
    %v753 = vunpack.c.l.b16 %v187
    %v754 = vunpack.c.h.b16 %v187
    %v755 = vunpack.c.l.b16 %v188
    %v756 = vunpack.c.h.b16 %v188
    %v757 = vunpack.c.l.b16 %v189
    %v758 = vunpack.c.h.b16 %v189
    %v759 = vunpack.c.l.b16 %v190
    %v760 = vunpack.c.h.b16 %v190
    %v761 = vunpack.c.l.b16 %v191
    %v762 = vunpack.c.h.b16 %v191
    %v763 = vunpack.c.l.b16 %v192
    %v764 = vunpack.c.h.b16 %v192
    %v765 = vunpack.c.l.b16 %v193
    %v766 = vunpack.c.h.b16 %v193
    %v767 = vunpack.c.l.b16 %v194
    %v768 = vunpack.c.h.b16 %v194
    %v769 = vunpack.c.l.b16 %v195
    %v770 = vunpack.c.h.b16 %v195
    %v771 = vunpack.c.l.b16 %v196
    %v772 = vunpack.c.h.b16 %v196
    %v773 = vunpack.c.l.b16 %v197
    %v774 = vunpack.c.h.b16 %v197
    %v775 = vunpack.c.l.b16 %v198
    %v776 = vunpack.c.h.b16 %v198
    %v777 = vunpack.c.l.b16 %v199
    %v778 = vunpack.c.h.b16 %v199
    %v779 = vunpack.c.l.b16 %v200
    %v780 = vunpack.c.h.b16 %v200
    %v781 = vunpack.c.l.b16 %v201
    %v782 = vunpack.c.h.b16 %v201
    %v783 = vunpack.c.l.b16 %v202
    %v784 = vunpack.c.h.b16 %v202
    %v785 = vunpack.c.l.b16 %v203
    %v786 = vunpack.c.h.b16 %v203
    %v787 = vunpack.c.l.b16 %v204
    %v788 = vunpack.c.h.b16 %v204
    %v789 = vunpack.c.l.b16 %v205
    %v790 = vunpack.c.h.b16 %v205
    %v791 = vunpack.c.l.b16 %v206
    %v792 = vunpack.c.h.b16 %v206
    %v793 = vunpack.c.l.b16 %v207
    %v794 = vunpack.c.h.b16 %v207
    %v795 = vunpack.c.l.b16 %v208
    %v796 = vunpack.c.h.b16 %v208
    %v797 = vunpack.c.l.b16 %v209
    %v798 = vunpack.c.h.b16 %v209
    %v799 = vunpack.c.l.b16 %v210
    %v800 = vunpack.c.h.b16 %v210
    %v801 = vunpack.c.l.b16 %v211
    %v802 = vunpack.c.h.b16 %v211
    %v803 = vunpack.c.l.b16 %v212
    %v804 = vunpack.c.h.b16 %v212
    %v805 = vunpack.c.l.b16 %v213
    %v806 = vunpack.c.h.b16 %v213
    %v807 = vunpack.c.l.b16 %v214
    %v808 = vunpack.c.h.b16 %v214
    %v809 = vunpack.c.l.b16 %v215
    %v810 = vunpack.c.h.b16 %v215
    %v811 = vunpack.c.l.b16 %v216
    %v812 = vunpack.c.h.b16 %v216
    %v813 = vunpack.c.l.b16 %v217
    %v814 = vunpack.c.h.b16 %v217
    %v815 = vunpack.c.l.b16 %v218
    %v816 = vunpack.c.h.b16 %v218
    %v817 = vunpack.c.l.b16 %v219
    %v818 = vunpack.c.h.b16 %v219
    %v819 = vunpack.c.l.b16 %v220
    %v820 = vunpack.c.h.b16 %v220
    %v821 = vunpack.c.l.b16 %v221
    %v822 = vunpack.c.h.b16 %v221
    %v823 = vunpack.c.l.b16 %v222
    %v824 = vunpack.c.h.b16 %v222
    %v825 = vunpack.c.l.b16 %v223
    %v826 = vunpack.c.h.b16 %v223
    %v827 = vunpack.c.l.b16 %v224
    %v828 = vunpack.c.h.b16 %v224
    %v829 = vunpack.c.l.b16 %v225
    %v830 = vunpack.c.h.b16 %v225
    %v831 = vunpack.c.l.b16 %v226
    %v832 = vunpack.c.h.b16 %v226
    %v833 = vunpack.c.l.b16 %v227
    %v834 = vunpack.c.h.b16 %v227
    %v835 = vunpack.c.l.b16 %v228
    %v836 = vunpack.c.h.b16 %v228
    %v837 = vunpack.c.l.b16 %v229
    %v838 = vunpack.c.h.b16 %v229
    %v839 = vunpack.c.l.b16 %v230
    %v840 = vunpack.c.h.b16 %v230
    %v841 = vunpack.c.l.b16 %v231
    %v842 = vunpack.c.h.b16 %v231
    %v843 = vunpack.c.l.b16 %v232
    %v844 = vunpack.c.h.b16 %v232
    %v845 = vunpack.c.l.b16 %v233
    %v846 = vunpack.c.h.b16 %v233
    %v847 = vunpack.c.l.b16 %v234
    %v848 = vunpack.c.h.b16 %v234
    %v849 = vunpack.c.l.b16 %v235
    %v850 = vunpack.c.h.b16 %v235
    %v851 = vunpack.c.l.b16 %v236
    %v852 = vunpack.c.h.b16 %v236
    %v853 = vunpack.c.l.b16 %v237
    %v854 = vunpack.c.h.b16 %v237
    %v855 = vunpack.c.l.b16 %v238
    %v856 = vunpack.c.h.b16 %v238
    %v857 = vunpack.c.l.b16 %v239
    %v858 = vunpack.c.h.b16 %v239
    %v859 = vunpack.c.l.b16 %v240
    %v860 = vunpack.c.h.b16 %v240
    %v861 = vunpack.c.l.b16 %v241
    %v862 = vunpack.c.h.b16 %v241
    %v863 = vunpack.c.l.b16 %v242
    %v864 = vunpack.c.h.b16 %v242
    %v865 = vunpack.c.l.b16 %v243
    %v866 = vunpack.c.h.b16 %v243
    %v867 = vunpack.c.l.b16 %v244
    %v868 = vunpack.c.h.b16 %v244
    %v869 = vunpack.c.l.b16 %v245
    %v870 = vunpack.c.h.b16 %v245
    %v871 = vunpack.c.l.b16 %v246
    %v872 = vunpack.c.h.b16 %v246
    %v873 = vunpack.c.l.b16 %v247
    %v874 = vunpack.c.h.b16 %v247
    %v875 = vunpack.c.l.b16 %v248
    %v876 = vunpack.c.h.b16 %v248
    %v877 = vunpack.c.l.b16 %v249
    %v878 = vunpack.c.h.b16 %v249
    %v879 = vunpack.c.l.b16 %v250
    %v880 = vunpack.c.h.b16 %v250
    %v881 = vunpack.c.l.b16 %v251
    %v882 = vunpack.c.h.b16 %v251
    %v883 = vunpack.c.l.b16 %v252
    %v884 = vunpack.c.h.b16 %v252
    %v885 = vunpack.c.l.b16 %v253
    %v886 = vunpack.c.h.b16 %v253
    %v887 = vunpack.c.l.b16 %v254
    %v888 = vunpack.c.h.b16 %v254
    %v889 = vunpack.c.l.b16 %v255
    %v890 = vunpack.c.h.b16 %v255
    %v891 = vunpack.c.l.b16 %v256
    %v892 = vunpack.c.h.b16 %v256
    %v893 = vunpack.c.l.b16 %v257
    %v894 = vunpack.c.h.b16 %v257
    %v895 = vunpack.c.l.b16 %v258
    %v896 = vunpack.c.h.b16 %v258
    %v897 = vunpack.c.l.b16 %v259
    %v898 = vunpack.c.h.b16 %v259
    %v899 = vunpack.c.l.b16 %v260
    %v900 = vunpack.c.h.b16 %v260
    %v901 = vunpack.c.l.b16 %v261
    %v902 = vunpack.c.h.b16 %v261
    %v903 = vunpack.c.l.b16 %v262
    %v904 = vunpack.c.h.b16 %v262
    %v905 = vunpack.c.l.b16 %v263
    %v906 = vunpack.c.h.b16 %v263
    %v907 = vunpack.c.l.b16 %v264
    %v908 = vunpack.c.h.b16 %v264
    %v909 = vunpack.c.l.b16 %v265
    %v910 = vunpack.c.h.b16 %v265
    %v911 = vunpack.c.l.b16 %v266
    %v912 = vunpack.c.h.b16 %v266
    %v913 = vunpack.c.l.b16 %v267
    %v914 = vunpack.c.h.b16 %v267
    %v915 = vunpack.c.l.b16 %v268
    %v916 = vunpack.c.h.b16 %v268
    %v917 = vunpack.c.l.b16 %v269
    %v918 = vunpack.c.h.b16 %v269
    %v919 = vunpack.c.l.b16 %v270
    %v920 = vunpack.c.h.b16 %v270
    %v921 = vunpack.c.l.b16 %v271
    %v922 = vunpack.c.h.b16 %v271
    %v923 = vunpack.c.l.b16 %v272
    %v924 = vunpack.c.h.b16 %v272
    %v925 = vunpack.c.l.b16 %v273
    %v926 = vunpack.c.h.b16 %v273
    %v927 = vunpack.c.l.b16 %v274
    %v928 = vunpack.c.h.b16 %v274
    %v929 = vunpack.c.l.b16 %v275
    %v930 = vunpack.c.h.b16 %v275
    %v931 = vunpack.c.l.b16 %v276
    %v932 = vunpack.c.h.b16 %v276
    %v933 = vunpack.c.l.b16 %v277
    %v934 = vunpack.c.h.b16 %v277
    %v935 = vunpack.c.l.b16 %v278
    %v936 = vunpack.c.h.b16 %v278
    %v937 = vunpack.c.l.b16 %v279
    %v938 = vunpack.c.h.b16 %v279
    %v939 = vunpack.c.l.b16 %v280
    %v940 = vunpack.c.h.b16 %v280
    %v941 = vunpack.c.l.b16 %v281
    %v942 = vunpack.c.h.b16 %v281
    %v943 = vunpack.c.l.b16 %v282
    %v944 = vunpack.c.h.b16 %v282
    %v945 = vunpack.c.l.b16 %v283
    %v946 = vunpack.c.h.b16 %v283
    %v947 = vunpack.c.l.b16 %v284
    %v948 = vunpack.c.h.b16 %v284
    %v949 = vunpack.c.l.b16 %v285
    %v950 = vunpack.c.h.b16 %v285
    %v951 = vunpack.c.l.b16 %v286
    %v952 = vunpack.c.h.b16 %v286
    %v953 = vunpack.c.l.b16 %v287
    %v954 = vunpack.c.h.b16 %v287
    %v955 = vunpack.c.l.b16 %v288
    %v956 = vunpack.c.h.b16 %v288
    %v957 = vunpack.c.l.b16 %v289
    %v958 = vunpack.c.h.b16 %v289
    %v959 = vunpack.c.l.b16 %v290
    %v960 = vunpack.c.h.b16 %v290
    %v961 = vunpack.c.l.b16 %v291
    %v962 = vunpack.c.h.b16 %v291
    %v963 = vunpack.c.l.b16 %v292
    %v964 = vunpack.c.h.b16 %v292
    %v965 = vunpack.c.l.b16 %v293
    %v966 = vunpack.c.h.b16 %v293
    %v967 = vunpack.c.l.b16 %v294
    %v968 = vunpack.c.h.b16 %v294
    %v969 = vunpack.c.l.b16 %v295
    %v970 = vunpack.c.h.b16 %v295
    %v971 = vunpack.c.l.b16 %v296
    %v972 = vunpack.c.h.b16 %v296
    %v973 = vunpack.c.l.b16 %v297
    %v974 = vunpack.c.h.b16 %v297
    %v975 = vunpack.c.l.b16 %v298
    %v976 = vunpack.c.h.b16 %v298
    %v977 = vunpack.c.l.b16 %v299
    %v978 = vunpack.c.h.b16 %v299
    %v979 = vunpack.c.l.b16 %v300
    %v980 = vunpack.c.h.b16 %v300
    %v981 = vunpack.c.l.b16 %v301
    %v982 = vunpack.c.h.b16 %v301
    %v983 = vunpack.c.l.b16 %v302
    %v984 = vunpack.c.h.b16 %v302
    %v985 = vunpack.c.l.b16 %v303
    %v986 = vunpack.c.h.b16 %v303
    %v987 = vunpack.c.l.b16 %v304
    %v988 = vunpack.c.h.b16 %v304
    %v989 = vunpack.c.l.b16 %v305
    %v990 = vunpack.c.h.b16 %v305
    %v991 = vunpack.c.l.b16 %v306
    %v992 = vunpack.c.h.b16 %v306
    %v993 = vunpack.c.l.b16 %v307
    %v994 = vunpack.c.h.b16 %v307
    %v995 = vunpack.c.l.b16 %v308
    %v996 = vunpack.c.h.b16 %v308
    %v997 = vunpack.c.l.b16 %v309
    %v998 = vunpack.c.h.b16 %v309
    %v999 = vunpack.c.l.b16 %v310
    %v1000 = vunpack.c.h.b16 %v310
    %v1001 = vunpack.c.l.b16 %v311
    %v1002 = vunpack.c.h.b16 %v311
    %v1003 = vunpack.c.l.b16 %v312
    %v1004 = vunpack.c.h.b16 %v312
    %v1005 = vunpack.c.l.b16 %v313
    %v1006 = vunpack.c.h.b16 %v313
    %v1007 = vunpack.c.l.b16 %v314
    %v1008 = vunpack.c.h.b16 %v314
    %v1009 = vpack.c.b16 %v565, %v561
    %v1010 = vpack.c.b16 %v566, %v562
    %v1011 = vpack.c.b16 %v567, %v563
    %v1012 = vpack.c.b16 %v568, %v564
    %v1013 = vpack.c.b16 %v573, %v569
    %v1014 = vpack.c.b16 %v574, %v570
    %v1015 = vpack.c.b16 %v575, %v571
    %v1016 = vpack.c.b16 %v576, %v572
    %v1017 = vpack.c.b16 %v581, %v577
    %v1018 = vpack.c.b16 %v582, %v578
    %v1019 = vpack.c.b16 %v583, %v579
    %v1020 = vpack.c.b16 %v584, %v580
    %v1021 = vpack.c.b16 %v589, %v585
    %v1022 = vpack.c.b16 %v590, %v586
    %v1023 = vpack.c.b16 %v591, %v587
    %v1024 = vpack.c.b16 %v592, %v588
    %v1025 = vpack.c.b16 %v597, %v593
    %v1026 = vpack.c.b16 %v598, %v594
    %v1027 = vpack.c.b16 %v599, %v595
    %v1028 = vpack.c.b16 %v600, %v596
    %v1029 = vpack.c.b16 %v605, %v601
    %v1030 = vpack.c.b16 %v606, %v602
    %v1031 = vpack.c.b16 %v607, %v603
    %v1032 = vpack.c.b16 %v608, %v604
    %v1033 = vpack.c.b16 %v613, %v609
    %v1034 = vpack.c.b16 %v614, %v610
    %v1035 = vpack.c.b16 %v615, %v611
    %v1036 = vpack.c.b16 %v616, %v612
    %v1037 = vpack.c.b16 %v621, %v617
    %v1038 = vpack.c.b16 %v622, %v618
    %v1039 = vpack.c.b16 %v623, %v619
    %v1040 = vpack.c.b16 %v624, %v620
    %v1041 = vpack.c.b16 %v629, %v625
    %v1042 = vpack.c.b16 %v630, %v626
    %v1043 = vpack.c.b16 %v631, %v627
    %v1044 = vpack.c.b16 %v632, %v628
    %v1045 = vpack.c.b16 %v637, %v633
    %v1046 = vpack.c.b16 %v638, %v634
    %v1047 = vpack.c.b16 %v639, %v635
    %v1048 = vpack.c.b16 %v640, %v636
    %v1049 = vpack.c.b16 %v645, %v641
    %v1050 = vpack.c.b16 %v646, %v642
    %v1051 = vpack.c.b16 %v647, %v643
    %v1052 = vpack.c.b16 %v648, %v644
    %v1053 = vpack.c.b16 %v653, %v649
    %v1054 = vpack.c.b16 %v654, %v650
    %v1055 = vpack.c.b16 %v655, %v651
    %v1056 = vpack.c.b16 %v656, %v652
    %v1057 = vpack.c.b16 %v661, %v657
    %v1058 = vpack.c.b16 %v662, %v658
    %v1059 = vpack.c.b16 %v663, %v659
    %v1060 = vpack.c.b16 %v664, %v660
    %v1061 = vpack.c.b16 %v669, %v665
    %v1062 = vpack.c.b16 %v670, %v666
    %v1063 = vpack.c.b16 %v671, %v667
    %v1064 = vpack.c.b16 %v672, %v668
    %v1065 = vpack.c.b16 %v677, %v673
    %v1066 = vpack.c.b16 %v678, %v674
    %v1067 = vpack.c.b16 %v679, %v675
    %v1068 = vpack.c.b16 %v680, %v676
    %v1069 = vpack.c.b16 %v685, %v681
    %v1070 = vpack.c.b16 %v686, %v682
    %v1071 = vpack.c.b16 %v687, %v683
    %v1072 = vpack.c.b16 %v688, %v684
    %v1073 = vpack.c.b16 %v693, %v689
    %v1074 = vpack.c.b16 %v694, %v690
    %v1075 = vpack.c.b16 %v695, %v691
    %v1076 = vpack.c.b16 %v696, %v692
    %v1077 = vpack.c.b16 %v701, %v697
    %v1078 = vpack.c.b16 %v702, %v698
    %v1079 = vpack.c.b16 %v703, %v699
    %v1080 = vpack.c.b16 %v704, %v700
    %v1081 = vpack.c.b16 %v709, %v705
    %v1082 = vpack.c.b16 %v710, %v706
    %v1083 = vpack.c.b16 %v711, %v707
    %v1084 = vpack.c.b16 %v712, %v708
    %v1085 = vpack.c.b16 %v717, %v713
    %v1086 = vpack.c.b16 %v718, %v714
    %v1087 = vpack.c.b16 %v719, %v715
    %v1088 = vpack.c.b16 %v720, %v716
    %v1089 = vpack.c.b16 %v725, %v721
    %v1090 = vpack.c.b16 %v726, %v722
    %v1091 = vpack.c.b16 %v727, %v723
    %v1092 = vpack.c.b16 %v728, %v724
    %v1093 = vpack.c.b16 %v733, %v729
    %v1094 = vpack.c.b16 %v734, %v730
    %v1095 = vpack.c.b16 %v735, %v731
    %v1096 = vpack.c.b16 %v736, %v732
    %v1097 = vpack.c.b16 %v741, %v737
    %v1098 = vpack.c.b16 %v742, %v738
    %v1099 = vpack.c.b16 %v743, %v739
    %v1100 = vpack.c.b16 %v744, %v740
    %v1101 = vpack.c.b16 %v749, %v745
    %v1102 = vpack.c.b16 %v750, %v746
    %v1103 = vpack.c.b16 %v751, %v747
    %v1104 = vpack.c.b16 %v752, %v748
    %v1105 = vpack.c.b16 %v757, %v753
    %v1106 = vpack.c.b16 %v758, %v754
    %v1107 = vpack.c.b16 %v759, %v755
    %v1108 = vpack.c.b16 %v760, %v756
    %v1109 = vpack.c.b16 %v765, %v761
    %v1110 = vpack.c.b16 %v766, %v762
    %v1111 = vpack.c.b16 %v767, %v763
    %v1112 = vpack.c.b16 %v768, %v764
    %v1113 = vpack.c.b16 %v773, %v769
    %v1114 = vpack.c.b16 %v774, %v770
    %v1115 = vpack.c.b16 %v775, %v771
    %v1116 = vpack.c.b16 %v776, %v772
    %v1117 = vpack.c.b16 %v781, %v777
    %v1118 = vpack.c.b16 %v782, %v778
    %v1119 = vpack.c.b16 %v783, %v779
    %v1120 = vpack.c.b16 %v784, %v780
    %v1121 = vpack.c.b16 %v789, %v785
    %v1122 = vpack.c.b16 %v790, %v786
    %v1123 = vpack.c.b16 %v791, %v787
    %v1124 = vpack.c.b16 %v792, %v788
    %v1125 = vpack.c.b16 %v797, %v793
    %v1126 = vpack.c.b16 %v798, %v794
    %v1127 = vpack.c.b16 %v799, %v795
    %v1128 = vpack.c.b16 %v800, %v796
    %v1129 = vpack.c.b16 %v805, %v801
    %v1130 = vpack.c.b16 %v806, %v802
    %v1131 = vpack.c.b16 %v807, %v803
    %v1132 = vpack.c.b16 %v808, %v804
    %v1133 = vpack.c.b16 %v813, %v809
    %v1134 = vpack.c.b16 %v814, %v810
    %v1135 = vpack.c.b16 %v815, %v811
    %v1136 = vpack.c.b16 %v816, %v812
    %v1137 = vpack.c.b16 %v821, %v817
    %v1138 = vpack.c.b16 %v822, %v818
    %v1139 = vpack.c.b16 %v823, %v819
    %v1140 = vpack.c.b16 %v824, %v820
    %v1141 = vpack.c.b16 %v829, %v825
    %v1142 = vpack.c.b16 %v830, %v826
    %v1143 = vpack.c.b16 %v831, %v827
    %v1144 = vpack.c.b16 %v832, %v828
    %v1145 = vpack.c.b16 %v837, %v833
    %v1146 = vpack.c.b16 %v838, %v834
    %v1147 = vpack.c.b16 %v839, %v835
    %v1148 = vpack.c.b16 %v840, %v836
    %v1149 = vpack.c.b16 %v845, %v841
    %v1150 = vpack.c.b16 %v846, %v842
    %v1151 = vpack.c.b16 %v847, %v843
    %v1152 = vpack.c.b16 %v848, %v844
    %v1153 = vpack.c.b16 %v853, %v849
    %v1154 = vpack.c.b16 %v854, %v850
    %v1155 = vpack.c.b16 %v855, %v851
    %v1156 = vpack.c.b16 %v856, %v852
    %v1157 = vpack.c.b16 %v861, %v857
    %v1158 = vpack.c.b16 %v862, %v858
    %v1159 = vpack.c.b16 %v863, %v859
    %v1160 = vpack.c.b16 %v864, %v860
    %v1161 = vpack.c.b16 %v869, %v865
    %v1162 = vpack.c.b16 %v870, %v866
    %v1163 = vpack.c.b16 %v871, %v867
    %v1164 = vpack.c.b16 %v872, %v868
    %v1165 = vpack.c.b16 %v877, %v873
    %v1166 = vpack.c.b16 %v878, %v874
    %v1167 = vpack.c.b16 %v879, %v875
    %v1168 = vpack.c.b16 %v880, %v876
    %v1169 = vpack.c.b16 %v885, %v881
    %v1170 = vpack.c.b16 %v886, %v882
    %v1171 = vpack.c.b16 %v887, %v883
    %v1172 = vpack.c.b16 %v888, %v884
    %v1173 = vpack.c.b16 %v893, %v889
    %v1174 = vpack.c.b16 %v894, %v890
    %v1175 = vpack.c.b16 %v895, %v891
    %v1176 = vpack.c.b16 %v896, %v892
    %v1177 = vpack.c.b16 %v901, %v897
    %v1178 = vpack.c.b16 %v902, %v898
    %v1179 = vpack.c.b16 %v903, %v899
    %v1180 = vpack.c.b16 %v904, %v900
    %v1181 = vpack.c.b16 %v909, %v905
    %v1182 = vpack.c.b16 %v910, %v906
    %v1183 = vpack.c.b16 %v911, %v907
    %v1184 = vpack.c.b16 %v912, %v908
    %v1185 = vpack.c.b16 %v917, %v913
    %v1186 = vpack.c.b16 %v918, %v914
    %v1187 = vpack.c.b16 %v919, %v915
    %v1188 = vpack.c.b16 %v920, %v916
    %v1189 = vpack.c.b16 %v925, %v921
    %v1190 = vpack.c.b16 %v926, %v922
    %v1191 = vpack.c.b16 %v927, %v923
    %v1192 = vpack.c.b16 %v928, %v924
    %v1193 = vpack.c.b16 %v933, %v929
    %v1194 = vpack.c.b16 %v934, %v930
    %v1195 = vpack.c.b16 %v935, %v931
    %v1196 = vpack.c.b16 %v936, %v932
    %v1197 = vpack.c.b16 %v941, %v937
    %v1198 = vpack.c.b16 %v942, %v938
    %v1199 = vpack.c.b16 %v943, %v939
    %v1200 = vpack.c.b16 %v944, %v940
    %v1201 = vpack.c.b16 %v949, %v945
    %v1202 = vpack.c.b16 %v950, %v946
    %v1203 = vpack.c.b16 %v951, %v947
    %v1204 = vpack.c.b16 %v952, %v948
    %v1205 = vpack.c.b16 %v957, %v953
    %v1206 = vpack.c.b16 %v958, %v954
    %v1207 = vpack.c.b16 %v959, %v955
    %v1208 = vpack.c.b16 %v960, %v956
    %v1209 = vpack.c.b16 %v965, %v961
    %v1210 = vpack.c.b16 %v966, %v962
    %v1211 = vpack.c.b16 %v967, %v963
    %v1212 = vpack.c.b16 %v968, %v964
    %v1213 = vpack.c.b16 %v973, %v969
    %v1214 = vpack.c.b16 %v974, %v970
    %v1215 = vpack.c.b16 %v975, %v971
    %v1216 = vpack.c.b16 %v976, %v972
    %v1217 = vpack.c.b16 %v981, %v977
    %v1218 = vpack.c.b16 %v982, %v978
    %v1219 = vpack.c.b16 %v983, %v979
    %v1220 = vpack.c.b16 %v984, %v980
    %v1221 = vpack.c.b16 %v989, %v985
    %v1222 = vpack.c.b16 %v990, %v986
    %v1223 = vpack.c.b16 %v991, %v987
    %v1224 = vpack.c.b16 %v992, %v988
    %v1225 = vpack.c.b16 %v997, %v993
    %v1226 = vpack.c.b16 %v998, %v994
    %v1227 = vpack.c.b16 %v999, %v995
    %v1228 = vpack.c.b16 %v1000, %v996
    %v1229 = vpack.c.b16 %v1005, %v1001
    %v1230 = vpack.c.b16 %v1006, %v1002
    %v1231 = vpack.c.b16 %v1007, %v1003
    %v1232 = vpack.c.b16 %v1008, %v1004
    %1457 = vmatprep.subr.bf16.mxu0 %v1010
    %1458 = vmatpush1.bf16.msra.mxu0 %v1009
    %1459 = vmatprep.subr.bf16.mxu0 %v1014
    %1460 = vmatpush1.bf16.msra.mxu0 %v1013
    %1461 = vmatprep.subr.bf16.mxu0 %v1018
    %1462 = vmatpush1.bf16.msra.mxu0 %v1017
    %1463 = vmatprep.subr.bf16.mxu0 %v1022
    %1464 = vmatpush1.bf16.msra.mxu0 %v1021
    %1465 = vmatprep.subr.bf16.mxu0 %v1026
    %1466 = vmatpush1.bf16.msra.mxu0 %v1025
    %1467 = vmatprep.subr.bf16.mxu0 %v1030
    %1468 = vmatpush1.bf16.msra.mxu0 %v1029
    %1469 = vmatprep.subr.bf16.mxu0 %v1034
    %1470 = vmatpush1.bf16.msra.mxu0 %v1033
    %1471 = vmatprep.subr.bf16.mxu0 %v1038
    %1472 = vmatpush1.bf16.msra.mxu0 %v1037
    %1473 = vmatprep.subr.bf16.mxu0 %v1042
    %1474 = vmatpush1.bf16.msra.mxu0 %v1041
    %1475 = vmatprep.subr.bf16.mxu0 %v1046
    %1476 = vmatpush1.bf16.msra.mxu0 %v1045
    %1477 = vmatprep.subr.bf16.mxu0 %v1050
    %1478 = vmatpush1.bf16.msra.mxu0 %v1049
    %1479 = vmatprep.subr.bf16.mxu0 %v1054
    %1480 = vmatpush1.bf16.msra.mxu0 %v1053
    %1481 = vmatprep.subr.bf16.mxu0 %v1058
    %1482 = vmatpush1.bf16.msra.mxu0 %v1057
    %1483 = vmatprep.subr.bf16.mxu0 %v1062
    %1484 = vmatpush1.bf16.msra.mxu0 %v1061
    %1485 = vmatprep.subr.bf16.mxu0 %v1066
    %1486 = vmatpush1.bf16.msra.mxu0 %v1065
    %1487 = vmatprep.subr.bf16.mxu0 %v1070
    %1488 = vmatpush1.bf16.msra.mxu0 %v1069
    %1489 = vmatprep.mubr.bf16.mxu0 %v85
    %1490 = vmatmul.mubr.bf16.gmra.mrb[0].mxu0 %v84
    %v1491 = vpop.f32.mrb[0].mxu0
    %v1492 = vadd.f32 %v320, %v1491
    %v1493 = vpop.f32.mrb[0].mxu0
    %v1494 = vadd.f32 %v324, %v1493
    %v1495 = vpop.f32.mrb[0].mxu0
    %v1496 = vpop.f32.mrb[0].mxu0
    %1497 = vdwg.mxu0
    %1498 = vmatprep.subr.bf16.mxu0 %v1074
    %1499 = vmatpush1.bf16.msra.mxu0 %v1073
    %1500 = vmatprep.subr.bf16.mxu0 %v1078
    %1501 = vmatpush1.bf16.msra.mxu0 %v1077
    %1502 = vmatprep.subr.bf16.mxu0 %v1082
    %1503 = vmatpush1.bf16.msra.mxu0 %v1081
    %1504 = vmatprep.subr.bf16.mxu0 %v1086
    %1505 = vmatpush1.bf16.msra.mxu0 %v1085
    %1506 = vmatprep.subr.bf16.mxu0 %v1090
    %1507 = vmatpush1.bf16.msra.mxu0 %v1089
    %1508 = vmatprep.subr.bf16.mxu0 %v1094
    %1509 = vmatpush1.bf16.msra.mxu0 %v1093
    %1510 = vmatprep.subr.bf16.mxu0 %v1098
    %1511 = vmatpush1.bf16.msra.mxu0 %v1097
    %1512 = vmatprep.subr.bf16.mxu0 %v1102
    %1513 = vmatpush1.bf16.msra.mxu0 %v1101
    %1514 = vmatprep.subr.bf16.mxu0 %v1106
    %1515 = vmatpush1.bf16.msra.mxu0 %v1105
    %1516 = vmatprep.subr.bf16.mxu0 %v1110
    %1517 = vmatpush1.bf16.msra.mxu0 %v1109
    %1518 = vmatprep.subr.bf16.mxu0 %v1114
    %1519 = vmatpush1.bf16.msra.mxu0 %v1113
    %1520 = vmatprep.subr.bf16.mxu0 %v1118
    %1521 = vmatpush1.bf16.msra.mxu0 %v1117
    %1522 = vmatprep.subr.bf16.mxu0 %v1122
    %1523 = vmatpush1.bf16.msra.mxu0 %v1121
    %1524 = vmatprep.subr.bf16.mxu0 %v1126
    %1525 = vmatpush1.bf16.msra.mxu0 %v1125
    %1526 = vmatprep.subr.bf16.mxu0 %v1130
    %1527 = vmatpush1.bf16.msra.mxu0 %v1129
    %1528 = vmatprep.subr.bf16.mxu0 %v1134
    %1529 = vmatpush1.bf16.msra.mxu0 %v1133
    %1530 = vmatprep.mubr.bf16.mxu0 %v87
    %1531 = vmatmul.mubr.bf16.gmra.mrb[0].mxu0 %v86
    %v1532 = vpop.f32.mrb[0].mxu0
    %v1533 = vadd.f32 %v1492, %v1532
    %v1534 = vpop.f32.mrb[0].mxu0
    %v1535 = vadd.f32 %v1494, %v1534
    %v1536 = vpop.f32.mrb[0].mxu0
    %v1537 = vpop.f32.mrb[0].mxu0
    %1538 = vdwg.mxu0
    %1539 = vmatprep.subr.bf16.mxu0 %v1138
    %1540 = vmatpush1.bf16.msra.mxu0 %v1137
    %1541 = vmatprep.subr.bf16.mxu0 %v1142
    %1542 = vmatpush1.bf16.msra.mxu0 %v1141
    %1543 = vmatprep.subr.bf16.mxu0 %v1146
    %1544 = vmatpush1.bf16.msra.mxu0 %v1145
    %1545 = vmatprep.subr.bf16.mxu0 %v1150
    %1546 = vmatpush1.bf16.msra.mxu0 %v1149
    %1547 = vmatprep.subr.bf16.mxu0 %v1154
    %1548 = vmatpush1.bf16.msra.mxu0 %v1153
    %1549 = vmatprep.subr.bf16.mxu0 %v1158
    %1550 = vmatpush1.bf16.msra.mxu0 %v1157
    %1551 = vmatprep.subr.bf16.mxu0 %v1162
    %1552 = vmatpush1.bf16.msra.mxu0 %v1161
    %1553 = vmatprep.subr.bf16.mxu0 %v1166
    %1554 = vmatpush1.bf16.msra.mxu0 %v1165
    %1555 = vmatprep.subr.bf16.mxu0 %v1170
    %1556 = vmatpush1.bf16.msra.mxu0 %v1169
    %1557 = vmatprep.subr.bf16.mxu0 %v1174
    %1558 = vmatpush1.bf16.msra.mxu0 %v1173
    %1559 = vmatprep.subr.bf16.mxu0 %v1178
    %1560 = vmatpush1.bf16.msra.mxu0 %v1177
    %1561 = vmatprep.subr.bf16.mxu0 %v1182
    %1562 = vmatpush1.bf16.msra.mxu0 %v1181
    %1563 = vmatprep.subr.bf16.mxu0 %v1186
    %1564 = vmatpush1.bf16.msra.mxu0 %v1185
    %1565 = vmatprep.subr.bf16.mxu0 %v1190
    %1566 = vmatpush1.bf16.msra.mxu0 %v1189
    %1567 = vmatprep.subr.bf16.mxu0 %v1194
    %1568 = vmatpush1.bf16.msra.mxu0 %v1193
    %1569 = vmatprep.subr.bf16.mxu0 %v1198
    %1570 = vmatpush1.bf16.msra.mxu0 %v1197
    %1571 = vmatprep.mubr.bf16.mxu0 %v89
    %1572 = vmatmul.mubr.bf16.gmra.mrb[0].mxu0 %v88
    %v1573 = vpop.f32.mrb[0].mxu0
    %v1574 = vadd.f32 %v1533, %v1573
    %v1575 = vpop.f32.mrb[0].mxu0
    %v1576 = vadd.f32 %v1535, %v1575
    %v1577 = vpop.f32.mrb[0].mxu0
    %v1578 = vpop.f32.mrb[0].mxu0
    %1579 = vdwg.mxu0
    %1580 = vmatprep.subr.bf16.mxu0 %v1202
    %1581 = vmatpush1.bf16.msra.mxu0 %v1201
    %1582 = vmatprep.subr.bf16.mxu0 %v1206
    %1583 = vmatpush1.bf16.msra.mxu0 %v1205
    %1584 = vmatprep.subr.bf16.mxu0 %v1210
    %1585 = vmatpush1.bf16.msra.mxu0 %v1209
    %1586 = vmatprep.subr.bf16.mxu0 %v1214
    %1587 = vmatpush1.bf16.msra.mxu0 %v1213
    %1588 = vmatprep.subr.bf16.mxu0 %v1218
    %1589 = vmatpush1.bf16.msra.mxu0 %v1217
    %1590 = vmatprep.subr.bf16.mxu0 %v1222
    %1591 = vmatpush1.bf16.msra.mxu0 %v1221
    %1592 = vmatprep.subr.bf16.mxu0 %v1226
    %1593 = vmatpush1.bf16.msra.mxu0 %v1225
    %1594 = vmatprep.subr.bf16.mxu0 %v1230
    %1595 = vmatpush1.bf16.msra.mxu0 %v1229
    %1596 = vmatprep.subr.bf16.mxu0 0
    %1597 = vmatpush1.bf16.msra.mxu0 0
    %1598 = vmatprep.subr.bf16.mxu0 0
    %1599 = vmatpush1.bf16.msra.mxu0 0
    %1600 = vmatprep.subr.bf16.mxu0 0
    %1601 = vmatpush1.bf16.msra.mxu0 0
    %1602 = vmatprep.subr.bf16.mxu0 0
    %1603 = vmatpush1.bf16.msra.mxu0 0
    %1604 = vmatprep.subr.bf16.mxu0 0
    %1605 = vmatpush1.bf16.msra.mxu0 0
    %1606 = vmatprep.subr.bf16.mxu0 0
    %1607 = vmatpush1.bf16.msra.mxu0 0
    %1608 = vmatprep.subr.bf16.mxu0 0
    %1609 = vmatpush1.bf16.msra.mxu0 0
    %1610 = vmatprep.subr.bf16.mxu0 0
    %1611 = vmatpush1.bf16.msra.mxu0 0
    %1612 = vmatprep.mubr.bf16.mxu0 0
    %1613 = vmatmul.mubr.bf16.gmra.mrb[0].mxu0 %v90
    %v1614 = vpop.f32.mrb[0].mxu0
    %v1615 = vadd.f32 %v1574, %v1614
    %v1616 = vpop.f32.mrb[0].mxu0
    %v1617 = vadd.f32 %v1576, %v1616
    %v1618 = vpop.f32.mrb[0].mxu0
    %v1619 = vpop.f32.mrb[0].mxu0
    %1620 = vdwg.mxu0
    %1621 = vmatprep.subr.bf16.mxu0 %v1012
    %1622 = vmatpush1.bf16.msra.mxu0 %v1011
    %1623 = vmatprep.subr.bf16.mxu0 %v1016
    %1624 = vmatpush1.bf16.msra.mxu0 %v1015
    %1625 = vmatprep.subr.bf16.mxu0 %v1020
    %1626 = vmatpush1.bf16.msra.mxu0 %v1019
    %1627 = vmatprep.subr.bf16.mxu0 %v1024
    %1628 = vmatpush1.bf16.msra.mxu0 %v1023
    %1629 = vmatprep.subr.bf16.mxu0 %v1028
    %1630 = vmatpush1.bf16.msra.mxu0 %v1027
    %1631 = vmatprep.subr.bf16.mxu0 %v1032
    %1632 = vmatpush1.bf16.msra.mxu0 %v1031
    %1633 = vmatprep.subr.bf16.mxu0 %v1036
    %1634 = vmatpush1.bf16.msra.mxu0 %v1035
    %1635 = vmatprep.subr.bf16.mxu0 %v1040
    %1636 = vmatpush1.bf16.msra.mxu0 %v1039
    %1637 = vmatprep.subr.bf16.mxu0 %v1044
    %1638 = vmatpush1.bf16.msra.mxu0 %v1043
    %1639 = vmatprep.subr.bf16.mxu0 %v1048
    %1640 = vmatpush1.bf16.msra.mxu0 %v1047
    %1641 = vmatprep.subr.bf16.mxu0 %v1052
    %1642 = vmatpush1.bf16.msra.mxu0 %v1051
    %1643 = vmatprep.subr.bf16.mxu0 %v1056
    %1644 = vmatpush1.bf16.msra.mxu0 %v1055
    %1645 = vmatprep.subr.bf16.mxu0 %v1060
    %1646 = vmatpush1.bf16.msra.mxu0 %v1059
    %1647 = vmatprep.subr.bf16.mxu0 %v1064
    %1648 = vmatpush1.bf16.msra.mxu0 %v1063
    %1649 = vmatprep.subr.bf16.mxu0 %v1068
    %1650 = vmatpush1.bf16.msra.mxu0 %v1067
    %1651 = vmatprep.subr.bf16.mxu0 %v1072
    %1652 = vmatpush1.bf16.msra.mxu0 %v1071
    %1653 = vmatprep.mubr.bf16.mxu0 %v85
    %1654 = vmatmul.mubr.bf16.gmra.mrb[0].mxu0 %v84
    %v1655 = vpop.f32.mrb[0].mxu0
    %v1656 = vadd.f32 %v328, %v1655
    %v1657 = vpop.f32.mrb[0].mxu0
    %v1658 = vadd.f32 %v332, %v1657
    %v1659 = vpop.f32.mrb[0].mxu0
    %v1660 = vpop.f32.mrb[0].mxu0
    %1661 = vdwg.mxu0
    %1662 = vmatprep.subr.bf16.mxu0 %v1076
    %1663 = vmatpush1.bf16.msra.mxu0 %v1075
    %1664 = vmatprep.subr.bf16.mxu0 %v1080
    %1665 = vmatpush1.bf16.msra.mxu0 %v1079
    %1666 = vmatprep.subr.bf16.mxu0 %v1084
    %1667 = vmatpush1.bf16.msra.mxu0 %v1083
    %1668 = vmatprep.subr.bf16.mxu0 %v1088
    %1669 = vmatpush1.bf16.msra.mxu0 %v1087
    %1670 = vmatprep.subr.bf16.mxu0 %v1092
    %1671 = vmatpush1.bf16.msra.mxu0 %v1091
    %1672 = vmatprep.subr.bf16.mxu0 %v1096
    %1673 = vmatpush1.bf16.msra.mxu0 %v1095
    %1674 = vmatprep.subr.bf16.mxu0 %v1100
    %1675 = vmatpush1.bf16.msra.mxu0 %v1099
    %1676 = vmatprep.subr.bf16.mxu0 %v1104
    %1677 = vmatpush1.bf16.msra.mxu0 %v1103
    %1678 = vmatprep.subr.bf16.mxu0 %v1108
    %1679 = vmatpush1.bf16.msra.mxu0 %v1107
    %1680 = vmatprep.subr.bf16.mxu0 %v1112
    %1681 = vmatpush1.bf16.msra.mxu0 %v1111
    %1682 = vmatprep.subr.bf16.mxu0 %v1116
    %1683 = vmatpush1.bf16.msra.mxu0 %v1115
    %1684 = vmatprep.subr.bf16.mxu0 %v1120
    %1685 = vmatpush1.bf16.msra.mxu0 %v1119
    %1686 = vmatprep.subr.bf16.mxu0 %v1124
    %1687 = vmatpush1.bf16.msra.mxu0 %v1123
    %1688 = vmatprep.subr.bf16.mxu0 %v1128
    %1689 = vmatpush1.bf16.msra.mxu0 %v1127
    %1690 = vmatprep.subr.bf16.mxu0 %v1132
    %1691 = vmatpush1.bf16.msra.mxu0 %v1131
    %1692 = vmatprep.subr.bf16.mxu0 %v1136
    %1693 = vmatpush1.bf16.msra.mxu0 %v1135
    %1694 = vmatprep.mubr.bf16.mxu0 %v87
    %1695 = vmatmul.mubr.bf16.gmra.mrb[0].mxu0 %v86
    %v1696 = vpop.f32.mrb[0].mxu0
    %v1697 = vadd.f32 %v1656, %v1696
    %v1698 = vpop.f32.mrb[0].mxu0
    %v1699 = vadd.f32 %v1658, %v1698
    %v1700 = vpop.f32.mrb[0].mxu0
    %v1701 = vpop.f32.mrb[0].mxu0
    %1702 = vdwg.mxu0
    %1703 = vmatprep.subr.bf16.mxu0 %v1140
    %1704 = vmatpush1.bf16.msra.mxu0 %v1139
    %1705 = vmatprep.subr.bf16.mxu0 %v1144
    %1706 = vmatpush1.bf16.msra.mxu0 %v1143
    %1707 = vmatprep.subr.bf16.mxu0 %v1148
    %1708 = vmatpush1.bf16.msra.mxu0 %v1147
    %1709 = vmatprep.subr.bf16.mxu0 %v1152
    %1710 = vmatpush1.bf16.msra.mxu0 %v1151
    %1711 = vmatprep.subr.bf16.mxu0 %v1156
    %1712 = vmatpush1.bf16.msra.mxu0 %v1155
    %1713 = vmatprep.subr.bf16.mxu0 %v1160
    %1714 = vmatpush1.bf16.msra.mxu0 %v1159
    %1715 = vmatprep.subr.bf16.mxu0 %v1164
    %1716 = vmatpush1.bf16.msra.mxu0 %v1163
    %1717 = vmatprep.subr.bf16.mxu0 %v1168
    %1718 = vmatpush1.bf16.msra.mxu0 %v1167
    %1719 = vmatprep.subr.bf16.mxu0 %v1172
    %1720 = vmatpush1.bf16.msra.mxu0 %v1171
    %1721 = vmatprep.subr.bf16.mxu0 %v1176
    %1722 = vmatpush1.bf16.msra.mxu0 %v1175
    %1723 = vmatprep.subr.bf16.mxu0 %v1180
    %1724 = vmatpush1.bf16.msra.mxu0 %v1179
    %1725 = vmatprep.subr.bf16.mxu0 %v1184
    %1726 = vmatpush1.bf16.msra.mxu0 %v1183
    %1727 = vmatprep.subr.bf16.mxu0 %v1188
    %1728 = vmatpush1.bf16.msra.mxu0 %v1187
    %1729 = vmatprep.subr.bf16.mxu0 %v1192
    %1730 = vmatpush1.bf16.msra.mxu0 %v1191
    %1731 = vmatprep.subr.bf16.mxu0 %v1196
    %1732 = vmatpush1.bf16.msra.mxu0 %v1195
    %1733 = vmatprep.subr.bf16.mxu0 %v1200
    %1734 = vmatpush1.bf16.msra.mxu0 %v1199
    %1735 = vmatprep.mubr.bf16.mxu0 %v89
    %1736 = vmatmul.mubr.bf16.gmra.mrb[0].mxu0 %v88
    %v1737 = vpop.f32.mrb[0].mxu0
    %v1738 = vadd.f32 %v1697, %v1737
    %v1739 = vpop.f32.mrb[0].mxu0
    %v1740 = vadd.f32 %v1699, %v1739
    %v1741 = vpop.f32.mrb[0].mxu0
    %v1742 = vpop.f32.mrb[0].mxu0
    %1743 = vdwg.mxu0
    %1744 = vmatprep.subr.bf16.mxu0 %v1204
    %1745 = vmatpush1.bf16.msra.mxu0 %v1203
    %1746 = vmatprep.subr.bf16.mxu0 %v1208
    %1747 = vmatpush1.bf16.msra.mxu0 %v1207
    %1748 = vmatprep.subr.bf16.mxu0 %v1212
    %1749 = vmatpush1.bf16.msra.mxu0 %v1211
    %1750 = vmatprep.subr.bf16.mxu0 %v1216
    %1751 = vmatpush1.bf16.msra.mxu0 %v1215
    %1752 = vmatprep.subr.bf16.mxu0 %v1220
    %1753 = vmatpush1.bf16.msra.mxu0 %v1219
    %1754 = vmatprep.subr.bf16.mxu0 %v1224
    %1755 = vmatpush1.bf16.msra.mxu0 %v1223
    %1756 = vmatprep.subr.bf16.mxu0 %v1228
    %1757 = vmatpush1.bf16.msra.mxu0 %v1227
    %1758 = vmatprep.subr.bf16.mxu0 %v1232
    %1759 = vmatpush1.bf16.msra.mxu0 %v1231
    %1760 = vmatprep.subr.bf16.mxu0 0
    %1761 = vmatpush1.bf16.msra.mxu0 0
    %1762 = vmatprep.subr.bf16.mxu0 0
    %1763 = vmatpush1.bf16.msra.mxu0 0
    %1764 = vmatprep.subr.bf16.mxu0 0
    %1765 = vmatpush1.bf16.msra.mxu0 0
    %1766 = vmatprep.subr.bf16.mxu0 0
    %1767 = vmatpush1.bf16.msra.mxu0 0
    %1768 = vmatprep.subr.bf16.mxu0 0
    %1769 = vmatpush1.bf16.msra.mxu0 0
    %1770 = vmatprep.subr.bf16.mxu0 0
    %1771 = vmatpush1.bf16.msra.mxu0 0
    %1772 = vmatprep.subr.bf16.mxu0 0
    %1773 = vmatpush1.bf16.msra.mxu0 0
    %1774 = vmatprep.subr.bf16.mxu0 0
    %1775 = vmatpush1.bf16.msra.mxu0 0
    %1776 = vmatprep.mubr.bf16.mxu0 0
    %1777 = vmatmul.mubr.bf16.gmra.mrb[0].mxu0 %v90
    %v1778 = vpop.f32.mrb[0].mxu0
    %v1779 = vadd.f32 %v1738, %v1778
    %v1780 = vpop.f32.mrb[0].mxu0
    %v1781 = vadd.f32 %v1740, %v1780
    %v1782 = vpop.f32.mrb[0].mxu0
    %v1783 = vpop.f32.mrb[0].mxu0
    %1784 = vdwg.mxu0
    %v1785 = vmax.f32 %v1615, 0.0
    %v1786 = vmax.f32 %v1617, 0.0
    %v1787 = vmax.f32 %v1779, 0.0
    %v1788 = vmax.f32 %v1781, 0.0
    %v1789 = vld [vmem:[#allocation4] sm:$0xff]
    %v1790 = vld [vmem:[#allocation4 + $0x8] sm:$0xff]
    %v1791 = vld [vmem:[#allocation4 + $0x10] sm:$0xff]
    %v1792 = vld [vmem:[#allocation4 + $0x18] sm:$0xff]
    %v1793 = vld [vmem:[#allocation4 + $0x20] sm:$0xff]
    %v1794 = vld [vmem:[#allocation4 + $0x28] sm:$0xff]
    %v1795 = vld [vmem:[#allocation4 + $0x30] sm:$0xff]
    %v1796 = vld [vmem:[#allocation4 + $0x38] sm:$0xff]
    %v1797 = vld [vmem:[#allocation4 + $0x40] sm:$0xff]
    %v1798 = vld [vmem:[#allocation4 + $0x48] sm:$0xff]
    %v1799 = vld [vmem:[#allocation4 + $0x50] sm:$0xff]
    %v1800 = vld [vmem:[#allocation4 + $0x58] sm:$0xff]
    %v1801 = vld [vmem:[#allocation4 + $0x60] sm:$0xff]
    %v1802 = vld [vmem:[#allocation4 + $0x68] sm:$0xff]
    %v1803 = vld [vmem:[#allocation4 + $0x70] sm:$0xff]
    %v1804 = vld [vmem:[#allocation4 + $0x78] sm:$0xff]
    %v1805 = vld [vmem:[#allocation4 + $0x80] sm:$0xff]
    %v1806 = vld [vmem:[#allocation4 + $0x88] sm:$0xff]
    %v1807 = vld [vmem:[#allocation4 + $0x90] sm:$0xff]
    %v1808 = vld [vmem:[#allocation4 + $0x98] sm:$0xff]
    %v1809 = vld [vmem:[#allocation4 + $0xa0] sm:$0xff]
    %v1810 = vld [vmem:[#allocation4 + $0xa8] sm:$0xff]
    %v1811 = vld [vmem:[#allocation4 + $0xb0] sm:$0xff]
    %v1812 = vld [vmem:[#allocation4 + $0xb8] sm:$0xff]
    %v1813 = vld [vmem:[#allocation4 + $0xc0] sm:$0xff]
    %v1814 = vld [vmem:[#allocation4 + $0xc8] sm:$0xff]
    %v1815 = vld [vmem:[#allocation4 + $0xd0] sm:$0xff]
    %v1816 = vld [vmem:[#allocation4 + $0xd8] sm:$0xff]
    %v1817 = vld [vmem:[#allocation4 + $0xe0] sm:$0xff]
    %v1818 = vld [vmem:[#allocation4 + $0xe8] sm:$0xff]
    %v1819 = vld [vmem:[#allocation4 + $0xf0] sm:$0xff]
    %v1820 = vld [vmem:[#allocation4 + $0xf8] sm:$0xff]
    %v1821 = vld [vmem:[#allocation4 + $0x100] sm:$0xff]
    %v1822 = vld [vmem:[#allocation4 + $0x108] sm:$0xff]
    %v1823 = vld [vmem:[#allocation4 + $0x110] sm:$0xff]
    %v1824 = vld [vmem:[#allocation4 + $0x118] sm:$0xff]
    %v1825 = vld [vmem:[#allocation4 + $0x120] sm:$0xff]
    %v1826 = vld [vmem:[#allocation4 + $0x128] sm:$0xff]
    %v1827 = vld [vmem:[#allocation4 + $0x130] sm:$0xff]
    %v1828 = vld [vmem:[#allocation4 + $0x138] sm:$0xff]
    %v1829 = vld [vmem:[#allocation4 + $0x140] sm:$0xff]
    %v1830 = vld [vmem:[#allocation4 + $0x148] sm:$0xff]
    %v1831 = vld [vmem:[#allocation4 + $0x150] sm:$0xff]
    %v1832 = vld [vmem:[#allocation4 + $0x158] sm:$0xff]
    %v1833 = vld [vmem:[#allocation4 + $0x160] sm:$0xff]
    %v1834 = vld [vmem:[#allocation4 + $0x168] sm:$0xff]
    %v1835 = vld [vmem:[#allocation4 + $0x170] sm:$0xff]
    %v1836 = vld [vmem:[#allocation4 + $0x178] sm:$0xff]
    %v1837 = vld [vmem:[#allocation4 + $0x180] sm:$0xff]
    %v1838 = vld [vmem:[#allocation4 + $0x188] sm:$0xff]
    %v1839 = vld [vmem:[#allocation4 + $0x190] sm:$0xff]
    %v1840 = vld [vmem:[#allocation4 + $0x198] sm:$0xff]
    %v1841 = vld [vmem:[#allocation4 + $0x1a0] sm:$0xff]
    %v1842 = vld [vmem:[#allocation4 + $0x1a8] sm:$0xff]
    %v1843 = vld [vmem:[#allocation4 + $0x1b0] sm:$0xff]
    %v1844 = vld [vmem:[#allocation4 + $0x1b8] sm:$0xff]
    %v1845 = vld [vmem:[#allocation4 + $0x1c0] sm:$0xff]
    %v1846 = vld [vmem:[#allocation4 + $0x1c8] sm:$0xff]
    %v1847 = vld [vmem:[#allocation4 + $0x1d0] sm:$0xff]
    %v1848 = vld [vmem:[#allocation4 + $0x1d8] sm:$0xff]
    %v1849 = vld [vmem:[#allocation4 + $0x1e0] sm:$0xff]
    %v1850 = vld [vmem:[#allocation4 + $0x1e8] sm:$0xff]
    %v1851 = vld [vmem:[#allocation4 + $0x1f0] sm:$0xff]
    %v1852 = vld [vmem:[#allocation4 + $0x1f8] sm:$0xff]
    %v1853 = vld [vmem:[%s5] sm:$0x1]
    %v1855 = vlaneseq
    %v1856 = vshrl.u32 %v1855, 7
    %v1857 = vsub.s32 0, %v1856
    %v1858 = vrot.slane %v1853, %v1857
    %1860 = vmatprep.subr.mxu0 0.0
    %1861 = vmatpush1.msra.mxu0 %v1789
    %1862 = vmatprep.subr.mxu0 0.0
    %1863 = vmatpush1.msra.mxu0 %v1790
    %1864 = vmatprep.subr.mxu0 0.0
    %1865 = vmatpush1.msra.mxu0 %v1791
    %1866 = vmatprep.subr.mxu0 0.0
    %1867 = vmatpush1.msra.mxu0 %v1792
    %1868 = vmatprep.subr.mxu0 0.0
    %1869 = vmatpush1.msra.mxu0 %v1793
    %1870 = vmatprep.subr.mxu0 0.0
    %1871 = vmatpush1.msra.mxu0 %v1794
    %1872 = vmatprep.subr.mxu0 0.0
    %1873 = vmatpush1.msra.mxu0 %v1795
    %1874 = vmatprep.subr.mxu0 0.0
    %1875 = vmatpush1.msra.mxu0 %v1796
    %1876 = vmatprep.subr.mxu0 0.0
    %1877 = vmatpush1.msra.mxu0 %v1797
    %1878 = vmatprep.subr.mxu0 0.0
    %1879 = vmatpush1.msra.mxu0 %v1798
    %1880 = vmatprep.subr.mxu0 0.0
    %1881 = vmatpush1.msra.mxu0 %v1799
    %1882 = vmatprep.subr.mxu0 0.0
    %1883 = vmatpush1.msra.mxu0 %v1800
    %1884 = vmatprep.subr.mxu0 0.0
    %1885 = vmatpush1.msra.mxu0 %v1801
    %1886 = vmatprep.subr.mxu0 0.0
    %1887 = vmatpush1.msra.mxu0 %v1802
    %1888 = vmatprep.subr.mxu0 0.0
    %1889 = vmatpush1.msra.mxu0 %v1803
    %1890 = vmatprep.subr.mxu0 0.0
    %1891 = vmatpush1.msra.mxu0 %v1804
    %1892 = vmatprep.subr.mxu0 0.0
    %1893 = vmatpush1.msra.mxu0 %v1805
    %1894 = vmatprep.subr.mxu0 0.0
    %1895 = vmatpush1.msra.mxu0 %v1806
    %1896 = vmatprep.subr.mxu0 0.0
    %1897 = vmatpush1.msra.mxu0 %v1807
    %1898 = vmatprep.subr.mxu0 0.0
    %1899 = vmatpush1.msra.mxu0 %v1808
    %1900 = vmatprep.subr.mxu0 0.0
    %1901 = vmatpush1.msra.mxu0 %v1809
    %1902 = vmatprep.subr.mxu0 0.0
    %1903 = vmatpush1.msra.mxu0 %v1810
    %1904 = vmatprep.subr.mxu0 0.0
    %1905 = vmatpush1.msra.mxu0 %v1811
    %1906 = vmatprep.subr.mxu0 0.0
    %1907 = vmatpush1.msra.mxu0 %v1812
    %1908 = vmatprep.subr.mxu0 0.0
    %1909 = vmatpush1.msra.mxu0 %v1813
    %1910 = vmatprep.subr.mxu0 0.0
    %1911 = vmatpush1.msra.mxu0 %v1814
    %1912 = vmatprep.subr.mxu0 0.0
    %1913 = vmatpush1.msra.mxu0 %v1815
    %1914 = vmatprep.subr.mxu0 0.0
    %1915 = vmatpush1.msra.mxu0 %v1816
    %1916 = vmatprep.subr.mxu0 0.0
    %1917 = vmatpush1.msra.mxu0 %v1817
    %1918 = vmatprep.subr.mxu0 0.0
    %1919 = vmatpush1.msra.mxu0 %v1818
    %1920 = vmatprep.subr.mxu0 0.0
    %1921 = vmatpush1.msra.mxu0 %v1819
    %1922 = vmatprep.subr.mxu0 0.0
    %1923 = vmatpush1.msra.mxu0 %v1820
    %1924 = vmatprep.mubr.f32.mxu0 %v1786
    %1925 = vmatmul.mubr.f32.gmra.mrb[0].mxu0 %v1785
    %v1926 = vpop.f32.mrb[0].mxu0
    %v1927 = vadd.f32 %v1858, %v1926
    %v1928 = vpop.f32.mrb[0].mxu0
    %1929 = vdwg.mxu0
    %1930 = vmatprep.subr.mxu0 0.0
    %1931 = vmatpush1.msra.mxu0 %v1821
    %1932 = vmatprep.subr.mxu0 0.0
    %1933 = vmatpush1.msra.mxu0 %v1822
    %1934 = vmatprep.subr.mxu0 0.0
    %1935 = vmatpush1.msra.mxu0 %v1823
    %1936 = vmatprep.subr.mxu0 0.0
    %1937 = vmatpush1.msra.mxu0 %v1824
    %1938 = vmatprep.subr.mxu0 0.0
    %1939 = vmatpush1.msra.mxu0 %v1825
    %1940 = vmatprep.subr.mxu0 0.0
    %1941 = vmatpush1.msra.mxu0 %v1826
    %1942 = vmatprep.subr.mxu0 0.0
    %1943 = vmatpush1.msra.mxu0 %v1827
    %1944 = vmatprep.subr.mxu0 0.0
    %1945 = vmatpush1.msra.mxu0 %v1828
    %1946 = vmatprep.subr.mxu0 0.0
    %1947 = vmatpush1.msra.mxu0 %v1829
    %1948 = vmatprep.subr.mxu0 0.0
    %1949 = vmatpush1.msra.mxu0 %v1830
    %1950 = vmatprep.subr.mxu0 0.0
    %1951 = vmatpush1.msra.mxu0 %v1831
    %1952 = vmatprep.subr.mxu0 0.0
    %1953 = vmatpush1.msra.mxu0 %v1832
    %1954 = vmatprep.subr.mxu0 0.0
    %1955 = vmatpush1.msra.mxu0 %v1833
    %1956 = vmatprep.subr.mxu0 0.0
    %1957 = vmatpush1.msra.mxu0 %v1834
    %1958 = vmatprep.subr.mxu0 0.0
    %1959 = vmatpush1.msra.mxu0 %v1835
    %1960 = vmatprep.subr.mxu0 0.0
    %1961 = vmatpush1.msra.mxu0 %v1836
    %1962 = vmatprep.subr.mxu0 0.0
    %1963 = vmatpush1.msra.mxu0 %v1837
    %1964 = vmatprep.subr.mxu0 0.0
    %1965 = vmatpush1.msra.mxu0 %v1838
    %1966 = vmatprep.subr.mxu0 0.0
    %1967 = vmatpush1.msra.mxu0 %v1839
    %1968 = vmatprep.subr.mxu0 0.0
    %1969 = vmatpush1.msra.mxu0 %v1840
    %1970 = vmatprep.subr.mxu0 0.0
    %1971 = vmatpush1.msra.mxu0 %v1841
    %1972 = vmatprep.subr.mxu0 0.0
    %1973 = vmatpush1.msra.mxu0 %v1842
    %1974 = vmatprep.subr.mxu0 0.0
    %1975 = vmatpush1.msra.mxu0 %v1843
    %1976 = vmatprep.subr.mxu0 0.0
    %1977 = vmatpush1.msra.mxu0 %v1844
    %1978 = vmatprep.subr.mxu0 0.0
    %1979 = vmatpush1.msra.mxu0 %v1845
    %1980 = vmatprep.subr.mxu0 0.0
    %1981 = vmatpush1.msra.mxu0 %v1846
    %1982 = vmatprep.subr.mxu0 0.0
    %1983 = vmatpush1.msra.mxu0 %v1847
    %1984 = vmatprep.subr.mxu0 0.0
    %1985 = vmatpush1.msra.mxu0 %v1848
    %1986 = vmatprep.subr.mxu0 0.0
    %1987 = vmatpush1.msra.mxu0 %v1849
    %1988 = vmatprep.subr.mxu0 0.0
    %1989 = vmatpush1.msra.mxu0 %v1850
    %1990 = vmatprep.subr.mxu0 0.0
    %1991 = vmatpush1.msra.mxu0 %v1851
    %1992 = vmatprep.subr.mxu0 0.0
    %1993 = vmatpush1.msra.mxu0 %v1852
    %1994 = vmatprep.mubr.f32.mxu0 %v1788
    %1995 = vmatmul.mubr.f32.gmra.mrb[0].mxu0 %v1787
    %v1996 = vpop.f32.mrb[0].mxu0
    %v1997 = vadd.f32 %v1927, %v1996
    %v1998 = vpop.f32.mrb[0].mxu0
    %1999 = vdwg.mxu0
    %v2000 = vld [vmem:[%s1] sm:$0xff]
    %v2001 = vld [vmem:[%s7] sm:$0xf]
    %v2002 = vmul.f32 %v1997, 1.442695
    %v2003 = vpow.pop %v2002
    %2005 = vrot.lane.b32.xlu0 %v2000, 2
    %v2006 = vpop.permute.xlu0 %2005
    %v2008 = vmul.f32 %v2003, %v2006
    %2010 = vrot.lane.b32.xlu0 %v2008, 126
    %v2011 = vpop.permute.xlu0 %2010
    %v2013 = vadd.f32 %v1997, %v2011
    %v2014 = vld [vmem:[%s6] ss:$2 sm:$0xf]
    %2016 = vset.pattern.permute.xlu0 0
    %2017 = vperm.xlu0 %2016, %v2013
    %v2018 = vpop.permute.xlu0 %2017
    %v2021 = vlaneseq
    %v2022 = vshrl.u32 %v2021, 7
    %v2023 = vsub.s32 0, %v2022
    %v2024 = vrot.slane %v2014, %v2023
    %v2025 = vlaneseq
    %v2026 = vshrl.u32 %v2025, 7
    %v2027 = vsub.s32 1, %v2026
    %v2028 = vrot.slane %v2014, %v2027
    %v2029 = vlaneseq
    %v2030 = vshrl.u32 %v2029, 7
    %v2031 = vsub.s32 2, %v2030
    %v2032 = vrot.slane %v2014, %v2031
    %v2033 = vlaneseq
    %v2034 = vshrl.u32 %v2033, 7
    %v2035 = vsub.s32 3, %v2034
    %v2036 = vrot.slane %v2014, %v2035
    %v2041 = vmul.f32 %v2018, %v2024
    %v2042 = vmul.f32 %v2018, %v2028
    %v2043 = vmul.f32 %v2018, %v2032
    %v2044 = vmul.f32 %v2018, %v2036
    %v2046 = vlaneseq
    %v2047 = vshrl.u32 %v2046, 7
    %v2048 = vsub.s32 0, %v2047
    %v2049 = vrot.slane %v2001, %v2048
    %v2050 = vlaneseq
    %v2051 = vshrl.u32 %v2050, 7
    %v2052 = vsub.s32 1, %v2051
    %v2053 = vrot.slane %v2001, %v2052
    %v2054 = vlaneseq
    %v2055 = vshrl.u32 %v2054, 7
    %v2056 = vsub.s32 2, %v2055
    %v2057 = vrot.slane %v2001, %v2056
    %v2058 = vlaneseq
    %v2059 = vshrl.u32 %v2058, 7
    %v2060 = vsub.s32 3, %v2059
    %v2061 = vrot.slane %v2001, %v2060
    %v2066 = vadd.f32 %v2049, %v2041
    %v2067 = vadd.f32 %v2053, %v2042
    %v2068 = vadd.f32 %v2057, %v2043
    %v2069 = vadd.f32 %v2061, %v2044
    %s2070 = scalar_lea.vmem %s6, 1
    %v2071 = vld [vmem:[%s2070] ss:$2 sm:$0xf]
    %2072 = vset.pattern.permute.xlu0 1
    %2073 = vperm.xlu0 %2072, %v2013
    %v2074 = vpop.permute.xlu0 %2073
    %v2077 = vlaneseq
    %v2078 = vshrl.u32 %v2077, 7
    %v2079 = vsub.s32 0, %v2078
    %v2080 = vrot.slane %v2071, %v2079
    %v2081 = vlaneseq
    %v2082 = vshrl.u32 %v2081, 7
    %v2083 = vsub.s32 1, %v2082
    %v2084 = vrot.slane %v2071, %v2083
    %v2085 = vlaneseq
    %v2086 = vshrl.u32 %v2085, 7
    %v2087 = vsub.s32 2, %v2086
    %v2088 = vrot.slane %v2071, %v2087
    %v2089 = vlaneseq
    %v2090 = vshrl.u32 %v2089, 7
    %v2091 = vsub.s32 3, %v2090
    %v2092 = vrot.slane %v2071, %v2091
    %v2097 = vmul.f32 %v2074, %v2080
    %v2098 = vmul.f32 %v2074, %v2084
    %v2099 = vmul.f32 %v2074, %v2088
    %v2100 = vmul.f32 %v2074, %v2092
    %v2101 = vadd.f32 %v2066, %v2097
    %v2102 = vadd.f32 %v2067, %v2098
    %v2103 = vadd.f32 %v2068, %v2099
    %v2104 = vadd.f32 %v2069, %v2100
    %v2105 = vmax.f32 %v2101, 0.0
    %v2106 = vmax.f32 %v2102, 0.0
    %v2107 = vmax.f32 %v2103, 0.0
    %v2108 = vmax.f32 %v2104, 0.0
    %v2109 = vpack.c.bf16 %v2105, %v2105
    %v2110 = vpack.c.bf16 %v2106, %v2106
    %v2111 = vpack.c.bf16 %v2107, %v2107
    %v2112 = vpack.c.bf16 %v2108, %v2108
    %v2113 = vld [vmem:[#allocation6] sm:$0xff]
    %v2114 = vld [vmem:[#allocation6 + $0x8] sm:$0xff]
    %v2115 = vld [vmem:[#allocation6 + $0x10] sm:$0xff]
    %v2116 = vld [vmem:[#allocation6 + $0x18] sm:$0xf]
    %v2117 = vld [vmem:[#allocation6 + $0x1c] sm:$0xff]
    %v2118 = vld [vmem:[#allocation6 + $0x24] sm:$0xff]
    %v2119 = vld [vmem:[#allocation6 + $0x2c] sm:$0xff]
    %v2120 = vld [vmem:[#allocation6 + $0x34] sm:$0xf]
    %v2121 = vld [vmem:[#allocation6 + $0x38] sm:$0xff]
    %v2122 = vld [vmem:[#allocation6 + $0x40] sm:$0xff]
    %v2123 = vld [vmem:[#allocation6 + $0x48] sm:$0xff]
    %v2124 = vld [vmem:[#allocation6 + $0x50] sm:$0xf]
    %v2125 = vld [vmem:[#allocation6 + $0x54] sm:$0xff]
    %v2126 = vld [vmem:[#allocation6 + $0x5c] sm:$0xff]
    %v2127 = vld [vmem:[#allocation6 + $0x64] sm:$0xff]
    %v2128 = vld [vmem:[#allocation6 + $0x6c] sm:$0xf]
    %v2129 = vld [vmem:[#allocation6 + $0x70] sm:$0xff]
    %v2130 = vld [vmem:[#allocation6 + $0x78] sm:$0xff]
    %v2131 = vld [vmem:[#allocation6 + $0x80] sm:$0xff]
    %v2132 = vld [vmem:[#allocation6 + $0x88] sm:$0xf]
    %v2133 = vld [vmem:[#allocation6 + $0x8c] sm:$0xff]
    %v2134 = vld [vmem:[#allocation6 + $0x94] sm:$0xff]
    %v2135 = vld [vmem:[#allocation6 + $0x9c] sm:$0xff]
    %v2136 = vld [vmem:[#allocation6 + $0xa4] sm:$0xf]
    %v2137 = vld [vmem:[#allocation6 + $0xa8] sm:$0xff]
    %v2138 = vld [vmem:[#allocation6 + $0xb0] sm:$0xff]
    %v2139 = vld [vmem:[#allocation6 + $0xb8] sm:$0xff]
    %v2140 = vld [vmem:[#allocation6 + $0xc0] sm:$0xf]
    %v2141 = vld [vmem:[#allocation6 + $0xc4] sm:$0xff]
    %v2142 = vld [vmem:[#allocation6 + $0xcc] sm:$0xff]
    %v2143 = vld [vmem:[#allocation6 + $0xd4] sm:$0xff]
    %v2144 = vld [vmem:[#allocation6 + $0xdc] sm:$0xf]
    %v2145 = vld [vmem:[#allocation6 + $0xe0] sm:$0xff]
    %v2146 = vld [vmem:[#allocation6 + $0xe8] sm:$0xff]
    %v2147 = vld [vmem:[#allocation6 + $0xf0] sm:$0xff]
    %v2148 = vld [vmem:[#allocation6 + $0xf8] sm:$0xf]
    %v2149 = vld [vmem:[#allocation6 + $0xfc] sm:$0xff]
    %v2150 = vld [vmem:[#allocation6 + $0x104] sm:$0xff]
    %v2151 = vld [vmem:[#allocation6 + $0x10c] sm:$0xff]
    %v2152 = vld [vmem:[#allocation6 + $0x114] sm:$0xf]
    %v2153 = vld [vmem:[#allocation6 + $0x118] sm:$0xff]
    %v2154 = vld [vmem:[#allocation6 + $0x120] sm:$0xff]
    %v2155 = vld [vmem:[#allocation6 + $0x128] sm:$0xff]
    %v2156 = vld [vmem:[#allocation6 + $0x130] sm:$0xf]
    %v2157 = vld [vmem:[#allocation6 + $0x134] sm:$0xff]
    %v2158 = vld [vmem:[#allocation6 + $0x13c] sm:$0xff]
    %v2159 = vld [vmem:[#allocation6 + $0x144] sm:$0xff]
    %v2160 = vld [vmem:[#allocation6 + $0x14c] sm:$0xf]
    %v2161 = vld [vmem:[#allocation6 + $0x150] sm:$0xff]
    %v2162 = vld [vmem:[#allocation6 + $0x158] sm:$0xff]
    %v2163 = vld [vmem:[#allocation6 + $0x160] sm:$0xff]
    %v2164 = vld [vmem:[#allocation6 + $0x168] sm:$0xf]
    %v2165 = vld [vmem:[#allocation6 + $0x16c] sm:$0xff]
    %v2166 = vld [vmem:[#allocation6 + $0x174] sm:$0xff]
    %v2167 = vld [vmem:[#allocation6 + $0x17c] sm:$0xff]
    %v2168 = vld [vmem:[#allocation6 + $0x184] sm:$0xf]
    %v2169 = vld [vmem:[#allocation6 + $0x188] sm:$0xff]
    %v2170 = vld [vmem:[#allocation6 + $0x190] sm:$0xff]
    %v2171 = vld [vmem:[#allocation6 + $0x198] sm:$0xff]
    %v2172 = vld [vmem:[#allocation6 + $0x1a0] sm:$0xf]
    %v2173 = vld [vmem:[#allocation6 + $0x1a4] sm:$0xff]
    %v2174 = vld [vmem:[#allocation6 + $0x1ac] sm:$0xff]
    %v2175 = vld [vmem:[#allocation6 + $0x1b4] sm:$0xff]
    %v2176 = vld [vmem:[#allocation6 + $0x1bc] sm:$0xf]
    %v2177 = vld [vmem:[#allocation6 + $0x1c0] sm:$0xff]
    %v2178 = vld [vmem:[#allocation6 + $0x1c8] sm:$0xff]
    %v2179 = vld [vmem:[#allocation6 + $0x1d0] sm:$0xff]
    %v2180 = vld [vmem:[#allocation6 + $0x1d8] sm:$0xf]
    %v2181 = vld [vmem:[#allocation6 + $0x1dc] sm:$0xff]
    %v2182 = vld [vmem:[#allocation6 + $0x1e4] sm:$0xff]
    %v2183 = vld [vmem:[#allocation6 + $0x1ec] sm:$0xff]
    %v2184 = vld [vmem:[#allocation6 + $0x1f4] sm:$0xf]
    %v2185 = vld [vmem:[#allocation6 + $0x1f8] sm:$0xff]
    %v2186 = vld [vmem:[#allocation6 + $0x200] sm:$0xff]
    %v2187 = vld [vmem:[#allocation6 + $0x208] sm:$0xff]
    %v2188 = vld [vmem:[#allocation6 + $0x210] sm:$0xf]
    %v2189 = vld [vmem:[#allocation6 + $0x214] sm:$0xff]
    %v2190 = vld [vmem:[#allocation6 + $0x21c] sm:$0xff]
    %v2191 = vld [vmem:[#allocation6 + $0x224] sm:$0xff]
    %v2192 = vld [vmem:[#allocation6 + $0x22c] sm:$0xf]
    %v2193 = vld [vmem:[#allocation6 + $0x230] sm:$0xff]
    %v2194 = vld [vmem:[#allocation6 + $0x238] sm:$0xff]
    %v2195 = vld [vmem:[#allocation6 + $0x240] sm:$0xff]
    %v2196 = vld [vmem:[#allocation6 + $0x248] sm:$0xf]
    %v2197 = vld [vmem:[#allocation6 + $0x24c] sm:$0xff]
    %v2198 = vld [vmem:[#allocation6 + $0x254] sm:$0xff]
    %v2199 = vld [vmem:[#allocation6 + $0x25c] sm:$0xff]
    %v2200 = vld [vmem:[#allocation6 + $0x264] sm:$0xf]
    %v2201 = vld [vmem:[#allocation6 + $0x268] sm:$0xff]
    %v2202 = vld [vmem:[#allocation6 + $0x270] sm:$0xff]
    %v2203 = vld [vmem:[#allocation6 + $0x278] sm:$0xff]
    %v2204 = vld [vmem:[#allocation6 + $0x280] sm:$0xf]
    %v2205 = vld [vmem:[#allocation6 + $0x284] sm:$0xff]
    %v2206 = vld [vmem:[#allocation6 + $0x28c] sm:$0xff]
    %v2207 = vld [vmem:[#allocation6 + $0x294] sm:$0xff]
    %v2208 = vld [vmem:[#allocation6 + $0x29c] sm:$0xf]
    %v2209 = vld [vmem:[#allocation6 + $0x2a0] sm:$0xff]
    %v2210 = vld [vmem:[#allocation6 + $0x2a8] sm:$0xff]
    %v2211 = vld [vmem:[#allocation6 + $0x2b0] sm:$0xff]
    %v2212 = vld [vmem:[#allocation6 + $0x2b8] sm:$0xf]
    %v2213 = vld [vmem:[#allocation6 + $0x2bc] sm:$0xff]
    %v2214 = vld [vmem:[#allocation6 + $0x2c4] sm:$0xff]
    %v2215 = vld [vmem:[#allocation6 + $0x2cc] sm:$0xff]
    %v2216 = vld [vmem:[#allocation6 + $0x2d4] sm:$0xf]
    %v2217 = vld [vmem:[#allocation6 + $0x2d8] sm:$0xff]
    %v2218 = vld [vmem:[#allocation6 + $0x2e0] sm:$0xff]
    %v2219 = vld [vmem:[#allocation6 + $0x2e8] sm:$0xff]
    %v2220 = vld [vmem:[#allocation6 + $0x2f0] sm:$0xf]
    %v2221 = vld [vmem:[#allocation6 + $0x2f4] sm:$0xff]
    %v2222 = vld [vmem:[#allocation6 + $0x2fc] sm:$0xff]
    %v2223 = vld [vmem:[#allocation6 + $0x304] sm:$0xff]
    %v2224 = vld [vmem:[#allocation6 + $0x30c] sm:$0xf]
    %v2225 = vld [vmem:[#allocation6 + $0x310] sm:$0xff]
    %v2226 = vld [vmem:[#allocation6 + $0x318] sm:$0xff]
    %v2227 = vld [vmem:[#allocation6 + $0x320] sm:$0xff]
    %v2228 = vld [vmem:[#allocation6 + $0x328] sm:$0xf]
    %v2229 = vld [vmem:[#allocation6 + $0x32c] sm:$0xff]
    %v2230 = vld [vmem:[#allocation6 + $0x334] sm:$0xff]
    %v2231 = vld [vmem:[#allocation6 + $0x33c] sm:$0xff]
    %v2232 = vld [vmem:[#allocation6 + $0x344] sm:$0xf]
    %v2233 = vld [vmem:[#allocation6 + $0x348] sm:$0xff]
    %v2234 = vld [vmem:[#allocation6 + $0x350] sm:$0xff]
    %v2235 = vld [vmem:[#allocation6 + $0x358] sm:$0xff]
    %v2236 = vld [vmem:[#allocation6 + $0x360] sm:$0xf]
    %v2237 = vld [vmem:[#allocation6 + $0x364] sm:$0xff]
    %v2238 = vld [vmem:[#allocation6 + $0x36c] sm:$0xff]
    %v2239 = vld [vmem:[#allocation6 + $0x374] sm:$0xff]
    %v2240 = vld [vmem:[#allocation6 + $0x37c] sm:$0xf]
    %v2241 = vld [vmem:[#allocation6 + $0x380] sm:$0xff]
    %v2242 = vld [vmem:[#allocation6 + $0x388] sm:$0xff]
    %v2243 = vld [vmem:[#allocation6 + $0x390] sm:$0xff]
    %v2244 = vld [vmem:[#allocation6 + $0x398] sm:$0xf]
    %v2245 = vld [vmem:[#allocation6 + $0x39c] sm:$0xff]
    %v2246 = vld [vmem:[#allocation6 + $0x3a4] sm:$0xff]
    %v2247 = vld [vmem:[#allocation6 + $0x3ac] sm:$0xff]
    %v2248 = vld [vmem:[#allocation6 + $0x3b4] sm:$0xf]
    %v2249 = vld [vmem:[#allocation6 + $0x3b8] sm:$0xff]
    %v2250 = vld [vmem:[#allocation6 + $0x3c0] sm:$0xff]
    %v2251 = vld [vmem:[#allocation6 + $0x3c8] sm:$0xff]
    %v2252 = vld [vmem:[#allocation6 + $0x3d0] sm:$0xf]
    %v2253 = vld [vmem:[#allocation6 + $0x3d4] sm:$0xff]
    %v2254 = vld [vmem:[#allocation6 + $0x3dc] sm:$0xff]
    %v2255 = vld [vmem:[#allocation6 + $0x3e4] sm:$0xff]
    %v2256 = vld [vmem:[#allocation6 + $0x3ec] sm:$0xf]
    %v2257 = vld [vmem:[#allocation6 + $0x3f0] sm:$0xff]
    %v2258 = vld [vmem:[#allocation6 + $0x3f8] sm:$0xff]
    %v2259 = vld [vmem:[#allocation6 + $0x400] sm:$0xff]
    %v2260 = vld [vmem:[#allocation6 + $0x408] sm:$0xf]
    %v2261 = vld [vmem:[#allocation6 + $0x40c] sm:$0xff]
    %v2262 = vld [vmem:[#allocation6 + $0x414] sm:$0xff]
    %v2263 = vld [vmem:[#allocation6 + $0x41c] sm:$0xff]
    %v2264 = vld [vmem:[#allocation6 + $0x424] sm:$0xf]
    %v2265 = vld [vmem:[#allocation6 + $0x428] sm:$0xff]
    %v2266 = vld [vmem:[#allocation6 + $0x430] sm:$0xff]
    %v2267 = vld [vmem:[#allocation6 + $0x438] sm:$0xff]
    %v2268 = vld [vmem:[#allocation6 + $0x440] sm:$0xf]
    %v2269 = vld [vmem:[#allocation6 + $0x444] sm:$0xff]
    %v2270 = vld [vmem:[#allocation6 + $0x44c] sm:$0xff]
    %v2271 = vld [vmem:[#allocation6 + $0x454] sm:$0xff]
    %v2272 = vld [vmem:[#allocation6 + $0x45c] sm:$0xf]
    %v2273 = vld [vmem:[#allocation6 + $0x460] sm:$0xff]
    %v2274 = vld [vmem:[#allocation6 + $0x468] sm:$0xff]
    %v2275 = vld [vmem:[#allocation6 + $0x470] sm:$0xff]
    %v2276 = vld [vmem:[#allocation6 + $0x478] sm:$0xf]
    %v2277 = vld [vmem:[#allocation6 + $0x47c] sm:$0xff]
    %v2278 = vld [vmem:[#allocation6 + $0x484] sm:$0xff]
    %v2279 = vld [vmem:[#allocation6 + $0x48c] sm:$0xff]
    %v2280 = vld [vmem:[#allocation6 + $0x494] sm:$0xf]
    %v2281 = vld [vmem:[#allocation6 + $0x498] sm:$0xff]
    %v2282 = vld [vmem:[#allocation6 + $0x4a0] sm:$0xff]
    %v2283 = vld [vmem:[#allocation6 + $0x4a8] sm:$0xff]
    %v2284 = vld [vmem:[#allocation6 + $0x4b0] sm:$0xf]
    %v2285 = vld [vmem:[#allocation6 + $0x4b4] sm:$0xff]
    %v2286 = vld [vmem:[#allocation6 + $0x4bc] sm:$0xff]
    %v2287 = vld [vmem:[#allocation6 + $0x4c4] sm:$0xff]
    %v2288 = vld [vmem:[#allocation6 + $0x4cc] sm:$0xf]
    %v2289 = vld [vmem:[#allocation6 + $0x4d0] sm:$0xff]
    %v2290 = vld [vmem:[#allocation6 + $0x4d8] sm:$0xff]
    %v2291 = vld [vmem:[#allocation6 + $0x4e0] sm:$0xff]
    %v2292 = vld [vmem:[#allocation6 + $0x4e8] sm:$0xf]
    %v2293 = vld [vmem:[#allocation6 + $0x4ec] sm:$0xff]
    %v2294 = vld [vmem:[#allocation6 + $0x4f4] sm:$0xff]
    %v2295 = vld [vmem:[#allocation6 + $0x4fc] sm:$0xff]
    %v2296 = vld [vmem:[#allocation6 + $0x504] sm:$0xf]
    %v2297 = vld [vmem:[#allocation6 + $0x508] sm:$0xff]
    %v2298 = vld [vmem:[#allocation6 + $0x510] sm:$0xff]
    %v2299 = vld [vmem:[#allocation6 + $0x518] sm:$0xff]
    %v2300 = vld [vmem:[#allocation6 + $0x520] sm:$0xf]
    %v2301 = vld [vmem:[#allocation6 + $0x524] sm:$0xff]
    %v2302 = vld [vmem:[#allocation6 + $0x52c] sm:$0xff]
    %v2303 = vld [vmem:[#allocation6 + $0x534] sm:$0xff]
    %v2304 = vld [vmem:[#allocation6 + $0x53c] sm:$0xf]
    %v2305 = vld [vmem:[#allocation6 + $0x540] sm:$0xff]
    %v2306 = vld [vmem:[#allocation6 + $0x548] sm:$0xff]
    %v2307 = vld [vmem:[#allocation6 + $0x550] sm:$0xff]
    %v2308 = vld [vmem:[#allocation6 + $0x558] sm:$0xf]
    %v2309 = vld [vmem:[#allocation6 + $0x55c] sm:$0xff]
    %v2310 = vld [vmem:[#allocation6 + $0x564] sm:$0xff]
    %v2311 = vld [vmem:[#allocation6 + $0x56c] sm:$0xff]
    %v2312 = vld [vmem:[#allocation6 + $0x574] sm:$0xf]
    %v2313 = vld [vmem:[#allocation6 + $0x578] sm:$0xff]
    %v2314 = vld [vmem:[#allocation6 + $0x580] sm:$0xff]
    %v2315 = vld [vmem:[#allocation6 + $0x588] sm:$0xff]
    %v2316 = vld [vmem:[#allocation6 + $0x590] sm:$0xf]
    %v2317 = vld [vmem:[#allocation6 + $0x594] sm:$0xff]
    %v2318 = vld [vmem:[#allocation6 + $0x59c] sm:$0xff]
    %v2319 = vld [vmem:[#allocation6 + $0x5a4] sm:$0xff]
    %v2320 = vld [vmem:[#allocation6 + $0x5ac] sm:$0xf]
    %v2321 = vld [vmem:[#allocation6 + $0x5b0] sm:$0xff]
    %v2322 = vld [vmem:[#allocation6 + $0x5b8] sm:$0xff]
    %v2323 = vld [vmem:[#allocation6 + $0x5c0] sm:$0xff]
    %v2324 = vld [vmem:[#allocation6 + $0x5c8] sm:$0xf]
    %v2325 = vld [vmem:[#allocation6 + $0x5cc] sm:$0xff]
    %v2326 = vld [vmem:[#allocation6 + $0x5d4] sm:$0xff]
    %v2327 = vld [vmem:[#allocation6 + $0x5dc] sm:$0xff]
    %v2328 = vld [vmem:[#allocation6 + $0x5e4] sm:$0xf]
    %v2329 = vld [vmem:[#allocation6 + $0x5e8] sm:$0xff]
    %v2330 = vld [vmem:[#allocation6 + $0x5f0] sm:$0xff]
    %v2331 = vld [vmem:[#allocation6 + $0x5f8] sm:$0xff]
    %v2332 = vld [vmem:[#allocation6 + $0x600] sm:$0xf]
    %v2333 = vld [vmem:[#allocation6 + $0x604] sm:$0xff]
    %v2334 = vld [vmem:[#allocation6 + $0x60c] sm:$0xff]
    %v2335 = vld [vmem:[#allocation6 + $0x614] sm:$0xff]
    %v2336 = vld [vmem:[#allocation6 + $0x61c] sm:$0xf]
    %v2337 = vld [vmem:[#allocation6 + $0x620] sm:$0xff]
    %v2338 = vld [vmem:[#allocation6 + $0x628] sm:$0xff]
    %v2339 = vld [vmem:[#allocation6 + $0x630] sm:$0xff]
    %v2340 = vld [vmem:[#allocation6 + $0x638] sm:$0xf]
    %v2341 = vld [vmem:[#allocation6 + $0x63c] sm:$0xff]
    %v2342 = vld [vmem:[#allocation6 + $0x644] sm:$0xff]
    %v2343 = vld [vmem:[#allocation6 + $0x64c] sm:$0xff]
    %v2344 = vld [vmem:[#allocation6 + $0x654] sm:$0xf]
    %v2345 = vld [vmem:[#allocation6 + $0x658] sm:$0xff]
    %v2346 = vld [vmem:[#allocation6 + $0x660] sm:$0xff]
    %v2347 = vld [vmem:[#allocation6 + $0x668] sm:$0xff]
    %v2348 = vld [vmem:[#allocation6 + $0x670] sm:$0xf]
    %v2349 = vld [vmem:[#allocation6 + $0x674] sm:$0xff]
    %v2350 = vld [vmem:[#allocation6 + $0x67c] sm:$0xff]
    %v2351 = vld [vmem:[#allocation6 + $0x684] sm:$0xff]
    %v2352 = vld [vmem:[#allocation6 + $0x68c] sm:$0xf]
    %v2353 = vld [vmem:[#allocation6 + $0x690] sm:$0xff]
    %v2354 = vld [vmem:[#allocation6 + $0x698] sm:$0xff]
    %v2355 = vld [vmem:[#allocation6 + $0x6a0] sm:$0xff]
    %v2356 = vld [vmem:[#allocation6 + $0x6a8] sm:$0xf]
    %v2357 = vld [vmem:[#allocation6 + $0x6ac] sm:$0xff]
    %v2358 = vld [vmem:[#allocation6 + $0x6b4] sm:$0xff]
    %v2359 = vld [vmem:[#allocation6 + $0x6bc] sm:$0xff]
    %v2360 = vld [vmem:[#allocation6 + $0x6c4] sm:$0xf]
    %v2361 = vld [vmem:[#allocation6 + $0x6c8] sm:$0xff]
    %v2362 = vld [vmem:[#allocation6 + $0x6d0] sm:$0xff]
    %v2363 = vld [vmem:[#allocation6 + $0x6d8] sm:$0xff]
    %v2364 = vld [vmem:[#allocation6 + $0x6e0] sm:$0xf]
    %v2365 = vld [vmem:[#allocation6 + $0x6e4] sm:$0xff]
    %v2366 = vld [vmem:[#allocation6 + $0x6ec] sm:$0xff]
    %v2367 = vld [vmem:[#allocation6 + $0x6f4] sm:$0xff]
    %v2368 = vld [vmem:[#allocation6 + $0x6fc] sm:$0xf]
    %v2369 = vld [vmem:[%s9] sm:$0xff]
    %v2371 = vlaneseq
    %v2372 = vshrl.u32 %v2371, 7
    %v2373 = vsub.s32 0, %v2372
    %v2374 = vrot.slane %v2369, %v2373
    %v2375 = vlaneseq
    %v2376 = vshrl.u32 %v2375, 7
    %v2377 = vsub.s32 1, %v2376
    %v2378 = vrot.slane %v2369, %v2377
    %v2379 = vlaneseq
    %v2380 = vshrl.u32 %v2379, 7
    %v2381 = vsub.s32 2, %v2380
    %v2382 = vrot.slane %v2369, %v2381
    %v2383 = vlaneseq
    %v2384 = vshrl.u32 %v2383, 7
    %v2385 = vsub.s32 3, %v2384
    %v2386 = vrot.slane %v2369, %v2385
    %v2387 = vlaneseq
    %v2388 = vshrl.u32 %v2387, 7
    %v2389 = vsub.s32 4, %v2388
    %v2390 = vrot.slane %v2369, %v2389
    %v2391 = vlaneseq
    %v2392 = vshrl.u32 %v2391, 7
    %v2393 = vsub.s32 5, %v2392
    %v2394 = vrot.slane %v2369, %v2393
    %v2395 = vlaneseq
    %v2396 = vshrl.u32 %v2395, 7
    %v2397 = vsub.s32 6, %v2396
    %v2398 = vrot.slane %v2369, %v2397
    %v2662 = vunpack.c.l.b16 %v2113
    %v2663 = vunpack.c.h.b16 %v2113
    %v2664 = vunpack.c.l.b16 %v2114
    %v2665 = vunpack.c.h.b16 %v2114
    %v2666 = vunpack.c.l.b16 %v2115
    %v2667 = vunpack.c.h.b16 %v2115
    %v2668 = vunpack.c.l.b16 %v2116
    %v2669 = vunpack.c.l.b16 %v2117
    %v2670 = vunpack.c.h.b16 %v2117
    %v2671 = vunpack.c.l.b16 %v2118
    %v2672 = vunpack.c.h.b16 %v2118
    %v2673 = vunpack.c.l.b16 %v2119
    %v2674 = vunpack.c.h.b16 %v2119
    %v2675 = vunpack.c.l.b16 %v2120
    %v2676 = vunpack.c.l.b16 %v2121
    %v2677 = vunpack.c.h.b16 %v2121
    %v2678 = vunpack.c.l.b16 %v2122
    %v2679 = vunpack.c.h.b16 %v2122
    %v2680 = vunpack.c.l.b16 %v2123
    %v2681 = vunpack.c.h.b16 %v2123
    %v2682 = vunpack.c.l.b16 %v2124
    %v2683 = vunpack.c.l.b16 %v2125
    %v2684 = vunpack.c.h.b16 %v2125
    %v2685 = vunpack.c.l.b16 %v2126
    %v2686 = vunpack.c.h.b16 %v2126
    %v2687 = vunpack.c.l.b16 %v2127
    %v2688 = vunpack.c.h.b16 %v2127
    %v2689 = vunpack.c.l.b16 %v2128
    %v2690 = vunpack.c.l.b16 %v2129
    %v2691 = vunpack.c.h.b16 %v2129
    %v2692 = vunpack.c.l.b16 %v2130
    %v2693 = vunpack.c.h.b16 %v2130
    %v2694 = vunpack.c.l.b16 %v2131
    %v2695 = vunpack.c.h.b16 %v2131
    %v2696 = vunpack.c.l.b16 %v2132
    %v2697 = vunpack.c.l.b16 %v2133
    %v2698 = vunpack.c.h.b16 %v2133
    %v2699 = vunpack.c.l.b16 %v2134
    %v2700 = vunpack.c.h.b16 %v2134
    %v2701 = vunpack.c.l.b16 %v2135
    %v2702 = vunpack.c.h.b16 %v2135
    %v2703 = vunpack.c.l.b16 %v2136
    %v2704 = vunpack.c.l.b16 %v2137
    %v2705 = vunpack.c.h.b16 %v2137
    %v2706 = vunpack.c.l.b16 %v2138
    %v2707 = vunpack.c.h.b16 %v2138
    %v2708 = vunpack.c.l.b16 %v2139
    %v2709 = vunpack.c.h.b16 %v2139
    %v2710 = vunpack.c.l.b16 %v2140
    %v2711 = vunpack.c.l.b16 %v2141
    %v2712 = vunpack.c.h.b16 %v2141
    %v2713 = vunpack.c.l.b16 %v2142
    %v2714 = vunpack.c.h.b16 %v2142
    %v2715 = vunpack.c.l.b16 %v2143
    %v2716 = vunpack.c.h.b16 %v2143
    %v2717 = vunpack.c.l.b16 %v2144
    %v2718 = vunpack.c.l.b16 %v2145
    %v2719 = vunpack.c.h.b16 %v2145
    %v2720 = vunpack.c.l.b16 %v2146
    %v2721 = vunpack.c.h.b16 %v2146
    %v2722 = vunpack.c.l.b16 %v2147
    %v2723 = vunpack.c.h.b16 %v2147
    %v2724 = vunpack.c.l.b16 %v2148
    %v2725 = vunpack.c.l.b16 %v2149
    %v2726 = vunpack.c.h.b16 %v2149
    %v2727 = vunpack.c.l.b16 %v2150
    %v2728 = vunpack.c.h.b16 %v2150
    %v2729 = vunpack.c.l.b16 %v2151
    %v2730 = vunpack.c.h.b16 %v2151
    %v2731 = vunpack.c.l.b16 %v2152
    %v2732 = vunpack.c.l.b16 %v2153
    %v2733 = vunpack.c.h.b16 %v2153
    %v2734 = vunpack.c.l.b16 %v2154
    %v2735 = vunpack.c.h.b16 %v2154
    %v2736 = vunpack.c.l.b16 %v2155
    %v2737 = vunpack.c.h.b16 %v2155
    %v2738 = vunpack.c.l.b16 %v2156
    %v2739 = vunpack.c.l.b16 %v2157
    %v2740 = vunpack.c.h.b16 %v2157
    %v2741 = vunpack.c.l.b16 %v2158
    %v2742 = vunpack.c.h.b16 %v2158
    %v2743 = vunpack.c.l.b16 %v2159
    %v2744 = vunpack.c.h.b16 %v2159
    %v2745 = vunpack.c.l.b16 %v2160
    %v2746 = vunpack.c.l.b16 %v2161
    %v2747 = vunpack.c.h.b16 %v2161
    %v2748 = vunpack.c.l.b16 %v2162
    %v2749 = vunpack.c.h.b16 %v2162
    %v2750 = vunpack.c.l.b16 %v2163
    %v2751 = vunpack.c.h.b16 %v2163
    %v2752 = vunpack.c.l.b16 %v2164
    %v2753 = vunpack.c.l.b16 %v2165
    %v2754 = vunpack.c.h.b16 %v2165
    %v2755 = vunpack.c.l.b16 %v2166
    %v2756 = vunpack.c.h.b16 %v2166
    %v2757 = vunpack.c.l.b16 %v2167
    %v2758 = vunpack.c.h.b16 %v2167
    %v2759 = vunpack.c.l.b16 %v2168
    %v2760 = vunpack.c.l.b16 %v2169
    %v2761 = vunpack.c.h.b16 %v2169
    %v2762 = vunpack.c.l.b16 %v2170
    %v2763 = vunpack.c.h.b16 %v2170
    %v2764 = vunpack.c.l.b16 %v2171
    %v2765 = vunpack.c.h.b16 %v2171
    %v2766 = vunpack.c.l.b16 %v2172
    %v2767 = vunpack.c.l.b16 %v2173
    %v2768 = vunpack.c.h.b16 %v2173
    %v2769 = vunpack.c.l.b16 %v2174
    %v2770 = vunpack.c.h.b16 %v2174
    %v2771 = vunpack.c.l.b16 %v2175
    %v2772 = vunpack.c.h.b16 %v2175
    %v2773 = vunpack.c.l.b16 %v2176
    %v2774 = vunpack.c.l.b16 %v2177
    %v2775 = vunpack.c.h.b16 %v2177
    %v2776 = vunpack.c.l.b16 %v2178
    %v2777 = vunpack.c.h.b16 %v2178
    %v2778 = vunpack.c.l.b16 %v2179
    %v2779 = vunpack.c.h.b16 %v2179
    %v2780 = vunpack.c.l.b16 %v2180
    %v2781 = vunpack.c.l.b16 %v2181
    %v2782 = vunpack.c.h.b16 %v2181
    %v2783 = vunpack.c.l.b16 %v2182
    %v2784 = vunpack.c.h.b16 %v2182
    %v2785 = vunpack.c.l.b16 %v2183
    %v2786 = vunpack.c.h.b16 %v2183
    %v2787 = vunpack.c.l.b16 %v2184
    %v2788 = vunpack.c.l.b16 %v2185
    %v2789 = vunpack.c.h.b16 %v2185
    %v2790 = vunpack.c.l.b16 %v2186
    %v2791 = vunpack.c.h.b16 %v2186
    %v2792 = vunpack.c.l.b16 %v2187
    %v2793 = vunpack.c.h.b16 %v2187
    %v2794 = vunpack.c.l.b16 %v2188
    %v2795 = vunpack.c.l.b16 %v2189
    %v2796 = vunpack.c.h.b16 %v2189
    %v2797 = vunpack.c.l.b16 %v2190
    %v2798 = vunpack.c.h.b16 %v2190
    %v2799 = vunpack.c.l.b16 %v2191
    %v2800 = vunpack.c.h.b16 %v2191
    %v2801 = vunpack.c.l.b16 %v2192
    %v2802 = vunpack.c.l.b16 %v2193
    %v2803 = vunpack.c.h.b16 %v2193
    %v2804 = vunpack.c.l.b16 %v2194
    %v2805 = vunpack.c.h.b16 %v2194
    %v2806 = vunpack.c.l.b16 %v2195
    %v2807 = vunpack.c.h.b16 %v2195
    %v2808 = vunpack.c.l.b16 %v2196
    %v2809 = vunpack.c.l.b16 %v2197
    %v2810 = vunpack.c.h.b16 %v2197
    %v2811 = vunpack.c.l.b16 %v2198
    %v2812 = vunpack.c.h.b16 %v2198
    %v2813 = vunpack.c.l.b16 %v2199
    %v2814 = vunpack.c.h.b16 %v2199
    %v2815 = vunpack.c.l.b16 %v2200
    %v2816 = vunpack.c.l.b16 %v2201
    %v2817 = vunpack.c.h.b16 %v2201
    %v2818 = vunpack.c.l.b16 %v2202
    %v2819 = vunpack.c.h.b16 %v2202
    %v2820 = vunpack.c.l.b16 %v2203
    %v2821 = vunpack.c.h.b16 %v2203
    %v2822 = vunpack.c.l.b16 %v2204
    %v2823 = vunpack.c.l.b16 %v2205
    %v2824 = vunpack.c.h.b16 %v2205
    %v2825 = vunpack.c.l.b16 %v2206
    %v2826 = vunpack.c.h.b16 %v2206
    %v2827 = vunpack.c.l.b16 %v2207
    %v2828 = vunpack.c.h.b16 %v2207
    %v2829 = vunpack.c.l.b16 %v2208
    %v2830 = vunpack.c.l.b16 %v2209
    %v2831 = vunpack.c.h.b16 %v2209
    %v2832 = vunpack.c.l.b16 %v2210
    %v2833 = vunpack.c.h.b16 %v2210
    %v2834 = vunpack.c.l.b16 %v2211
    %v2835 = vunpack.c.h.b16 %v2211
    %v2836 = vunpack.c.l.b16 %v2212
    %v2837 = vunpack.c.l.b16 %v2213
    %v2838 = vunpack.c.h.b16 %v2213
    %v2839 = vunpack.c.l.b16 %v2214
    %v2840 = vunpack.c.h.b16 %v2214
    %v2841 = vunpack.c.l.b16 %v2215
    %v2842 = vunpack.c.h.b16 %v2215
    %v2843 = vunpack.c.l.b16 %v2216
    %v2844 = vunpack.c.l.b16 %v2217
    %v2845 = vunpack.c.h.b16 %v2217
    %v2846 = vunpack.c.l.b16 %v2218
    %v2847 = vunpack.c.h.b16 %v2218
    %v2848 = vunpack.c.l.b16 %v2219
    %v2849 = vunpack.c.h.b16 %v2219
    %v2850 = vunpack.c.l.b16 %v2220
    %v2851 = vunpack.c.l.b16 %v2221
    %v2852 = vunpack.c.h.b16 %v2221
    %v2853 = vunpack.c.l.b16 %v2222
    %v2854 = vunpack.c.h.b16 %v2222
    %v2855 = vunpack.c.l.b16 %v2223
    %v2856 = vunpack.c.h.b16 %v2223
    %v2857 = vunpack.c.l.b16 %v2224
    %v2858 = vunpack.c.l.b16 %v2225
    %v2859 = vunpack.c.h.b16 %v2225
    %v2860 = vunpack.c.l.b16 %v2226
    %v2861 = vunpack.c.h.b16 %v2226
    %v2862 = vunpack.c.l.b16 %v2227
    %v2863 = vunpack.c.h.b16 %v2227
    %v2864 = vunpack.c.l.b16 %v2228
    %v2865 = vunpack.c.l.b16 %v2229
    %v2866 = vunpack.c.h.b16 %v2229
    %v2867 = vunpack.c.l.b16 %v2230
    %v2868 = vunpack.c.h.b16 %v2230
    %v2869 = vunpack.c.l.b16 %v2231
    %v2870 = vunpack.c.h.b16 %v2231
    %v2871 = vunpack.c.l.b16 %v2232
    %v2872 = vunpack.c.l.b16 %v2233
    %v2873 = vunpack.c.h.b16 %v2233
    %v2874 = vunpack.c.l.b16 %v2234
    %v2875 = vunpack.c.h.b16 %v2234
    %v2876 = vunpack.c.l.b16 %v2235
    %v2877 = vunpack.c.h.b16 %v2235
    %v2878 = vunpack.c.l.b16 %v2236
    %v2879 = vunpack.c.l.b16 %v2237
    %v2880 = vunpack.c.h.b16 %v2237
    %v2881 = vunpack.c.l.b16 %v2238
    %v2882 = vunpack.c.h.b16 %v2238
    %v2883 = vunpack.c.l.b16 %v2239
    %v2884 = vunpack.c.h.b16 %v2239
    %v2885 = vunpack.c.l.b16 %v2240
    %v2886 = vunpack.c.l.b16 %v2241
    %v2887 = vunpack.c.h.b16 %v2241
    %v2888 = vunpack.c.l.b16 %v2242
    %v2889 = vunpack.c.h.b16 %v2242
    %v2890 = vunpack.c.l.b16 %v2243
    %v2891 = vunpack.c.h.b16 %v2243
    %v2892 = vunpack.c.l.b16 %v2244
    %v2893 = vunpack.c.l.b16 %v2245
    %v2894 = vunpack.c.h.b16 %v2245
    %v2895 = vunpack.c.l.b16 %v2246
    %v2896 = vunpack.c.h.b16 %v2246
    %v2897 = vunpack.c.l.b16 %v2247
    %v2898 = vunpack.c.h.b16 %v2247
    %v2899 = vunpack.c.l.b16 %v2248
    %v2900 = vunpack.c.l.b16 %v2249
    %v2901 = vunpack.c.h.b16 %v2249
    %v2902 = vunpack.c.l.b16 %v2250
    %v2903 = vunpack.c.h.b16 %v2250
    %v2904 = vunpack.c.l.b16 %v2251
    %v2905 = vunpack.c.h.b16 %v2251
    %v2906 = vunpack.c.l.b16 %v2252
    %v2907 = vunpack.c.l.b16 %v2253
    %v2908 = vunpack.c.h.b16 %v2253
    %v2909 = vunpack.c.l.b16 %v2254
    %v2910 = vunpack.c.h.b16 %v2254
    %v2911 = vunpack.c.l.b16 %v2255
    %v2912 = vunpack.c.h.b16 %v2255
    %v2913 = vunpack.c.l.b16 %v2256
    %v2914 = vunpack.c.l.b16 %v2257
    %v2915 = vunpack.c.h.b16 %v2257
    %v2916 = vunpack.c.l.b16 %v2258
    %v2917 = vunpack.c.h.b16 %v2258
    %v2918 = vunpack.c.l.b16 %v2259
    %v2919 = vunpack.c.h.b16 %v2259
    %v2920 = vunpack.c.l.b16 %v2260
    %v2921 = vunpack.c.l.b16 %v2261
    %v2922 = vunpack.c.h.b16 %v2261
    %v2923 = vunpack.c.l.b16 %v2262
    %v2924 = vunpack.c.h.b16 %v2262
    %v2925 = vunpack.c.l.b16 %v2263
    %v2926 = vunpack.c.h.b16 %v2263
    %v2927 = vunpack.c.l.b16 %v2264
    %v2928 = vunpack.c.l.b16 %v2265
    %v2929 = vunpack.c.h.b16 %v2265
    %v2930 = vunpack.c.l.b16 %v2266
    %v2931 = vunpack.c.h.b16 %v2266
    %v2932 = vunpack.c.l.b16 %v2267
    %v2933 = vunpack.c.h.b16 %v2267
    %v2934 = vunpack.c.l.b16 %v2268
    %v2935 = vunpack.c.l.b16 %v2269
    %v2936 = vunpack.c.h.b16 %v2269
    %v2937 = vunpack.c.l.b16 %v2270
    %v2938 = vunpack.c.h.b16 %v2270
    %v2939 = vunpack.c.l.b16 %v2271
    %v2940 = vunpack.c.h.b16 %v2271
    %v2941 = vunpack.c.l.b16 %v2272
    %v2942 = vunpack.c.l.b16 %v2273
    %v2943 = vunpack.c.h.b16 %v2273
    %v2944 = vunpack.c.l.b16 %v2274
    %v2945 = vunpack.c.h.b16 %v2274
    %v2946 = vunpack.c.l.b16 %v2275
    %v2947 = vunpack.c.h.b16 %v2275
    %v2948 = vunpack.c.l.b16 %v2276
    %v2949 = vunpack.c.l.b16 %v2277
    %v2950 = vunpack.c.h.b16 %v2277
    %v2951 = vunpack.c.l.b16 %v2278
    %v2952 = vunpack.c.h.b16 %v2278
    %v2953 = vunpack.c.l.b16 %v2279
    %v2954 = vunpack.c.h.b16 %v2279
    %v2955 = vunpack.c.l.b16 %v2280
    %v2956 = vunpack.c.l.b16 %v2281
    %v2957 = vunpack.c.h.b16 %v2281
    %v2958 = vunpack.c.l.b16 %v2282
    %v2959 = vunpack.c.h.b16 %v2282
    %v2960 = vunpack.c.l.b16 %v2283
    %v2961 = vunpack.c.h.b16 %v2283
    %v2962 = vunpack.c.l.b16 %v2284
    %v2963 = vunpack.c.l.b16 %v2285
    %v2964 = vunpack.c.h.b16 %v2285
    %v2965 = vunpack.c.l.b16 %v2286
    %v2966 = vunpack.c.h.b16 %v2286
    %v2967 = vunpack.c.l.b16 %v2287
    %v2968 = vunpack.c.h.b16 %v2287
    %v2969 = vunpack.c.l.b16 %v2288
    %v2970 = vunpack.c.l.b16 %v2289
    %v2971 = vunpack.c.h.b16 %v2289
    %v2972 = vunpack.c.l.b16 %v2290
    %v2973 = vunpack.c.h.b16 %v2290
    %v2974 = vunpack.c.l.b16 %v2291
    %v2975 = vunpack.c.h.b16 %v2291
    %v2976 = vunpack.c.l.b16 %v2292
    %v2977 = vunpack.c.l.b16 %v2293
    %v2978 = vunpack.c.h.b16 %v2293
    %v2979 = vunpack.c.l.b16 %v2294
    %v2980 = vunpack.c.h.b16 %v2294
    %v2981 = vunpack.c.l.b16 %v2295
    %v2982 = vunpack.c.h.b16 %v2295
    %v2983 = vunpack.c.l.b16 %v2296
    %v2984 = vunpack.c.l.b16 %v2297
    %v2985 = vunpack.c.h.b16 %v2297
    %v2986 = vunpack.c.l.b16 %v2298
    %v2987 = vunpack.c.h.b16 %v2298
    %v2988 = vunpack.c.l.b16 %v2299
    %v2989 = vunpack.c.h.b16 %v2299
    %v2990 = vunpack.c.l.b16 %v2300
    %v2991 = vunpack.c.l.b16 %v2301
    %v2992 = vunpack.c.h.b16 %v2301
    %v2993 = vunpack.c.l.b16 %v2302
    %v2994 = vunpack.c.h.b16 %v2302
    %v2995 = vunpack.c.l.b16 %v2303
    %v2996 = vunpack.c.h.b16 %v2303
    %v2997 = vunpack.c.l.b16 %v2304
    %v2998 = vunpack.c.l.b16 %v2305
    %v2999 = vunpack.c.h.b16 %v2305
    %v3000 = vunpack.c.l.b16 %v2306
    %v3001 = vunpack.c.h.b16 %v2306
    %v3002 = vunpack.c.l.b16 %v2307
    %v3003 = vunpack.c.h.b16 %v2307
    %v3004 = vunpack.c.l.b16 %v2308
    %v3005 = vunpack.c.l.b16 %v2309
    %v3006 = vunpack.c.h.b16 %v2309
    %v3007 = vunpack.c.l.b16 %v2310
    %v3008 = vunpack.c.h.b16 %v2310
    %v3009 = vunpack.c.l.b16 %v2311
    %v3010 = vunpack.c.h.b16 %v2311
    %v3011 = vunpack.c.l.b16 %v2312
    %v3012 = vunpack.c.l.b16 %v2313
    %v3013 = vunpack.c.h.b16 %v2313
    %v3014 = vunpack.c.l.b16 %v2314
    %v3015 = vunpack.c.h.b16 %v2314
    %v3016 = vunpack.c.l.b16 %v2315
    %v3017 = vunpack.c.h.b16 %v2315
    %v3018 = vunpack.c.l.b16 %v2316
    %v3019 = vunpack.c.l.b16 %v2317
    %v3020 = vunpack.c.h.b16 %v2317
    %v3021 = vunpack.c.l.b16 %v2318
    %v3022 = vunpack.c.h.b16 %v2318
    %v3023 = vunpack.c.l.b16 %v2319
    %v3024 = vunpack.c.h.b16 %v2319
    %v3025 = vunpack.c.l.b16 %v2320
    %v3026 = vunpack.c.l.b16 %v2321
    %v3027 = vunpack.c.h.b16 %v2321
    %v3028 = vunpack.c.l.b16 %v2322
    %v3029 = vunpack.c.h.b16 %v2322
    %v3030 = vunpack.c.l.b16 %v2323
    %v3031 = vunpack.c.h.b16 %v2323
    %v3032 = vunpack.c.l.b16 %v2324
    %v3033 = vunpack.c.l.b16 %v2325
    %v3034 = vunpack.c.h.b16 %v2325
    %v3035 = vunpack.c.l.b16 %v2326
    %v3036 = vunpack.c.h.b16 %v2326
    %v3037 = vunpack.c.l.b16 %v2327
    %v3038 = vunpack.c.h.b16 %v2327
    %v3039 = vunpack.c.l.b16 %v2328
    %v3040 = vunpack.c.l.b16 %v2329
    %v3041 = vunpack.c.h.b16 %v2329
    %v3042 = vunpack.c.l.b16 %v2330
    %v3043 = vunpack.c.h.b16 %v2330
    %v3044 = vunpack.c.l.b16 %v2331
    %v3045 = vunpack.c.h.b16 %v2331
    %v3046 = vunpack.c.l.b16 %v2332
    %v3047 = vunpack.c.l.b16 %v2333
    %v3048 = vunpack.c.h.b16 %v2333
    %v3049 = vunpack.c.l.b16 %v2334
    %v3050 = vunpack.c.h.b16 %v2334
    %v3051 = vunpack.c.l.b16 %v2335
    %v3052 = vunpack.c.h.b16 %v2335
    %v3053 = vunpack.c.l.b16 %v2336
    %v3054 = vunpack.c.l.b16 %v2337
    %v3055 = vunpack.c.h.b16 %v2337
    %v3056 = vunpack.c.l.b16 %v2338
    %v3057 = vunpack.c.h.b16 %v2338
    %v3058 = vunpack.c.l.b16 %v2339
    %v3059 = vunpack.c.h.b16 %v2339
    %v3060 = vunpack.c.l.b16 %v2340
    %v3061 = vunpack.c.l.b16 %v2341
    %v3062 = vunpack.c.h.b16 %v2341
    %v3063 = vunpack.c.l.b16 %v2342
    %v3064 = vunpack.c.h.b16 %v2342
    %v3065 = vunpack.c.l.b16 %v2343
    %v3066 = vunpack.c.h.b16 %v2343
    %v3067 = vunpack.c.l.b16 %v2344
    %v3068 = vunpack.c.l.b16 %v2345
    %v3069 = vunpack.c.h.b16 %v2345
    %v3070 = vunpack.c.l.b16 %v2346
    %v3071 = vunpack.c.h.b16 %v2346
    %v3072 = vunpack.c.l.b16 %v2347
    %v3073 = vunpack.c.h.b16 %v2347
    %v3074 = vunpack.c.l.b16 %v2348
    %v3075 = vunpack.c.l.b16 %v2349
    %v3076 = vunpack.c.h.b16 %v2349
    %v3077 = vunpack.c.l.b16 %v2350
    %v3078 = vunpack.c.h.b16 %v2350
    %v3079 = vunpack.c.l.b16 %v2351
    %v3080 = vunpack.c.h.b16 %v2351
    %v3081 = vunpack.c.l.b16 %v2352
    %v3082 = vunpack.c.l.b16 %v2353
    %v3083 = vunpack.c.h.b16 %v2353
    %v3084 = vunpack.c.l.b16 %v2354
    %v3085 = vunpack.c.h.b16 %v2354
    %v3086 = vunpack.c.l.b16 %v2355
    %v3087 = vunpack.c.h.b16 %v2355
    %v3088 = vunpack.c.l.b16 %v2356
    %v3089 = vunpack.c.l.b16 %v2357
    %v3090 = vunpack.c.h.b16 %v2357
    %v3091 = vunpack.c.l.b16 %v2358
    %v3092 = vunpack.c.h.b16 %v2358
    %v3093 = vunpack.c.l.b16 %v2359
    %v3094 = vunpack.c.h.b16 %v2359
    %v3095 = vunpack.c.l.b16 %v2360
    %v3096 = vunpack.c.l.b16 %v2361
    %v3097 = vunpack.c.h.b16 %v2361
    %v3098 = vunpack.c.l.b16 %v2362
    %v3099 = vunpack.c.h.b16 %v2362
    %v3100 = vunpack.c.l.b16 %v2363
    %v3101 = vunpack.c.h.b16 %v2363
    %v3102 = vunpack.c.l.b16 %v2364
    %v3103 = vunpack.c.l.b16 %v2365
    %v3104 = vunpack.c.h.b16 %v2365
    %v3105 = vunpack.c.l.b16 %v2366
    %v3106 = vunpack.c.h.b16 %v2366
    %v3107 = vunpack.c.l.b16 %v2367
    %v3108 = vunpack.c.h.b16 %v2367
    %v3109 = vunpack.c.l.b16 %v2368
    %v3110 = vpack.c.b16 %v2669, %v2662
    %v3111 = vpack.c.b16 %v2670, %v2663
    %v3112 = vpack.c.b16 %v2671, %v2664
    %v3113 = vpack.c.b16 %v2672, %v2665
    %v3114 = vpack.c.b16 %v2673, %v2666
    %v3115 = vpack.c.b16 %v2674, %v2667
    %v3116 = vpack.c.b16 %v2675, %v2668
    %v3117 = vpack.c.b16 %v2683, %v2676
    %v3118 = vpack.c.b16 %v2684, %v2677
    %v3119 = vpack.c.b16 %v2685, %v2678
    %v3120 = vpack.c.b16 %v2686, %v2679
    %v3121 = vpack.c.b16 %v2687, %v2680
    %v3122 = vpack.c.b16 %v2688, %v2681
    %v3123 = vpack.c.b16 %v2689, %v2682
    %v3124 = vpack.c.b16 %v2697, %v2690
    %v3125 = vpack.c.b16 %v2698, %v2691
    %v3126 = vpack.c.b16 %v2699, %v2692
    %v3127 = vpack.c.b16 %v2700, %v2693
    %v3128 = vpack.c.b16 %v2701, %v2694
    %v3129 = vpack.c.b16 %v2702, %v2695
    %v3130 = vpack.c.b16 %v2703, %v2696
    %v3131 = vpack.c.b16 %v2711, %v2704
    %v3132 = vpack.c.b16 %v2712, %v2705
    %v3133 = vpack.c.b16 %v2713, %v2706
    %v3134 = vpack.c.b16 %v2714, %v2707
    %v3135 = vpack.c.b16 %v2715, %v2708
    %v3136 = vpack.c.b16 %v2716, %v2709
    %v3137 = vpack.c.b16 %v2717, %v2710
    %v3138 = vpack.c.b16 %v2725, %v2718
    %v3139 = vpack.c.b16 %v2726, %v2719
    %v3140 = vpack.c.b16 %v2727, %v2720
    %v3141 = vpack.c.b16 %v2728, %v2721
    %v3142 = vpack.c.b16 %v2729, %v2722
    %v3143 = vpack.c.b16 %v2730, %v2723
    %v3144 = vpack.c.b16 %v2731, %v2724
    %v3145 = vpack.c.b16 %v2739, %v2732
    %v3146 = vpack.c.b16 %v2740, %v2733
    %v3147 = vpack.c.b16 %v2741, %v2734
    %v3148 = vpack.c.b16 %v2742, %v2735
    %v3149 = vpack.c.b16 %v2743, %v2736
    %v3150 = vpack.c.b16 %v2744, %v2737
    %v3151 = vpack.c.b16 %v2745, %v2738
    %v3152 = vpack.c.b16 %v2753, %v2746
    %v3153 = vpack.c.b16 %v2754, %v2747
    %v3154 = vpack.c.b16 %v2755, %v2748
    %v3155 = vpack.c.b16 %v2756, %v2749
    %v3156 = vpack.c.b16 %v2757, %v2750
    %v3157 = vpack.c.b16 %v2758, %v2751
    %v3158 = vpack.c.b16 %v2759, %v2752
    %v3159 = vpack.c.b16 %v2767, %v2760
    %v3160 = vpack.c.b16 %v2768, %v2761
    %v3161 = vpack.c.b16 %v2769, %v2762
    %v3162 = vpack.c.b16 %v2770, %v2763
    %v3163 = vpack.c.b16 %v2771, %v2764
    %v3164 = vpack.c.b16 %v2772, %v2765
    %v3165 = vpack.c.b16 %v2773, %v2766
    %v3166 = vpack.c.b16 %v2781, %v2774
    %v3167 = vpack.c.b16 %v2782, %v2775
    %v3168 = vpack.c.b16 %v2783, %v2776
    %v3169 = vpack.c.b16 %v2784, %v2777
    %v3170 = vpack.c.b16 %v2785, %v2778
    %v3171 = vpack.c.b16 %v2786, %v2779
    %v3172 = vpack.c.b16 %v2787, %v2780
    %v3173 = vpack.c.b16 %v2795, %v2788
    %v3174 = vpack.c.b16 %v2796, %v2789
    %v3175 = vpack.c.b16 %v2797, %v2790
    %v3176 = vpack.c.b16 %v2798, %v2791
    %v3177 = vpack.c.b16 %v2799, %v2792
    %v3178 = vpack.c.b16 %v2800, %v2793
    %v3179 = vpack.c.b16 %v2801, %v2794
    %v3180 = vpack.c.b16 %v2809, %v2802
    %v3181 = vpack.c.b16 %v2810, %v2803
    %v3182 = vpack.c.b16 %v2811, %v2804
    %v3183 = vpack.c.b16 %v2812, %v2805
    %v3184 = vpack.c.b16 %v2813, %v2806
    %v3185 = vpack.c.b16 %v2814, %v2807
    %v3186 = vpack.c.b16 %v2815, %v2808
    %v3187 = vpack.c.b16 %v2823, %v2816
    %v3188 = vpack.c.b16 %v2824, %v2817
    %v3189 = vpack.c.b16 %v2825, %v2818
    %v3190 = vpack.c.b16 %v2826, %v2819
    %v3191 = vpack.c.b16 %v2827, %v2820
    %v3192 = vpack.c.b16 %v2828, %v2821
    %v3193 = vpack.c.b16 %v2829, %v2822
    %v3194 = vpack.c.b16 %v2837, %v2830
    %v3195 = vpack.c.b16 %v2838, %v2831
    %v3196 = vpack.c.b16 %v2839, %v2832
    %v3197 = vpack.c.b16 %v2840, %v2833
    %v3198 = vpack.c.b16 %v2841, %v2834
    %v3199 = vpack.c.b16 %v2842, %v2835
    %v3200 = vpack.c.b16 %v2843, %v2836
    %v3201 = vpack.c.b16 %v2851, %v2844
    %v3202 = vpack.c.b16 %v2852, %v2845
    %v3203 = vpack.c.b16 %v2853, %v2846
    %v3204 = vpack.c.b16 %v2854, %v2847
    %v3205 = vpack.c.b16 %v2855, %v2848
    %v3206 = vpack.c.b16 %v2856, %v2849
    %v3207 = vpack.c.b16 %v2857, %v2850
    %v3208 = vpack.c.b16 %v2865, %v2858
    %v3209 = vpack.c.b16 %v2866, %v2859
    %v3210 = vpack.c.b16 %v2867, %v2860
    %v3211 = vpack.c.b16 %v2868, %v2861
    %v3212 = vpack.c.b16 %v2869, %v2862
    %v3213 = vpack.c.b16 %v2870, %v2863
    %v3214 = vpack.c.b16 %v2871, %v2864
    %v3215 = vpack.c.b16 %v2879, %v2872
    %v3216 = vpack.c.b16 %v2880, %v2873
    %v3217 = vpack.c.b16 %v2881, %v2874
    %v3218 = vpack.c.b16 %v2882, %v2875
    %v3219 = vpack.c.b16 %v2883, %v2876
    %v3220 = vpack.c.b16 %v2884, %v2877
    %v3221 = vpack.c.b16 %v2885, %v2878
    %v3222 = vpack.c.b16 %v2893, %v2886
    %v3223 = vpack.c.b16 %v2894, %v2887
    %v3224 = vpack.c.b16 %v2895, %v2888
    %v3225 = vpack.c.b16 %v2896, %v2889
    %v3226 = vpack.c.b16 %v2897, %v2890
    %v3227 = vpack.c.b16 %v2898, %v2891
    %v3228 = vpack.c.b16 %v2899, %v2892
    %v3229 = vpack.c.b16 %v2907, %v2900
    %v3230 = vpack.c.b16 %v2908, %v2901
    %v3231 = vpack.c.b16 %v2909, %v2902
    %v3232 = vpack.c.b16 %v2910, %v2903
    %v3233 = vpack.c.b16 %v2911, %v2904
    %v3234 = vpack.c.b16 %v2912, %v2905
    %v3235 = vpack.c.b16 %v2913, %v2906
    %v3236 = vpack.c.b16 %v2921, %v2914
    %v3237 = vpack.c.b16 %v2922, %v2915
    %v3238 = vpack.c.b16 %v2923, %v2916
    %v3239 = vpack.c.b16 %v2924, %v2917
    %v3240 = vpack.c.b16 %v2925, %v2918
    %v3241 = vpack.c.b16 %v2926, %v2919
    %v3242 = vpack.c.b16 %v2927, %v2920
    %v3243 = vpack.c.b16 %v2935, %v2928
    %v3244 = vpack.c.b16 %v2936, %v2929
    %v3245 = vpack.c.b16 %v2937, %v2930
    %v3246 = vpack.c.b16 %v2938, %v2931
    %v3247 = vpack.c.b16 %v2939, %v2932
    %v3248 = vpack.c.b16 %v2940, %v2933
    %v3249 = vpack.c.b16 %v2941, %v2934
    %v3250 = vpack.c.b16 %v2949, %v2942
    %v3251 = vpack.c.b16 %v2950, %v2943
    %v3252 = vpack.c.b16 %v2951, %v2944
    %v3253 = vpack.c.b16 %v2952, %v2945
    %v3254 = vpack.c.b16 %v2953, %v2946
    %v3255 = vpack.c.b16 %v2954, %v2947
    %v3256 = vpack.c.b16 %v2955, %v2948
    %v3257 = vpack.c.b16 %v2963, %v2956
    %v3258 = vpack.c.b16 %v2964, %v2957
    %v3259 = vpack.c.b16 %v2965, %v2958
    %v3260 = vpack.c.b16 %v2966, %v2959
    %v3261 = vpack.c.b16 %v2967, %v2960
    %v3262 = vpack.c.b16 %v2968, %v2961
    %v3263 = vpack.c.b16 %v2969, %v2962
    %v3264 = vpack.c.b16 %v2977, %v2970
    %v3265 = vpack.c.b16 %v2978, %v2971
    %v3266 = vpack.c.b16 %v2979, %v2972
    %v3267 = vpack.c.b16 %v2980, %v2973
    %v3268 = vpack.c.b16 %v2981, %v2974
    %v3269 = vpack.c.b16 %v2982, %v2975
    %v3270 = vpack.c.b16 %v2983, %v2976
    %v3271 = vpack.c.b16 %v2991, %v2984
    %v3272 = vpack.c.b16 %v2992, %v2985
    %v3273 = vpack.c.b16 %v2993, %v2986
    %v3274 = vpack.c.b16 %v2994, %v2987
    %v3275 = vpack.c.b16 %v2995, %v2988
    %v3276 = vpack.c.b16 %v2996, %v2989
    %v3277 = vpack.c.b16 %v2997, %v2990
    %v3278 = vpack.c.b16 %v3005, %v2998
    %v3279 = vpack.c.b16 %v3006, %v2999
    %v3280 = vpack.c.b16 %v3007, %v3000
    %v3281 = vpack.c.b16 %v3008, %v3001
    %v3282 = vpack.c.b16 %v3009, %v3002
    %v3283 = vpack.c.b16 %v3010, %v3003
    %v3284 = vpack.c.b16 %v3011, %v3004
    %v3285 = vpack.c.b16 %v3019, %v3012
    %v3286 = vpack.c.b16 %v3020, %v3013
    %v3287 = vpack.c.b16 %v3021, %v3014
    %v3288 = vpack.c.b16 %v3022, %v3015
    %v3289 = vpack.c.b16 %v3023, %v3016
    %v3290 = vpack.c.b16 %v3024, %v3017
    %v3291 = vpack.c.b16 %v3025, %v3018
    %v3292 = vpack.c.b16 %v3033, %v3026
    %v3293 = vpack.c.b16 %v3034, %v3027
    %v3294 = vpack.c.b16 %v3035, %v3028
    %v3295 = vpack.c.b16 %v3036, %v3029
    %v3296 = vpack.c.b16 %v3037, %v3030
    %v3297 = vpack.c.b16 %v3038, %v3031
    %v3298 = vpack.c.b16 %v3039, %v3032
    %v3299 = vpack.c.b16 %v3047, %v3040
    %v3300 = vpack.c.b16 %v3048, %v3041
    %v3301 = vpack.c.b16 %v3049, %v3042
    %v3302 = vpack.c.b16 %v3050, %v3043
    %v3303 = vpack.c.b16 %v3051, %v3044
    %v3304 = vpack.c.b16 %v3052, %v3045
    %v3305 = vpack.c.b16 %v3053, %v3046
    %v3306 = vpack.c.b16 %v3061, %v3054
    %v3307 = vpack.c.b16 %v3062, %v3055
    %v3308 = vpack.c.b16 %v3063, %v3056
    %v3309 = vpack.c.b16 %v3064, %v3057
    %v3310 = vpack.c.b16 %v3065, %v3058
    %v3311 = vpack.c.b16 %v3066, %v3059
    %v3312 = vpack.c.b16 %v3067, %v3060
    %v3313 = vpack.c.b16 %v3075, %v3068
    %v3314 = vpack.c.b16 %v3076, %v3069
    %v3315 = vpack.c.b16 %v3077, %v3070
    %v3316 = vpack.c.b16 %v3078, %v3071
    %v3317 = vpack.c.b16 %v3079, %v3072
    %v3318 = vpack.c.b16 %v3080, %v3073
    %v3319 = vpack.c.b16 %v3081, %v3074
    %v3320 = vpack.c.b16 %v3089, %v3082
    %v3321 = vpack.c.b16 %v3090, %v3083
    %v3322 = vpack.c.b16 %v3091, %v3084
    %v3323 = vpack.c.b16 %v3092, %v3085
    %v3324 = vpack.c.b16 %v3093, %v3086
    %v3325 = vpack.c.b16 %v3094, %v3087
    %v3326 = vpack.c.b16 %v3095, %v3088
    %v3327 = vpack.c.b16 %v3103, %v3096
    %v3328 = vpack.c.b16 %v3104, %v3097
    %v3329 = vpack.c.b16 %v3105, %v3098
    %v3330 = vpack.c.b16 %v3106, %v3099
    %v3331 = vpack.c.b16 %v3107, %v3100
    %v3332 = vpack.c.b16 %v3108, %v3101
    %v3333 = vpack.c.b16 %v3109, %v3102
    %3558 = vmatprep.subr.bf16.mxu0 %v3111
    %3559 = vmatpush1.bf16.msra.mxu0 %v3110
    %3560 = vmatprep.subr.bf16.mxu0 %v3118
    %3561 = vmatpush1.bf16.msra.mxu0 %v3117
    %3562 = vmatprep.subr.bf16.mxu0 %v3125
    %3563 = vmatpush1.bf16.msra.mxu0 %v3124
    %3564 = vmatprep.subr.bf16.mxu0 %v3132
    %3565 = vmatpush1.bf16.msra.mxu0 %v3131
    %3566 = vmatprep.subr.bf16.mxu0 %v3139
    %3567 = vmatpush1.bf16.msra.mxu0 %v3138
    %3568 = vmatprep.subr.bf16.mxu0 %v3146
    %3569 = vmatpush1.bf16.msra.mxu0 %v3145
    %3570 = vmatprep.subr.bf16.mxu0 %v3153
    %3571 = vmatpush1.bf16.msra.mxu0 %v3152
    %3572 = vmatprep.subr.bf16.mxu0 %v3160
    %3573 = vmatpush1.bf16.msra.mxu0 %v3159
    %3574 = vmatprep.subr.bf16.mxu0 %v3167
    %3575 = vmatpush1.bf16.msra.mxu0 %v3166
    %3576 = vmatprep.subr.bf16.mxu0 %v3174
    %3577 = vmatpush1.bf16.msra.mxu0 %v3173
    %3578 = vmatprep.subr.bf16.mxu0 %v3181
    %3579 = vmatpush1.bf16.msra.mxu0 %v3180
    %3580 = vmatprep.subr.bf16.mxu0 %v3188
    %3581 = vmatpush1.bf16.msra.mxu0 %v3187
    %3582 = vmatprep.subr.bf16.mxu0 %v3195
    %3583 = vmatpush1.bf16.msra.mxu0 %v3194
    %3584 = vmatprep.subr.bf16.mxu0 %v3202
    %3585 = vmatpush1.bf16.msra.mxu0 %v3201
    %3586 = vmatprep.subr.bf16.mxu0 %v3209
    %3587 = vmatpush1.bf16.msra.mxu0 %v3208
    %3588 = vmatprep.subr.bf16.mxu0 %v3216
    %3589 = vmatpush1.bf16.msra.mxu0 %v3215
    %3590 = vmatprep.mubr.bf16.mxu0 %v2110
    %3591 = vmatmul.mubr.bf16.gmra.mrb[0].mxu0 %v2109
    %v3592 = vpop.f32.mrb[0].mxu0
    %v3593 = vadd.f32 %v2374, %v3592
    %v3594 = vpop.f32.mrb[0].mxu0
    %v3595 = vadd.f32 %v2378, %v3594
    %v3596 = vpop.f32.mrb[0].mxu0
    %v3597 = vpop.f32.mrb[0].mxu0
    %3598 = vdwg.mxu0
    %3599 = vmatprep.subr.bf16.mxu0 %v3223
    %3600 = vmatpush1.bf16.msra.mxu0 %v3222
    %3601 = vmatprep.subr.bf16.mxu0 %v3230
    %3602 = vmatpush1.bf16.msra.mxu0 %v3229
    %3603 = vmatprep.subr.bf16.mxu0 %v3237
    %3604 = vmatpush1.bf16.msra.mxu0 %v3236
    %3605 = vmatprep.subr.bf16.mxu0 %v3244
    %3606 = vmatpush1.bf16.msra.mxu0 %v3243
    %3607 = vmatprep.subr.bf16.mxu0 %v3251
    %3608 = vmatpush1.bf16.msra.mxu0 %v3250
    %3609 = vmatprep.subr.bf16.mxu0 %v3258
    %3610 = vmatpush1.bf16.msra.mxu0 %v3257
    %3611 = vmatprep.subr.bf16.mxu0 %v3265
    %3612 = vmatpush1.bf16.msra.mxu0 %v3264
    %3613 = vmatprep.subr.bf16.mxu0 %v3272
    %3614 = vmatpush1.bf16.msra.mxu0 %v3271
    %3615 = vmatprep.subr.bf16.mxu0 %v3279
    %3616 = vmatpush1.bf16.msra.mxu0 %v3278
    %3617 = vmatprep.subr.bf16.mxu0 %v3286
    %3618 = vmatpush1.bf16.msra.mxu0 %v3285
    %3619 = vmatprep.subr.bf16.mxu0 %v3293
    %3620 = vmatpush1.bf16.msra.mxu0 %v3292
    %3621 = vmatprep.subr.bf16.mxu0 %v3300
    %3622 = vmatpush1.bf16.msra.mxu0 %v3299
    %3623 = vmatprep.subr.bf16.mxu0 %v3307
    %3624 = vmatpush1.bf16.msra.mxu0 %v3306
    %3625 = vmatprep.subr.bf16.mxu0 %v3314
    %3626 = vmatpush1.bf16.msra.mxu0 %v3313
    %3627 = vmatprep.subr.bf16.mxu0 %v3321
    %3628 = vmatpush1.bf16.msra.mxu0 %v3320
    %3629 = vmatprep.subr.bf16.mxu0 %v3328
    %3630 = vmatpush1.bf16.msra.mxu0 %v3327
    %3631 = vmatprep.mubr.bf16.mxu0 %v2112
    %3632 = vmatmul.mubr.bf16.gmra.mrb[0].mxu0 %v2111
    %v3633 = vpop.f32.mrb[0].mxu0
    %v3634 = vadd.f32 %v3593, %v3633
    %v3635 = vpop.f32.mrb[0].mxu0
    %v3636 = vadd.f32 %v3595, %v3635
    %v3637 = vpop.f32.mrb[0].mxu0
    %v3638 = vpop.f32.mrb[0].mxu0
    %3639 = vdwg.mxu0
    %3640 = vmatprep.subr.bf16.mxu0 %v3113
    %3641 = vmatpush1.bf16.msra.mxu0 %v3112
    %3642 = vmatprep.subr.bf16.mxu0 %v3120
    %3643 = vmatpush1.bf16.msra.mxu0 %v3119
    %3644 = vmatprep.subr.bf16.mxu0 %v3127
    %3645 = vmatpush1.bf16.msra.mxu0 %v3126
    %3646 = vmatprep.subr.bf16.mxu0 %v3134
    %3647 = vmatpush1.bf16.msra.mxu0 %v3133
    %3648 = vmatprep.subr.bf16.mxu0 %v3141
    %3649 = vmatpush1.bf16.msra.mxu0 %v3140
    %3650 = vmatprep.subr.bf16.mxu0 %v3148
    %3651 = vmatpush1.bf16.msra.mxu0 %v3147
    %3652 = vmatprep.subr.bf16.mxu0 %v3155
    %3653 = vmatpush1.bf16.msra.mxu0 %v3154
    %3654 = vmatprep.subr.bf16.mxu0 %v3162
    %3655 = vmatpush1.bf16.msra.mxu0 %v3161
    %3656 = vmatprep.subr.bf16.mxu0 %v3169
    %3657 = vmatpush1.bf16.msra.mxu0 %v3168
    %3658 = vmatprep.subr.bf16.mxu0 %v3176
    %3659 = vmatpush1.bf16.msra.mxu0 %v3175
    %3660 = vmatprep.subr.bf16.mxu0 %v3183
    %3661 = vmatpush1.bf16.msra.mxu0 %v3182
    %3662 = vmatprep.subr.bf16.mxu0 %v3190
    %3663 = vmatpush1.bf16.msra.mxu0 %v3189
    %3664 = vmatprep.subr.bf16.mxu0 %v3197
    %3665 = vmatpush1.bf16.msra.mxu0 %v3196
    %3666 = vmatprep.subr.bf16.mxu0 %v3204
    %3667 = vmatpush1.bf16.msra.mxu0 %v3203
    %3668 = vmatprep.subr.bf16.mxu0 %v3211
    %3669 = vmatpush1.bf16.msra.mxu0 %v3210
    %3670 = vmatprep.subr.bf16.mxu0 %v3218
    %3671 = vmatpush1.bf16.msra.mxu0 %v3217
    %3672 = vmatprep.mubr.bf16.mxu0 %v2110
    %3673 = vmatmul.mubr.bf16.gmra.mrb[0].mxu0 %v2109
    %v3674 = vpop.f32.mrb[0].mxu0
    %v3675 = vadd.f32 %v2382, %v3674
    %v3676 = vpop.f32.mrb[0].mxu0
    %v3677 = vadd.f32 %v2386, %v3676
    %v3678 = vpop.f32.mrb[0].mxu0
    %v3679 = vpop.f32.mrb[0].mxu0
    %3680 = vdwg.mxu0
    %3681 = vmatprep.subr.bf16.mxu0 %v3225
    %3682 = vmatpush1.bf16.msra.mxu0 %v3224
    %3683 = vmatprep.subr.bf16.mxu0 %v3232
    %3684 = vmatpush1.bf16.msra.mxu0 %v3231
    %3685 = vmatprep.subr.bf16.mxu0 %v3239
    %3686 = vmatpush1.bf16.msra.mxu0 %v3238
    %3687 = vmatprep.subr.bf16.mxu0 %v3246
    %3688 = vmatpush1.bf16.msra.mxu0 %v3245
    %3689 = vmatprep.subr.bf16.mxu0 %v3253
    %3690 = vmatpush1.bf16.msra.mxu0 %v3252
    %3691 = vmatprep.subr.bf16.mxu0 %v3260
    %3692 = vmatpush1.bf16.msra.mxu0 %v3259
    %3693 = vmatprep.subr.bf16.mxu0 %v3267
    %3694 = vmatpush1.bf16.msra.mxu0 %v3266
    %3695 = vmatprep.subr.bf16.mxu0 %v3274
    %3696 = vmatpush1.bf16.msra.mxu0 %v3273
    %3697 = vmatprep.subr.bf16.mxu0 %v3281
    %3698 = vmatpush1.bf16.msra.mxu0 %v3280
    %3699 = vmatprep.subr.bf16.mxu0 %v3288
    %3700 = vmatpush1.bf16.msra.mxu0 %v3287
    %3701 = vmatprep.subr.bf16.mxu0 %v3295
    %3702 = vmatpush1.bf16.msra.mxu0 %v3294
    %3703 = vmatprep.subr.bf16.mxu0 %v3302
    %3704 = vmatpush1.bf16.msra.mxu0 %v3301
    %3705 = vmatprep.subr.bf16.mxu0 %v3309
    %3706 = vmatpush1.bf16.msra.mxu0 %v3308
    %3707 = vmatprep.subr.bf16.mxu0 %v3316
    %3708 = vmatpush1.bf16.msra.mxu0 %v3315
    %3709 = vmatprep.subr.bf16.mxu0 %v3323
    %3710 = vmatpush1.bf16.msra.mxu0 %v3322
    %3711 = vmatprep.subr.bf16.mxu0 %v3330
    %3712 = vmatpush1.bf16.msra.mxu0 %v3329
    %3713 = vmatprep.mubr.bf16.mxu0 %v2112
    %3714 = vmatmul.mubr.bf16.gmra.mrb[0].mxu0 %v2111
    %v3715 = vpop.f32.mrb[0].mxu0
    %v3716 = vadd.f32 %v3675, %v3715
    %v3717 = vpop.f32.mrb[0].mxu0
    %v3718 = vadd.f32 %v3677, %v3717
    %v3719 = vpop.f32.mrb[0].mxu0
    %v3720 = vpop.f32.mrb[0].mxu0
    %3721 = vdwg.mxu0
    %3722 = vmatprep.subr.bf16.mxu0 %v3115
    %3723 = vmatpush1.bf16.msra.mxu0 %v3114
    %3724 = vmatprep.subr.bf16.mxu0 %v3122
    %3725 = vmatpush1.bf16.msra.mxu0 %v3121
    %3726 = vmatprep.subr.bf16.mxu0 %v3129
    %3727 = vmatpush1.bf16.msra.mxu0 %v3128
    %3728 = vmatprep.subr.bf16.mxu0 %v3136
    %3729 = vmatpush1.bf16.msra.mxu0 %v3135
    %3730 = vmatprep.subr.bf16.mxu0 %v3143
    %3731 = vmatpush1.bf16.msra.mxu0 %v3142
    %3732 = vmatprep.subr.bf16.mxu0 %v3150
    %3733 = vmatpush1.bf16.msra.mxu0 %v3149
    %3734 = vmatprep.subr.bf16.mxu0 %v3157
    %3735 = vmatpush1.bf16.msra.mxu0 %v3156
    %3736 = vmatprep.subr.bf16.mxu0 %v3164
    %3737 = vmatpush1.bf16.msra.mxu0 %v3163
    %3738 = vmatprep.subr.bf16.mxu0 %v3171
    %3739 = vmatpush1.bf16.msra.mxu0 %v3170
    %3740 = vmatprep.subr.bf16.mxu0 %v3178
    %3741 = vmatpush1.bf16.msra.mxu0 %v3177
    %3742 = vmatprep.subr.bf16.mxu0 %v3185
    %3743 = vmatpush1.bf16.msra.mxu0 %v3184
    %3744 = vmatprep.subr.bf16.mxu0 %v3192
    %3745 = vmatpush1.bf16.msra.mxu0 %v3191
    %3746 = vmatprep.subr.bf16.mxu0 %v3199
    %3747 = vmatpush1.bf16.msra.mxu0 %v3198
    %3748 = vmatprep.subr.bf16.mxu0 %v3206
    %3749 = vmatpush1.bf16.msra.mxu0 %v3205
    %3750 = vmatprep.subr.bf16.mxu0 %v3213
    %3751 = vmatpush1.bf16.msra.mxu0 %v3212
    %3752 = vmatprep.subr.bf16.mxu0 %v3220
    %3753 = vmatpush1.bf16.msra.mxu0 %v3219
    %3754 = vmatprep.mubr.bf16.mxu0 %v2110
    %3755 = vmatmul.mubr.bf16.gmra.mrb[0].mxu0 %v2109
    %v3756 = vpop.f32.mrb[0].mxu0
    %v3757 = vadd.f32 %v2390, %v3756
    %v3758 = vpop.f32.mrb[0].mxu0
    %v3759 = vadd.f32 %v2394, %v3758
    %v3760 = vpop.f32.mrb[0].mxu0
    %v3761 = vpop.f32.mrb[0].mxu0
    %3762 = vdwg.mxu0
    %3763 = vmatprep.subr.bf16.mxu0 %v3227
    %3764 = vmatpush1.bf16.msra.mxu0 %v3226
    %3765 = vmatprep.subr.bf16.mxu0 %v3234
    %3766 = vmatpush1.bf16.msra.mxu0 %v3233
    %3767 = vmatprep.subr.bf16.mxu0 %v3241
    %3768 = vmatpush1.bf16.msra.mxu0 %v3240
    %3769 = vmatprep.subr.bf16.mxu0 %v3248
    %3770 = vmatpush1.bf16.msra.mxu0 %v3247
    %3771 = vmatprep.subr.bf16.mxu0 %v3255
    %3772 = vmatpush1.bf16.msra.mxu0 %v3254
    %3773 = vmatprep.subr.bf16.mxu0 %v3262
    %3774 = vmatpush1.bf16.msra.mxu0 %v3261
    %3775 = vmatprep.subr.bf16.mxu0 %v3269
    %3776 = vmatpush1.bf16.msra.mxu0 %v3268
    %3777 = vmatprep.subr.bf16.mxu0 %v3276
    %3778 = vmatpush1.bf16.msra.mxu0 %v3275
    %3779 = vmatprep.subr.bf16.mxu0 %v3283
    %3780 = vmatpush1.bf16.msra.mxu0 %v3282
    %3781 = vmatprep.subr.bf16.mxu0 %v3290
    %3782 = vmatpush1.bf16.msra.mxu0 %v3289
    %3783 = vmatprep.subr.bf16.mxu0 %v3297
    %3784 = vmatpush1.bf16.msra.mxu0 %v3296
    %3785 = vmatprep.subr.bf16.mxu0 %v3304
    %3786 = vmatpush1.bf16.msra.mxu0 %v3303
    %3787 = vmatprep.subr.bf16.mxu0 %v3311
    %3788 = vmatpush1.bf16.msra.mxu0 %v3310
    %3789 = vmatprep.subr.bf16.mxu0 %v3318
    %3790 = vmatpush1.bf16.msra.mxu0 %v3317
    %3791 = vmatprep.subr.bf16.mxu0 %v3325
    %3792 = vmatpush1.bf16.msra.mxu0 %v3324
    %3793 = vmatprep.subr.bf16.mxu0 %v3332
    %3794 = vmatpush1.bf16.msra.mxu0 %v3331
    %3795 = vmatprep.mubr.bf16.mxu0 %v2112
    %3796 = vmatmul.mubr.bf16.gmra.mrb[0].mxu0 %v2111
    %v3797 = vpop.f32.mrb[0].mxu0
    %v3798 = vadd.f32 %v3757, %v3797
    %v3799 = vpop.f32.mrb[0].mxu0
    %v3800 = vadd.f32 %v3759, %v3799
    %v3801 = vpop.f32.mrb[0].mxu0
    %v3802 = vpop.f32.mrb[0].mxu0
    %3803 = vdwg.mxu0
    %3804 = vmatprep.subr.bf16.mxu0 0
    %3805 = vmatpush1.bf16.msra.mxu0 %v3116
    %3806 = vmatprep.subr.bf16.mxu0 0
    %3807 = vmatpush1.bf16.msra.mxu0 %v3123
    %3808 = vmatprep.subr.bf16.mxu0 0
    %3809 = vmatpush1.bf16.msra.mxu0 %v3130
    %3810 = vmatprep.subr.bf16.mxu0 0
    %3811 = vmatpush1.bf16.msra.mxu0 %v3137
    %3812 = vmatprep.subr.bf16.mxu0 0
    %3813 = vmatpush1.bf16.msra.mxu0 %v3144
    %3814 = vmatprep.subr.bf16.mxu0 0
    %3815 = vmatpush1.bf16.msra.mxu0 %v3151
    %3816 = vmatprep.subr.bf16.mxu0 0
    %3817 = vmatpush1.bf16.msra.mxu0 %v3158
    %3818 = vmatprep.subr.bf16.mxu0 0
    %3819 = vmatpush1.bf16.msra.mxu0 %v3165
    %3820 = vmatprep.subr.bf16.mxu0 0
    %3821 = vmatpush1.bf16.msra.mxu0 %v3172
    %3822 = vmatprep.subr.bf16.mxu0 0
    %3823 = vmatpush1.bf16.msra.mxu0 %v3179
    %3824 = vmatprep.subr.bf16.mxu0 0
    %3825 = vmatpush1.bf16.msra.mxu0 %v3186
    %3826 = vmatprep.subr.bf16.mxu0 0
    %3827 = vmatpush1.bf16.msra.mxu0 %v3193
    %3828 = vmatprep.subr.bf16.mxu0 0
    %3829 = vmatpush1.bf16.msra.mxu0 %v3200
    %3830 = vmatprep.subr.bf16.mxu0 0
    %3831 = vmatpush1.bf16.msra.mxu0 %v3207
    %3832 = vmatprep.subr.bf16.mxu0 0
    %3833 = vmatpush1.bf16.msra.mxu0 %v3214
    %3834 = vmatprep.subr.bf16.mxu0 0
    %3835 = vmatpush1.bf16.msra.mxu0 %v3221
    %3836 = vmatprep.mubr.bf16.mxu0 %v2110
    %3837 = vmatmul.mubr.bf16.gmra.mrb[0].mxu0 %v2109
    %v3838 = vpop.f32.mrb[0].mxu0
    %v3839 = vadd.f32 %v2398, %v3838
    %v3840 = vpop.f32.mrb[0].mxu0
    %v3841 = vpop.f32.mrb[0].mxu0
    %v3842 = vpop.f32.mrb[0].mxu0
    %3843 = vdwg.mxu0
    %3844 = vmatprep.subr.bf16.mxu0 0
    %3845 = vmatpush1.bf16.msra.mxu0 %v3228
    %3846 = vmatprep.subr.bf16.mxu0 0
    %3847 = vmatpush1.bf16.msra.mxu0 %v3235
    %3848 = vmatprep.subr.bf16.mxu0 0
    %3849 = vmatpush1.bf16.msra.mxu0 %v3242
    %3850 = vmatprep.subr.bf16.mxu0 0
    %3851 = vmatpush1.bf16.msra.mxu0 %v3249
    %3852 = vmatprep.subr.bf16.mxu0 0
    %3853 = vmatpush1.bf16.msra.mxu0 %v3256
    %3854 = vmatprep.subr.bf16.mxu0 0
    %3855 = vmatpush1.bf16.msra.mxu0 %v3263
    %3856 = vmatprep.subr.bf16.mxu0 0
    %3857 = vmatpush1.bf16.msra.mxu0 %v3270
    %3858 = vmatprep.subr.bf16.mxu0 0
    %3859 = vmatpush1.bf16.msra.mxu0 %v3277
    %3860 = vmatprep.subr.bf16.mxu0 0
    %3861 = vmatpush1.bf16.msra.mxu0 %v3284
    %3862 = vmatprep.subr.bf16.mxu0 0
    %3863 = vmatpush1.bf16.msra.mxu0 %v3291
    %3864 = vmatprep.subr.bf16.mxu0 0
    %3865 = vmatpush1.bf16.msra.mxu0 %v3298
    %3866 = vmatprep.subr.bf16.mxu0 0
    %3867 = vmatpush1.bf16.msra.mxu0 %v3305
    %3868 = vmatprep.subr.bf16.mxu0 0
    %3869 = vmatpush1.bf16.msra.mxu0 %v3312
    %3870 = vmatprep.subr.bf16.mxu0 0
    %3871 = vmatpush1.bf16.msra.mxu0 %v3319
    %3872 = vmatprep.subr.bf16.mxu0 0
    %3873 = vmatpush1.bf16.msra.mxu0 %v3326
    %3874 = vmatprep.subr.bf16.mxu0 0
    %3875 = vmatpush1.bf16.msra.mxu0 %v3333
    %3876 = vmatprep.mubr.bf16.mxu0 %v2112
    %3877 = vmatmul.mubr.bf16.gmra.mrb[0].mxu0 %v2111
    %v3878 = vpop.f32.mrb[0].mxu0
    %v3879 = vadd.f32 %v3839, %v3878
    %v3880 = vpop.f32.mrb[0].mxu0
    %v3881 = vpop.f32.mrb[0].mxu0
    %v3882 = vpop.f32.mrb[0].mxu0
    %3883 = vdwg.mxu0
    %v3884 = vxor.u32 %v3634, 2147483648
    %v3885 = vxor.u32 %v3636, 2147483648
    %v3886 = vxor.u32 %v3716, 2147483648
    %v3887 = vxor.u32 %v3718, 2147483648
    %v3888 = vxor.u32 %v3798, 2147483648
    %v3889 = vxor.u32 %v3800, 2147483648
    %v3890 = vxor.u32 %v3879, 2147483648
    %v3891 = vmul.f32 %v3884, 1.442695
    %v3892 = vpow.pop %v3891
    %v3893 = vmul.f32 %v3885, 1.442695
    %v3894 = vpow.pop %v3893
    %v3895 = vmul.f32 %v3886, 1.442695
    %v3896 = vpow.pop %v3895
    %v3897 = vmul.f32 %v3887, 1.442695
    %v3898 = vpow.pop %v3897
    %v3899 = vmul.f32 %v3888, 1.442695
    %v3900 = vpow.pop %v3899
    %v3901 = vmul.f32 %v3889, 1.442695
    %v3902 = vpow.pop %v3901
    %v3903 = vmul.f32 %v3890, 1.442695
    %v3904 = vpow.pop %v3903
    %v3905 = vadd.f32 %v3892, 1.0
    %v3906 = vadd.f32 %v3894, 1.0
    %v3907 = vadd.f32 %v3896, 1.0
    %v3908 = vadd.f32 %v3898, 1.0
    %v3909 = vadd.f32 %v3900, 1.0
    %v3910 = vadd.f32 %v3902, 1.0
    %v3911 = vadd.f32 %v3904, 1.0
    %v3912 = vrcp.pop %v3905
    %v3913 = vmul.f32 1.0, %v3912
    %v3914 = vrcp.pop %v3906
    %v3915 = vmul.f32 1.0, %v3914
    %v3916 = vrcp.pop %v3907
    %v3917 = vmul.f32 1.0, %v3916
    %v3918 = vrcp.pop %v3908
    %v3919 = vmul.f32 1.0, %v3918
    %v3920 = vrcp.pop %v3909
    %v3921 = vmul.f32 1.0, %v3920
    %v3922 = vrcp.pop %v3910
    %v3923 = vmul.f32 1.0, %v3922
    %v3924 = vrcp.pop %v3911
    %v3925 = vmul.f32 1.0, %v3924
    %3926 = vst [vmem:[%s10] sm:$0xff] %v3913
    %3927 = vst [vmem:[%s10 + $0x8] sm:$0xff] %v3915
    %3928 = vst [vmem:[%s10 + $0x10] sm:$0xff] %v3917
    %3929 = vst [vmem:[%s10 + $0x18] sm:$0xff] %v3919
    %3930 = vst [vmem:[%s10 + $0x20] sm:$0xff] %v3921
    %3931 = vst [vmem:[%s10 + $0x28] sm:$0xff] %v3923
    %3932 = vst [vmem:[%s10 + $0x30] sm:$0xff] %v3925
    // Predicated region
    $region54: #{vae_forward.1} parent=1 // pred_check
      _
    $region55: #{vae_forward.1} parent=1 // pred_check_branch
      %3934 = sbr.rel (0) target = $region57
    $region56: #{vae_forward.1} parent=1 // pred_region
      _
    $region57: #{vae_forward.1} parent=1 // pred_fallthru
      _
    // Predicated region
    $region58: #{vae_forward.1} parent=1 // pred_check
      _
    $region59: #{vae_forward.1} parent=1 // pred_check_branch
      %3936 = sbr.rel (0) target = $region61
    $region60: #{vae_forward.1} parent=1 // pred_region
      _
    $region61: #{vae_forward.1} parent=1 // pred_fallthru
      _
    %3937 = vsyncpa [#allocation3], 1
    %3938 = vsyncpa [#allocation5], 1

</llo_original>
